<compile_context>
chip_gen: v5e
topology: v5e:2x2
jax: 0.10.0
libtpu: 0.0.40
codegen_flags: <defaults>
</compile_context>

<pallas_src>
import functools
import math

import jax
import jax.numpy as jnp
from jax import lax
from jax.experimental import pallas as pl
from jax.experimental.pallas import tpu as pltpu


def fused_encoder_kernel(x_ref, wqkv_ref, bqkv_ref, wo_ref, bo_ref,
                         g1_ref, be1_ref, w1_ref, b1_ref, w2_ref, b2_ref,
                         g2_ref, be2_ref, o_ref, x_vmem,
                         *, num_heads, ff_chunk):
    """One encoder layer per grid step; activation carried in VMEM across layers."""
    layer = pl.program_id(1)
    n_layers = pl.num_programs(1)

    # Load the input activation into the resident scratch only on the first layer.
    @pl.when(layer == 0)
    def _():
        x_vmem[...] = x_ref[0].astype(jnp.float32)

    x = x_vmem[...]                                   # (S, D) float32
    S, D = x.shape
    H = num_heads
    Dh = D // H
    scale = 1.0 / math.sqrt(Dh)
    bf16 = jnp.bfloat16

    x_bf = x.astype(bf16)

    # ---------------- multi-head self attention (batched over heads) -------------
    qkv = jnp.dot(x_bf, wqkv_ref[0],
                  preferred_element_type=jnp.float32) + bqkv_ref[0]      # (S, 3D)
    # (S, 3D) -> (3H, Dh, S): one 2-D transpose + a layout-preserving reshape.
    qkv_t = qkv.T.reshape(3 * H, Dh, S)
    q = jnp.swapaxes(qkv_t[0 * H:1 * H], 1, 2).astype(bf16)              # (H, S, Dh)
    k = jnp.swapaxes(qkv_t[1 * H:2 * H], 1, 2).astype(bf16)              # (H, S, Dh)
    v = jnp.swapaxes(qkv_t[2 * H:3 * H], 1, 2).astype(bf16)              # (H, S, Dh)

    s = jnp.einsum("hqd,hkd->hqk", q, k,
                   preferred_element_type=jnp.float32) * scale           # (H, S, S)
    s = s - jnp.max(s, axis=-1, keepdims=True)
    p = jnp.exp(s)
    p = p * pl.reciprocal(jnp.sum(p, axis=-1, keepdims=True), approx=True)
    ctx = jnp.einsum("hqk,hkd->hqd", p.astype(bf16), v,
                     preferred_element_type=jnp.float32)                 # (H, S, Dh)
    attn = jnp.swapaxes(ctx, 1, 2).reshape(D, S).T                       # (S, D)
    attn = jnp.dot(attn.astype(bf16), wo_ref[0],
                   preferred_element_type=jnp.float32) + bo_ref[0]

    # ---------------- residual + LayerNorm 1 (eps=1e-5, biased variance) ---------
    y = x + attn
    mu = jnp.mean(y, axis=-1, keepdims=True)
    var = jnp.mean((y - mu) ** 2, axis=-1, keepdims=True)
    y = (y - mu) * lax.rsqrt(var + 1e-5) * g1_ref[0] + be1_ref[0]

    # ---------------- feed-forward (relu), tiled over dim_feedforward ------------
    y_bf = y.astype(bf16)
    f_dim = w1_ref.shape[-1]
    n_chunks = f_dim // ff_chunk

    def ff_body(i, acc):
        c = pl.multiple_of(i * ff_chunk, ff_chunk)
        w1c = w1_ref[0, :, pl.ds(c, ff_chunk)]                           # (D, C) bf16
        b1c = b1_ref[0, :, pl.ds(c, ff_chunk)]                           # (1, C) f32
        h = jnp.dot(y_bf, w1c, preferred_element_type=jnp.float32) + b1c
        h = jnp.maximum(h, 0.0)                                          # relu
        w2c = w2_ref[0, pl.ds(c, ff_chunk), :]                           # (C, D) bf16
        return acc + jnp.dot(h.astype(bf16), w2c,
                             preferred_element_type=jnp.float32)

    ff = lax.fori_loop(0, n_chunks, ff_body,
                       jnp.zeros((S, D), jnp.float32), unroll=True)
    ff = ff + b2_ref[0]

    # ---------------- residual + LayerNorm 2 -------------------------------------
    z = y + ff
    mu2 = jnp.mean(z, axis=-1, keepdims=True)
    var2 = jnp.mean((z - mu2) ** 2, axis=-1, keepdims=True)
    z = (z - mu2) * lax.rsqrt(var2 + 1e-5) * g2_ref[0] + be2_ref[0]

    # Carry to the next layer; emit the output only after the last layer.
    x_vmem[...] = z

    @pl.when(layer == n_layers - 1)
    def _():
        o_ref[0] = z.astype(o_ref.dtype)


def central_encoder_forward(x, params, num_heads, *, ff_chunk=512):
    """Apply the full stack of encoder layers in a single fused pallas_call.

    x: (B, S, D) float32.  params: dict of layer-stacked arrays (leading layer axis).
    """
    B, S, D = x.shape
    L = params["wqkv"].shape[0]
    F = params["w1"].shape[-1]
    H = num_heads
    Dh = D // H
    ff_chunk = min(ff_chunk, F)
    assert F % ff_chunk == 0, "dim_feedforward must be divisible by ff_chunk"

    # Advisory cost estimate so XLA schedules the single fused custom call sensibly.
    flops_per_layer = (2 * S * D * 3 * D          # qkv projection
                       + 2 * 2 * H * S * S * Dh   # scores + context
                       + 2 * S * D * D            # output projection
                       + 2 * 2 * S * D * F)       # feed-forward
    cost = pl.CostEstimate(
        flops=B * L * flops_per_layer,
        transcendentals=B * L * (H * S * S + 4 * S),
        bytes_accessed=(B * L * 2 * (D * 3 * D + D * D + 2 * D * F)   # bf16 weights
                        + B * L * 4 * (9 * D + F)                     # f32 biases/LN
                        + 2 * B * S * D * 4),                         # x in / out
    )

    act_spec = pl.BlockSpec((1, S, D), lambda b, l: (b, 0, 0))

    def layer_spec(arr):
        return pl.BlockSpec((1,) + arr.shape[1:], lambda b, l: (l, 0, 0))

    names = ["wqkv", "bqkv", "wo", "bo", "g1", "be1",
             "w1", "b1", "w2", "b2", "g2", "be2"]
    kernel = functools.partial(fused_encoder_kernel,
                               num_heads=num_heads, ff_chunk=ff_chunk)

    return pl.pallas_call(
        kernel,
        out_shape=jax.ShapeDtypeStruct((B, S, D), x.dtype),
        grid=(B, L),
        in_specs=[act_spec] + [layer_spec(params[n]) for n in names],
        out_specs=act_spec,
        scratch_shapes=[pltpu.VMEM((S, D), jnp.float32)],
        compiler_params=pltpu.CompilerParams(
            dimension_semantics=("parallel", "arbitrary")),
        cost_estimate=cost,
    )(x, *[params[n] for n in names])


def init_central_encoder_params(key, options):
    """Layer-stacked parameters (leading layer axis). Weights bf16, biases/LN f32."""
    D = options["model_dim"]
    F = options.get("dim_feedforward", 2048)  # nn.TransformerEncoderLayer default
    L = (options["num_of_central_encoders"]
         * options["num_of_central_encoder_layers"])

    def xavier(k, shape):
        bound = math.sqrt(6.0 / (shape[0] + shape[1]))
        return jax.random.uniform(k, shape, jnp.float32, -bound, bound)

    def one_layer(k):
        k = jax.random.split(k, 4)
        return {
            "wqkv": xavier(k[0], (D, 3 * D)).astype(jnp.bfloat16),
            "bqkv": jnp.zeros((1, 3 * D), jnp.float32),
            "wo":   xavier(k[1], (D, D)).astype(jnp.bfloat16),
            "bo":   jnp.zeros((1, D), jnp.float32),
            "g1":   jnp.ones((1, D), jnp.float32),
            "be1":  jnp.zeros((1, D), jnp.float32),
            "w1":   xavier(k[2], (D, F)).astype(jnp.bfloat16),
            "b1":   jnp.zeros((1, F), jnp.float32),
            "w2":   xavier(k[3], (F, D)).astype(jnp.bfloat16),
            "b2":   jnp.zeros((1, D), jnp.float32),
            "g2":   jnp.ones((1, D), jnp.float32),
            "be2":  jnp.zeros((1, D), jnp.float32),
        }

    layers = [one_layer(k) for k in jax.random.split(key, L)]
    return {name: jnp.stack([lp[name] for lp in layers]) for name in layers[0]}


if __name__ == "__main__":
    # Options mirroring the PyTorch module's options_file (dropout == identity in eval).
    options = {
        "model_dim": 64,
        "num_of_central_attention_heads": 4,
        "central_dropout": 0.0,                 # inference: dropout == identity
        "central_activation_function": "relu",
        "num_of_central_encoder_layers": 2,
        "num_of_central_encoders": 2,
        "dim_feedforward": 2048,                # PyTorch TransformerEncoderLayer default
    }

    key = jax.random.PRNGKey(0)
    k_x, k_p = jax.random.split(key)

    B, S, D = 2, 16, options["model_dim"]
    x = jax.random.normal(k_x, (B, S, D), jnp.float32)
    params = init_central_encoder_params(k_p, options)

    y = central_encoder_forward(
        x, params, options["num_of_central_attention_heads"])
    jax.block_until_ready(y)
    assert y.shape == (B, S, D)
    assert bool(jnp.all(jnp.isfinite(y)))
    print("KERNEL_OK")
</pallas_src>

<mosaic_0001>
module attributes {stable_mosaic.version = 11 : i64} {
  func.func @fused_encoder_kernel(%arg0: i32, %arg1: i32, %arg2: memref<1x16x64xf32, #tpu.memory_space<vmem>>, %arg3: memref<1x64x192xbf16, #tpu.memory_space<vmem>>, %arg4: memref<1x1x192xf32, #tpu.memory_space<vmem>>, %arg5: memref<1x64x64xbf16, #tpu.memory_space<vmem>>, %arg6: memref<1x1x64xf32, #tpu.memory_space<vmem>>, %arg7: memref<1x1x64xf32, #tpu.memory_space<vmem>>, %arg8: memref<1x1x64xf32, #tpu.memory_space<vmem>>, %arg9: memref<1x64x2048xbf16, #tpu.memory_space<vmem>>, %arg10: memref<1x1x2048xf32, #tpu.memory_space<vmem>>, %arg11: memref<1x2048x64xbf16, #tpu.memory_space<vmem>>, %arg12: memref<1x1x64xf32, #tpu.memory_space<vmem>>, %arg13: memref<1x1x64xf32, #tpu.memory_space<vmem>>, %arg14: memref<1x1x64xf32, #tpu.memory_space<vmem>>, %arg15: memref<1x16x64xf32, #tpu.memory_space<vmem>>, %arg16: memref<16x64xf32, #tpu.memory_space<vmem>>) attributes {dimension_semantics = [#tpu.dimension_semantics<parallel>, #tpu.dimension_semantics<arbitrary>], iteration_bounds = array<i64: 2, 4>, scalar_prefetch = 0 : i64, scratch_operands = 1 : i64, tpu.core_type = #tpu.core_type<tc>, window_params = [{transform_indices = @transform_0, window_bounds = array<i64: 1, 16, 64>}, {transform_indices = @transform_1, window_bounds = array<i64: 1, 64, 192>}, {transform_indices = @transform_2, window_bounds = array<i64: 1, 1, 192>}, {transform_indices = @transform_3, window_bounds = array<i64: 1, 64, 64>}, {transform_indices = @transform_4, window_bounds = array<i64: 1, 1, 64>}, {transform_indices = @transform_5, window_bounds = array<i64: 1, 1, 64>}, {transform_indices = @transform_6, window_bounds = array<i64: 1, 1, 64>}, {transform_indices = @transform_7, window_bounds = array<i64: 1, 64, 2048>}, {transform_indices = @transform_8, window_bounds = array<i64: 1, 1, 2048>}, {transform_indices = @transform_9, window_bounds = array<i64: 1, 2048, 64>}, {transform_indices = @transform_10, window_bounds = array<i64: 1, 1, 64>}, {transform_indices = @transform_11, window_bounds = array<i64: 1, 1, 64>}, {transform_indices = @transform_12, window_bounds = array<i64: 1, 1, 64>}, {transform_indices = @transform_13, window_bounds = array<i64: 1, 16, 64>}]} {
    %c0_i32 = arith.constant 0 : i32
    %0 = arith.cmpi eq, %arg1, %c0_i32 : i32
    %1 = arith.extui %0 : i1 to i32
    %c0_i32_0 = arith.constant 0 : i32
    %2 = arith.cmpi ne, %1, %c0_i32_0 : i32
    scf.if %2 {
      %c0_90 = arith.constant 0 : index
      %c0_91 = arith.constant 0 : index
      %c0_92 = arith.constant 0 : index
      %189 = vector.load %arg2[%c0_90, %c0_91, %c0_92] : memref<1x16x64xf32, #tpu.memory_space<vmem>>, vector<1x16x64xf32>
      %190 = vector.shape_cast %189 : vector<1x16x64xf32> to vector<16x64xf32>
      %c0_93 = arith.constant 0 : index
      %c0_94 = arith.constant 0 : index
      %191 = vector.load %arg16[%c0_93, %c0_94] : memref<16x64xf32, #tpu.memory_space<vmem>>, vector<16x64xf32>
      tpu.vector_store %arg16[%c0_93, %c0_94], %190 {strides = array<i32>} : memref<16x64xf32, #tpu.memory_space<vmem>>, vector<16x64xf32>,
    } else {
    }
    %c0 = arith.constant 0 : index
    %c0_1 = arith.constant 0 : index
    %3 = vector.load %arg16[%c0, %c0_1] : memref<16x64xf32, #tpu.memory_space<vmem>>, vector<16x64xf32>
    %4 = arith.truncf %3 : vector<16x64xf32> to vector<16x64xbf16>
    %c0_2 = arith.constant 0 : index
    %c0_3 = arith.constant 0 : index
    %c0_4 = arith.constant 0 : index
    %5 = vector.load %arg3[%c0_2, %c0_3, %c0_4] : memref<1x64x192xbf16, #tpu.memory_space<vmem>>, vector<1x64x192xbf16>
    %6 = vector.shape_cast %5 : vector<1x64x192xbf16> to vector<64x192xbf16>
    %cst = arith.constant dense<0.000000e+00> : vector<16x192xf32>
    %7 = tpu.matmul %4, %6, %cst {dimension_numbers = #tpu.dot_dimension_numbers<[1], [0], [0], [1], [0, 0, 1, 1], [], []>} : vector<16x64xbf16>, vector<64x192xbf16>, vector<16x192xf32> -> vector<16x192xf32>
    %c0_5 = arith.constant 0 : index
    %c0_6 = arith.constant 0 : index
    %c0_7 = arith.constant 0 : index
    %8 = vector.load %arg4[%c0_5, %c0_6, %c0_7] : memref<1x1x192xf32, #tpu.memory_space<vmem>>, vector<1x1x192xf32>
    %9 = vector.shape_cast %8 : vector<1x1x192xf32> to vector<1x192xf32>
    %10 = vector.broadcast %9 : vector<1x192xf32> to vector<16x192xf32>
    %11 = arith.addf %7, %10 : vector<16x192xf32>
    %12 = tpu.transpose %11, [1, 0] : vector<16x192xf32> -> vector<192x16xf32>
    %13 = vector.shape_cast %12 : vector<192x16xf32> to vector<12x16x16xf32>
    %14 = vector.extract_strided_slice %13 {offsets = [0, 0, 0], sizes = [4, 16, 16], strides = [1, 1, 1]} : vector<12x16x16xf32> to vector<4x16x16xf32>
    %15 = tpu.transpose %14, [0, 2, 1] : vector<4x16x16xf32> -> vector<4x16x16xf32>
    %16 = arith.truncf %15 : vector<4x16x16xf32> to vector<4x16x16xbf16>
    %17 = vector.extract_strided_slice %13 {offsets = [4, 0, 0], sizes = [4, 16, 16], strides = [1, 1, 1]} : vector<12x16x16xf32> to vector<4x16x16xf32>
    %18 = tpu.transpose %17, [0, 2, 1] : vector<4x16x16xf32> -> vector<4x16x16xf32>
    %19 = arith.truncf %18 : vector<4x16x16xf32> to vector<4x16x16xbf16>
    %20 = vector.extract_strided_slice %13 {offsets = [8, 0, 0], sizes = [4, 16, 16], strides = [1, 1, 1]} : vector<12x16x16xf32> to vector<4x16x16xf32>
    %21 = tpu.transpose %20, [0, 2, 1] : vector<4x16x16xf32> -> vector<4x16x16xf32>
    %22 = arith.truncf %21 : vector<4x16x16xf32> to vector<4x16x16xbf16>
    "tpu.trace_start"() <{level = 10 : i32, message = "hqd,hkd->hqk"}> : () -> ()
    %cst_8 = arith.constant dense<0.000000e+00> : vector<4x16x16xf32>
    %23 = tpu.matmul %16, %19, %cst_8 {dimension_numbers = #tpu.dot_dimension_numbers<[2], [2], [1], [1], [0, 0, 0, 1, 1, 1], [0], [0]>} : vector<4x16x16xbf16>, vector<4x16x16xbf16>, vector<4x16x16xf32> -> vector<4x16x16xf32>
    "tpu.trace_stop"() : () -> ()
    %cst_9 = arith.constant 2.500000e-01 : f32
    %24 = vector.broadcast %cst_9 : f32 to vector<4x16x16xf32>
    %25 = arith.mulf %23, %24 : vector<4x16x16xf32>
    %cst_10 = arith.constant dense<0xFF800000> : vector<4x16xf32>
    %26 = vector.multi_reduction <maximumf>, %25, %cst_10 [2] : vector<4x16x16xf32> to vector<4x16xf32>
    %27 = vector.shape_cast %26 : vector<4x16xf32> to vector<4x16x1xf32>
    %28 = vector.broadcast %27 : vector<4x16x1xf32> to vector<4x16x16xf32>
    %29 = arith.subf %25, %28 : vector<4x16x16xf32>
    %30 = math.exp %29 : vector<4x16x16xf32>
    %cst_11 = arith.constant dense<0.000000e+00> : vector<4x16xf32>
    %31 = vector.multi_reduction <add>, %30, %cst_11 [2] : vector<4x16x16xf32> to vector<4x16xf32>
    %32 = vector.shape_cast %31 : vector<4x16xf32> to vector<4x16x1xf32>
    %33 = tpu.reciprocal %32 {approx = true} : vector<4x16x1xf32> -> vector<4x16x1xf32>
    %34 = vector.broadcast %33 : vector<4x16x1xf32> to vector<4x16x16xf32>
    %35 = arith.mulf %30, %34 : vector<4x16x16xf32>
    %36 = arith.truncf %35 : vector<4x16x16xf32> to vector<4x16x16xbf16>
    "tpu.trace_start"() <{level = 10 : i32, message = "hqk,hkd->hqd"}> : () -> ()
    %cst_12 = arith.constant dense<0.000000e+00> : vector<4x16x16xf32>
    %37 = tpu.matmul %36, %22, %cst_12 {dimension_numbers = #tpu.dot_dimension_numbers<[2], [1], [1], [2], [0, 0, 0, 1, 1, 2], [0], [0]>} : vector<4x16x16xbf16>, vector<4x16x16xbf16>, vector<4x16x16xf32> -> vector<4x16x16xf32>
    "tpu.trace_stop"() : () -> ()
    %38 = tpu.transpose %37, [0, 2, 1] : vector<4x16x16xf32> -> vector<4x16x16xf32>
    %39 = vector.shape_cast %38 : vector<4x16x16xf32> to vector<64x16xf32>
    %40 = tpu.transpose %39, [1, 0] : vector<64x16xf32> -> vector<16x64xf32>
    %41 = arith.truncf %40 : vector<16x64xf32> to vector<16x64xbf16>
    %c0_13 = arith.constant 0 : index
    %c0_14 = arith.constant 0 : index
    %c0_15 = arith.constant 0 : index
    %42 = vector.load %arg5[%c0_13, %c0_14, %c0_15] : memref<1x64x64xbf16, #tpu.memory_space<vmem>>, vector<1x64x64xbf16>
    %43 = vector.shape_cast %42 : vector<1x64x64xbf16> to vector<64x64xbf16>
    %cst_16 = arith.constant dense<0.000000e+00> : vector<16x64xf32>
    %44 = tpu.matmul %41, %43, %cst_16 {dimension_numbers = #tpu.dot_dimension_numbers<[1], [0], [0], [1], [0, 0, 1, 1], [], []>} : vector<16x64xbf16>, vector<64x64xbf16>, vector<16x64xf32> -> vector<16x64xf32>
    %c0_17 = arith.constant 0 : index
    %c0_18 = arith.constant 0 : index
    %c0_19 = arith.constant 0 : index
    %45 = vector.load %arg6[%c0_17, %c0_18, %c0_19] : memref<1x1x64xf32, #tpu.memory_space<vmem>>, vector<1x1x64xf32>
    %46 = vector.shape_cast %45 : vector<1x1x64xf32> to vector<1x64xf32>
    %47 = vector.broadcast %46 : vector<1x64xf32> to vector<16x64xf32>
    %48 = arith.addf %44, %47 : vector<16x64xf32>
    %49 = arith.addf %3, %48 : vector<16x64xf32>
    %cst_20 = arith.constant dense<0.000000e+00> : vector<16xf32>
    %50 = vector.multi_reduction <add>, %49, %cst_20 [1] : vector<16x64xf32> to vector<16xf32>
    %51 = vector.shape_cast %50 : vector<16xf32> to vector<16x1xf32>
    %cst_21 = arith.constant 6.400000e+01 : f32
    %52 = vector.broadcast %cst_21 : f32 to vector<16x1xf32>
    %53 = arith.divf %51, %52 : vector<16x1xf32>
    %54 = vector.broadcast %53 : vector<16x1xf32> to vector<16x64xf32>
    %55 = arith.subf %49, %54 : vector<16x64xf32>
    %56 = arith.mulf %55, %55 : vector<16x64xf32>
    %cst_22 = arith.constant dense<0.000000e+00> : vector<16xf32>
    %57 = vector.multi_reduction <add>, %56, %cst_22 [1] : vector<16x64xf32> to vector<16xf32>
    %58 = vector.shape_cast %57 : vector<16xf32> to vector<16x1xf32>
    %cst_23 = arith.constant 6.400000e+01 : f32
    %59 = vector.broadcast %cst_23 : f32 to vector<16x1xf32>
    %60 = arith.divf %58, %59 : vector<16x1xf32>
    %61 = vector.broadcast %53 : vector<16x1xf32> to vector<16x64xf32>
    %62 = arith.subf %49, %61 : vector<16x64xf32>
    %cst_24 = arith.constant 9.99999974E-6 : f32
    %63 = vector.broadcast %cst_24 : f32 to vector<16x1xf32>
    %64 = arith.addf %60, %63 : vector<16x1xf32>
    %65 = math.rsqrt %64 : vector<16x1xf32>
    %66 = vector.broadcast %65 : vector<16x1xf32> to vector<16x64xf32>
    %67 = arith.mulf %62, %66 : vector<16x64xf32>
    %c0_25 = arith.constant 0 : index
    %c0_26 = arith.constant 0 : index
    %c0_27 = arith.constant 0 : index
    %68 = vector.load %arg7[%c0_25, %c0_26, %c0_27] : memref<1x1x64xf32, #tpu.memory_space<vmem>>, vector<1x1x64xf32>
    %69 = vector.shape_cast %68 : vector<1x1x64xf32> to vector<1x64xf32>
    %70 = vector.broadcast %69 : vector<1x64xf32> to vector<16x64xf32>
    %71 = arith.mulf %67, %70 : vector<16x64xf32>
    %c0_28 = arith.constant 0 : index
    %c0_29 = arith.constant 0 : index
    %c0_30 = arith.constant 0 : index
    %72 = vector.load %arg8[%c0_28, %c0_29, %c0_30] : memref<1x1x64xf32, #tpu.memory_space<vmem>>, vector<1x1x64xf32>
    %73 = vector.shape_cast %72 : vector<1x1x64xf32> to vector<1x64xf32>
    %74 = vector.broadcast %73 : vector<1x64xf32> to vector<16x64xf32>
    %75 = arith.addf %71, %74 : vector<16x64xf32>
    %76 = arith.truncf %75 : vector<16x64xf32> to vector<16x64xbf16>
    %cst_31 = arith.constant 0.000000e+00 : f32
    %77 = vector.broadcast %cst_31 : f32 to vector<16x64xf32>
    %c0_i32_32 = arith.constant 0 : i32
    %c512_i32 = arith.constant 512 : i32
    %78 = arith.muli %c0_i32_32, %c512_i32 : i32
    %79 = tpu.assume_multiple %78, 512 : i32
    %c0_33 = arith.constant 0 : index
    %c0_34 = arith.constant 0 : index
    %80 = arith.index_cast %79 : i32 to index
    %81 = vector.load %arg9[%c0_33, %c0_34, %80] : memref<1x64x2048xbf16, #tpu.memory_space<vmem>>, vector<1x64x512xbf16>
    %82 = vector.shape_cast %81 : vector<1x64x512xbf16> to vector<64x512xbf16>
    %c0_35 = arith.constant 0 : index
    %c0_36 = arith.constant 0 : index
    %83 = arith.index_cast %79 : i32 to index
    %84 = vector.load %arg10[%c0_35, %c0_36, %83] : memref<1x1x2048xf32, #tpu.memory_space<vmem>>, vector<1x1x512xf32>
    %85 = vector.shape_cast %84 : vector<1x1x512xf32> to vector<1x512xf32>
    %cst_37 = arith.constant dense<0.000000e+00> : vector<16x512xf32>
    %86 = tpu.matmul %76, %82, %cst_37 {dimension_numbers = #tpu.dot_dimension_numbers<[1], [0], [0], [1], [0, 0, 1, 1], [], []>} : vector<16x64xbf16>, vector<64x512xbf16>, vector<16x512xf32> -> vector<16x512xf32>
    %87 = vector.broadcast %85 : vector<1x512xf32> to vector<16x512xf32>
    %88 = arith.addf %86, %87 : vector<16x512xf32>
    %cst_38 = arith.constant 0.000000e+00 : f32
    %89 = vector.broadcast %cst_38 : f32 to vector<16x512xf32>
    %90 = arith.maximumf %88, %89 : vector<16x512xf32>
    %c0_39 = arith.constant 0 : index
    %91 = arith.index_cast %79 : i32 to index
    %c0_40 = arith.constant 0 : index
    %92 = vector.load %arg11[%c0_39, %91, %c0_40] : memref<1x2048x64xbf16, #tpu.memory_space<vmem>>, vector<1x512x64xbf16>
    %93 = vector.shape_cast %92 : vector<1x512x64xbf16> to vector<512x64xbf16>
    %94 = arith.truncf %90 : vector<16x512xf32> to vector<16x512xbf16>
    %cst_41 = arith.constant dense<0.000000e+00> : vector<16x64xf32>
    %95 = tpu.matmul %94, %93, %cst_41 {dimension_numbers = #tpu.dot_dimension_numbers<[1], [0], [0], [1], [0, 0, 1, 1], [], []>} : vector<16x512xbf16>, vector<512x64xbf16>, vector<16x64xf32> -> vector<16x64xf32>
    %96 = arith.addf %77, %95 : vector<16x64xf32>
    %c1_i32 = arith.constant 1 : i32
    %c512_i32_42 = arith.constant 512 : i32
    %97 = arith.muli %c1_i32, %c512_i32_42 : i32
    %98 = tpu.assume_multiple %97, 512 : i32
    %c0_43 = arith.constant 0 : index
    %c0_44 = arith.constant 0 : index
    %99 = arith.index_cast %98 : i32 to index
    %100 = vector.load %arg9[%c0_43, %c0_44, %99] : memref<1x64x2048xbf16, #tpu.memory_space<vmem>>, vector<1x64x512xbf16>
    %101 = vector.shape_cast %100 : vector<1x64x512xbf16> to vector<64x512xbf16>
    %c0_45 = arith.constant 0 : index
    %c0_46 = arith.constant 0 : index
    %102 = arith.index_cast %98 : i32 to index
    %103 = vector.load %arg10[%c0_45, %c0_46, %102] : memref<1x1x2048xf32, #tpu.memory_space<vmem>>, vector<1x1x512xf32>
    %104 = vector.shape_cast %103 : vector<1x1x512xf32> to vector<1x512xf32>
    %cst_47 = arith.constant dense<0.000000e+00> : vector<16x512xf32>
    %105 = tpu.matmul %76, %101, %cst_47 {dimension_numbers = #tpu.dot_dimension_numbers<[1], [0], [0], [1], [0, 0, 1, 1], [], []>} : vector<16x64xbf16>, vector<64x512xbf16>, vector<16x512xf32> -> vector<16x512xf32>
    %106 = vector.broadcast %104 : vector<1x512xf32> to vector<16x512xf32>
    %107 = arith.addf %105, %106 : vector<16x512xf32>
    %cst_48 = arith.constant 0.000000e+00 : f32
    %108 = vector.broadcast %cst_48 : f32 to vector<16x512xf32>
    %109 = arith.maximumf %107, %108 : vector<16x512xf32>
    %c0_49 = arith.constant 0 : index
    %110 = arith.index_cast %98 : i32 to index
    %c0_50 = arith.constant 0 : index
    %111 = vector.load %arg11[%c0_49, %110, %c0_50] : memref<1x2048x64xbf16, #tpu.memory_space<vmem>>, vector<1x512x64xbf16>
    %112 = vector.shape_cast %111 : vector<1x512x64xbf16> to vector<512x64xbf16>
    %113 = arith.truncf %109 : vector<16x512xf32> to vector<16x512xbf16>
    %cst_51 = arith.constant dense<0.000000e+00> : vector<16x64xf32>
    %114 = tpu.matmul %113, %112, %cst_51 {dimension_numbers = #tpu.dot_dimension_numbers<[1], [0], [0], [1], [0, 0, 1, 1], [], []>} : vector<16x512xbf16>, vector<512x64xbf16>, vector<16x64xf32> -> vector<16x64xf32>
    %115 = arith.addf %96, %114 : vector<16x64xf32>
    %c2_i32 = arith.constant 2 : i32
    %c512_i32_52 = arith.constant 512 : i32
    %116 = arith.muli %c2_i32, %c512_i32_52 : i32
    %117 = tpu.assume_multiple %116, 512 : i32
    %c0_53 = arith.constant 0 : index
    %c0_54 = arith.constant 0 : index
    %118 = arith.index_cast %117 : i32 to index
    %119 = vector.load %arg9[%c0_53, %c0_54, %118] : memref<1x64x2048xbf16, #tpu.memory_space<vmem>>, vector<1x64x512xbf16>
    %120 = vector.shape_cast %119 : vector<1x64x512xbf16> to vector<64x512xbf16>
    %c0_55 = arith.constant 0 : index
    %c0_56 = arith.constant 0 : index
    %121 = arith.index_cast %117 : i32 to index
    %122 = vector.load %arg10[%c0_55, %c0_56, %121] : memref<1x1x2048xf32, #tpu.memory_space<vmem>>, vector<1x1x512xf32>
    %123 = vector.shape_cast %122 : vector<1x1x512xf32> to vector<1x512xf32>
    %cst_57 = arith.constant dense<0.000000e+00> : vector<16x512xf32>
    %124 = tpu.matmul %76, %120, %cst_57 {dimension_numbers = #tpu.dot_dimension_numbers<[1], [0], [0], [1], [0, 0, 1, 1], [], []>} : vector<16x64xbf16>, vector<64x512xbf16>, vector<16x512xf32> -> vector<16x512xf32>
    %125 = vector.broadcast %123 : vector<1x512xf32> to vector<16x512xf32>
    %126 = arith.addf %124, %125 : vector<16x512xf32>
    %cst_58 = arith.constant 0.000000e+00 : f32
    %127 = vector.broadcast %cst_58 : f32 to vector<16x512xf32>
    %128 = arith.maximumf %126, %127 : vector<16x512xf32>
    %c0_59 = arith.constant 0 : index
    %129 = arith.index_cast %117 : i32 to index
    %c0_60 = arith.constant 0 : index
    %130 = vector.load %arg11[%c0_59, %129, %c0_60] : memref<1x2048x64xbf16, #tpu.memory_space<vmem>>, vector<1x512x64xbf16>
    %131 = vector.shape_cast %130 : vector<1x512x64xbf16> to vector<512x64xbf16>
    %132 = arith.truncf %128 : vector<16x512xf32> to vector<16x512xbf16>
    %cst_61 = arith.constant dense<0.000000e+00> : vector<16x64xf32>
    %133 = tpu.matmul %132, %131, %cst_61 {dimension_numbers = #tpu.dot_dimension_numbers<[1], [0], [0], [1], [0, 0, 1, 1], [], []>} : vector<16x512xbf16>, vector<512x64xbf16>, vector<16x64xf32> -> vector<16x64xf32>
    %134 = arith.addf %115, %133 : vector<16x64xf32>
    %c3_i32 = arith.constant 3 : i32
    %c512_i32_62 = arith.constant 512 : i32
    %135 = arith.muli %c3_i32, %c512_i32_62 : i32
    %136 = tpu.assume_multiple %135, 512 : i32
    %c0_63 = arith.constant 0 : index
    %c0_64 = arith.constant 0 : index
    %137 = arith.index_cast %136 : i32 to index
    %138 = vector.load %arg9[%c0_63, %c0_64, %137] : memref<1x64x2048xbf16, #tpu.memory_space<vmem>>, vector<1x64x512xbf16>
    %139 = vector.shape_cast %138 : vector<1x64x512xbf16> to vector<64x512xbf16>
    %c0_65 = arith.constant 0 : index
    %c0_66 = arith.constant 0 : index
    %140 = arith.index_cast %136 : i32 to index
    %141 = vector.load %arg10[%c0_65, %c0_66, %140] : memref<1x1x2048xf32, #tpu.memory_space<vmem>>, vector<1x1x512xf32>
    %142 = vector.shape_cast %141 : vector<1x1x512xf32> to vector<1x512xf32>
    %cst_67 = arith.constant dense<0.000000e+00> : vector<16x512xf32>
    %143 = tpu.matmul %76, %139, %cst_67 {dimension_numbers = #tpu.dot_dimension_numbers<[1], [0], [0], [1], [0, 0, 1, 1], [], []>} : vector<16x64xbf16>, vector<64x512xbf16>, vector<16x512xf32> -> vector<16x512xf32>
    %144 = vector.broadcast %142 : vector<1x512xf32> to vector<16x512xf32>
    %145 = arith.addf %143, %144 : vector<16x512xf32>
    %cst_68 = arith.constant 0.000000e+00 : f32
    %146 = vector.broadcast %cst_68 : f32 to vector<16x512xf32>
    %147 = arith.maximumf %145, %146 : vector<16x512xf32>
    %c0_69 = arith.constant 0 : index
    %148 = arith.index_cast %136 : i32 to index
    %c0_70 = arith.constant 0 : index
    %149 = vector.load %arg11[%c0_69, %148, %c0_70] : memref<1x2048x64xbf16, #tpu.memory_space<vmem>>, vector<1x512x64xbf16>
    %150 = vector.shape_cast %149 : vector<1x512x64xbf16> to vector<512x64xbf16>
    %151 = arith.truncf %147 : vector<16x512xf32> to vector<16x512xbf16>
    %cst_71 = arith.constant dense<0.000000e+00> : vector<16x64xf32>
    %152 = tpu.matmul %151, %150, %cst_71 {dimension_numbers = #tpu.dot_dimension_numbers<[1], [0], [0], [1], [0, 0, 1, 1], [], []>} : vector<16x512xbf16>, vector<512x64xbf16>, vector<16x64xf32> -> vector<16x64xf32>
    %153 = arith.addf %134, %152 : vector<16x64xf32>
    %c4_i32 = arith.constant 4 : i32
    %c0_72 = arith.constant 0 : index
    %c0_73 = arith.constant 0 : index
    %c0_74 = arith.constant 0 : index
    %154 = vector.load %arg12[%c0_72, %c0_73, %c0_74] : memref<1x1x64xf32, #tpu.memory_space<vmem>>, vector<1x1x64xf32>
    %155 = vector.shape_cast %154 : vector<1x1x64xf32> to vector<1x64xf32>
    %156 = vector.broadcast %155 : vector<1x64xf32> to vector<16x64xf32>
    %157 = arith.addf %153, %156 : vector<16x64xf32>
    %158 = arith.addf %75, %157 : vector<16x64xf32>
    %cst_75 = arith.constant dense<0.000000e+00> : vector<16xf32>
    %159 = vector.multi_reduction <add>, %158, %cst_75 [1] : vector<16x64xf32> to vector<16xf32>
    %160 = vector.shape_cast %159 : vector<16xf32> to vector<16x1xf32>
    %cst_76 = arith.constant 6.400000e+01 : f32
    %161 = vector.broadcast %cst_76 : f32 to vector<16x1xf32>
    %162 = arith.divf %160, %161 : vector<16x1xf32>
    %163 = vector.broadcast %162 : vector<16x1xf32> to vector<16x64xf32>
    %164 = arith.subf %158, %163 : vector<16x64xf32>
    %165 = arith.mulf %164, %164 : vector<16x64xf32>
    %cst_77 = arith.constant dense<0.000000e+00> : vector<16xf32>
    %166 = vector.multi_reduction <add>, %165, %cst_77 [1] : vector<16x64xf32> to vector<16xf32>
    %167 = vector.shape_cast %166 : vector<16xf32> to vector<16x1xf32>
    %cst_78 = arith.constant 6.400000e+01 : f32
    %168 = vector.broadcast %cst_78 : f32 to vector<16x1xf32>
    %169 = arith.divf %167, %168 : vector<16x1xf32>
    %170 = vector.broadcast %162 : vector<16x1xf32> to vector<16x64xf32>
    %171 = arith.subf %158, %170 : vector<16x64xf32>
    %cst_79 = arith.constant 9.99999974E-6 : f32
    %172 = vector.broadcast %cst_79 : f32 to vector<16x1xf32>
    %173 = arith.addf %169, %172 : vector<16x1xf32>
    %174 = math.rsqrt %173 : vector<16x1xf32>
    %175 = vector.broadcast %174 : vector<16x1xf32> to vector<16x64xf32>
    %176 = arith.mulf %171, %175 : vector<16x64xf32>
    %c0_80 = arith.constant 0 : index
    %c0_81 = arith.constant 0 : index
    %c0_82 = arith.constant 0 : index
    %177 = vector.load %arg13[%c0_80, %c0_81, %c0_82] : memref<1x1x64xf32, #tpu.memory_space<vmem>>, vector<1x1x64xf32>
    %178 = vector.shape_cast %177 : vector<1x1x64xf32> to vector<1x64xf32>
    %179 = vector.broadcast %178 : vector<1x64xf32> to vector<16x64xf32>
    %180 = arith.mulf %176, %179 : vector<16x64xf32>
    %c0_83 = arith.constant 0 : index
    %c0_84 = arith.constant 0 : index
    %c0_85 = arith.constant 0 : index
    %181 = vector.load %arg14[%c0_83, %c0_84, %c0_85] : memref<1x1x64xf32, #tpu.memory_space<vmem>>, vector<1x1x64xf32>
    %182 = vector.shape_cast %181 : vector<1x1x64xf32> to vector<1x64xf32>
    %183 = vector.broadcast %182 : vector<1x64xf32> to vector<16x64xf32>
    %184 = arith.addf %180, %183 : vector<16x64xf32>
    %c0_86 = arith.constant 0 : index
    %c0_87 = arith.constant 0 : index
    %185 = vector.load %arg16[%c0_86, %c0_87] : memref<16x64xf32, #tpu.memory_space<vmem>>, vector<16x64xf32>
    tpu.vector_store %arg16[%c0_86, %c0_87], %184 {strides = array<i32>} : memref<16x64xf32, #tpu.memory_space<vmem>>, vector<16x64xf32>,
    %c3_i32_88 = arith.constant 3 : i32
    %186 = arith.cmpi eq, %arg1, %c3_i32_88 : i32
    %187 = arith.extui %186 : i1 to i32
    %c0_i32_89 = arith.constant 0 : i32
    %188 = arith.cmpi ne, %187, %c0_i32_89 : i32
    scf.if %188 {
      %c0_90 = arith.constant 0 : index
      %c0_91 = arith.constant 0 : index
      %c0_92 = arith.constant 0 : index
      %189 = vector.load %arg15[%c0_90, %c0_91, %c0_92] : memref<1x16x64xf32, #tpu.memory_space<vmem>>, vector<1x16x64xf32>
      %190 = vector.shape_cast %189 : vector<1x16x64xf32> to vector<16x64xf32>
      %191 = vector.shape_cast %184 : vector<16x64xf32> to vector<1x16x64xf32>
      tpu.vector_store %arg15[%c0_90, %c0_91, %c0_92], %191 {strides = array<i32>} : memref<1x16x64xf32, #tpu.memory_space<vmem>>, vector<1x16x64xf32>,
    } else {
    }
    return
  }
  func.func @transform_0(%arg0: i32, %arg1: i32) -> (i32, i32, i32) {
    %c0_i32 = arith.constant 0 : i32
    %c0_i32_0 = arith.constant 0 : i32
    %c0_i32_1 = arith.constant 0 : i32
    return %arg0, %c0_i32, %c0_i32_0 : i32, i32, i32
  }
  func.func @transform_1(%arg0: i32, %arg1: i32) -> (i32, i32, i32) {
    %c0_i32 = arith.constant 0 : i32
    %c0_i32_0 = arith.constant 0 : i32
    %c0_i32_1 = arith.constant 0 : i32
    return %arg1, %c0_i32, %c0_i32_0 : i32, i32, i32
  }
  func.func @transform_2(%arg0: i32, %arg1: i32) -> (i32, i32, i32) {
    %c0_i32 = arith.constant 0 : i32
    %c0_i32_0 = arith.constant 0 : i32
    %c0_i32_1 = arith.constant 0 : i32
    return %arg1, %c0_i32, %c0_i32_0 : i32, i32, i32
  }
  func.func @transform_3(%arg0: i32, %arg1: i32) -> (i32, i32, i32) {
    %c0_i32 = arith.constant 0 : i32
    %c0_i32_0 = arith.constant 0 : i32
    %c0_i32_1 = arith.constant 0 : i32
    return %arg1, %c0_i32, %c0_i32_0 : i32, i32, i32
  }
  func.func @transform_4(%arg0: i32, %arg1: i32) -> (i32, i32, i32) {
    %c0_i32 = arith.constant 0 : i32
    %c0_i32_0 = arith.constant 0 : i32
    %c0_i32_1 = arith.constant 0 : i32
    return %arg1, %c0_i32, %c0_i32_0 : i32, i32, i32
  }
  func.func @transform_5(%arg0: i32, %arg1: i32) -> (i32, i32, i32) {
    %c0_i32 = arith.constant 0 : i32
    %c0_i32_0 = arith.constant 0 : i32
    %c0_i32_1 = arith.constant 0 : i32
    return %arg1, %c0_i32, %c0_i32_0 : i32, i32, i32
  }
  func.func @transform_6(%arg0: i32, %arg1: i32) -> (i32, i32, i32) {
    %c0_i32 = arith.constant 0 : i32
    %c0_i32_0 = arith.constant 0 : i32
    %c0_i32_1 = arith.constant 0 : i32
    return %arg1, %c0_i32, %c0_i32_0 : i32, i32, i32
  }
  func.func @transform_7(%arg0: i32, %arg1: i32) -> (i32, i32, i32) {
    %c0_i32 = arith.constant 0 : i32
    %c0_i32_0 = arith.constant 0 : i32
    %c0_i32_1 = arith.constant 0 : i32
    return %arg1, %c0_i32, %c0_i32_0 : i32, i32, i32
  }
  func.func @transform_8(%arg0: i32, %arg1: i32) -> (i32, i32, i32) {
    %c0_i32 = arith.constant 0 : i32
    %c0_i32_0 = arith.constant 0 : i32
    %c0_i32_1 = arith.constant 0 : i32
    return %arg1, %c0_i32, %c0_i32_0 : i32, i32, i32
  }
  func.func @transform_9(%arg0: i32, %arg1: i32) -> (i32, i32, i32) {
    %c0_i32 = arith.constant 0 : i32
    %c0_i32_0 = arith.constant 0 : i32
    %c0_i32_1 = arith.constant 0 : i32
    return %arg1, %c0_i32, %c0_i32_0 : i32, i32, i32
  }
  func.func @transform_10(%arg0: i32, %arg1: i32) -> (i32, i32, i32) {
    %c0_i32 = arith.constant 0 : i32
    %c0_i32_0 = arith.constant 0 : i32
    %c0_i32_1 = arith.constant 0 : i32
    return %arg1, %c0_i32, %c0_i32_0 : i32, i32, i32
  }
  func.func @transform_11(%arg0: i32, %arg1: i32) -> (i32, i32, i32) {
    %c0_i32 = arith.constant 0 : i32
    %c0_i32_0 = arith.constant 0 : i32
    %c0_i32_1 = arith.constant 0 : i32
    return %arg1, %c0_i32, %c0_i32_0 : i32, i32, i32
  }
  func.func @transform_12(%arg0: i32, %arg1: i32) -> (i32, i32, i32) {
    %c0_i32 = arith.constant 0 : i32
    %c0_i32_0 = arith.constant 0 : i32
    %c0_i32_1 = arith.constant 0 : i32
    return %arg1, %c0_i32, %c0_i32_0 : i32, i32, i32
  }
  func.func @transform_13(%arg0: i32, %arg1: i32) -> (i32, i32, i32) {
    %c0_i32 = arith.constant 0 : i32
    %c0_i32_0 = arith.constant 0 : i32
    %c0_i32_1 = arith.constant 0 : i32
    return %arg0, %c0_i32, %c0_i32_0 : i32, i32, i32
  }
}

</mosaic_0001>

<llo_original>
// kernel: tpu_custom_call.1
$region0: #{tpu_custom_call.1}
  #allocation0 [shape = 'u32[]', space=smem, size = 0x4, offset = 0x4, fixed_abs, tag = 'smem constant byte address 0x4 - core index']
  #allocation1 [shape = 'u32[72,128]{1,0:T(1,128)}', space=vmem, size = 0x9000, scoped, tag = 'internal scratch']
  #allocation2 [shape = 'f32[16,64]{1,0:T(8,128)}', space=vmem, size = 0x2000, scoped, tag = 'scratch operand']
  %s0 = inlined_call_operand.vmem [shape: f32[2,16,64], index: 0, kind: input, shape index: {}]
  %s1 = inlined_call_operand.vmem [shape: bf16[4,64,192], index: 1, kind: input, shape index: {}]
  %s2 = inlined_call_operand.vmem [shape: f32[4,1,192], index: 2, kind: input, shape index: {}]
  %s3 = inlined_call_operand.vmem [shape: bf16[4,64,64], index: 3, kind: input, shape index: {}]
  %s4 = inlined_call_operand.vmem [shape: f32[4,1,64], index: 4, kind: input, shape index: {}]
  %s5 = inlined_call_operand.vmem [shape: f32[4,1,64], index: 5, kind: input, shape index: {}]
  %s6 = inlined_call_operand.vmem [shape: f32[4,1,64], index: 6, kind: input, shape index: {}]
  %s7 = inlined_call_operand.vmem [shape: bf16[4,64,2048], index: 7, kind: input, shape index: {}]
  %s8 = inlined_call_operand.vmem [shape: f32[4,1,2048], index: 8, kind: input, shape index: {}]
  %s9 = inlined_call_operand.vmem [shape: bf16[4,2048,64], index: 9, kind: input, shape index: {}]
  %s10 = inlined_call_operand.vmem [shape: f32[4,1,64], index: 10, kind: input, shape index: {}]
  %s11 = inlined_call_operand.vmem [shape: f32[4,1,64], index: 11, kind: input, shape index: {}]
  %s12 = inlined_call_operand.vmem [shape: f32[4,1,64], index: 12, kind: input, shape index: {}]
  %s13 = inlined_call_operand.hbm [shape: f32[2,16,64], index: 13, kind: output, shape index: {}]
  %s14 = sld [smem:[#allocation0]]
  $region93: #{tpu_custom_call.1} parent=0
    _
  %s16 = ssub.s32 1, %s14
  %s17 = scalar_select 0, %s16, %s14
  $region1: #{tpu_custom_call.1} parent=0
    #allocation3 [shape = 'u8[16384]{0}', space=vmem, size = 0x4000, scoped, tag = 'output window, operand 0']
    #allocation4 [shape = 's32[2]{0}', space=sflag, size = 0x8, scoped, tag = 'scoped memory for tpu_custom_call.1']
    %18 = vsyncpa [#allocation4], 0
    %s19 = scalar_lea.sflag [#allocation4], 1
    %20 = vsyncpa %s19, 0
    loop: start=0, step=1, limit=10
    $region2: #{tpu_custom_call.1} parent=1 // loop_pre_header
      _
    $region3: #{tpu_custom_call.1} parent=1 // loop_header
      %s22 = sphi 0, %s26
      %p23 = scmp.ge.s32.totalorder %s22, 10
      %s29 = sphi 0, %s41
      %s30 = sphi 0, %s37
      %s31 = sphi 0, %s29
      %s32 = sphi 0, %s30
      %s33 = sphi 0, %s31
      %s34 = sphi 0, %s32
      %s44 = sphi 0, %s46
      %s47 = sphi 0, %s44
      %s48 = sphi 0, %s47
      %s64 = sphi 0, %s48
      %s70 = sphi 0, %s72
      %s73 = sphi 0, %s70
      %s74 = sphi 0, %s73
      %s90 = sphi 0, %s74
      %s96 = sphi 0, %s98
      %s99 = sphi 0, %s96
      %s100 = sphi 0, %s99
      %s116 = sphi 0, %s100
      %s122 = sphi 0, %s124
      %s125 = sphi 0, %s122
      %s126 = sphi 0, %s125
      %s142 = sphi 0, %s126
      %s148 = sphi 0, %s150
      %s151 = sphi 0, %s148
      %s152 = sphi 0, %s151
      %s168 = sphi 0, %s152
      %s174 = sphi 0, %s176
      %s177 = sphi 0, %s174
      %s178 = sphi 0, %s177
      %s194 = sphi 0, %s178
      %s200 = sphi 0, %s202
      %s203 = sphi 0, %s200
      %s204 = sphi 0, %s203
      %s220 = sphi 0, %s204
      %s226 = sphi 0, %s228
      %s229 = sphi 0, %s226
      %s230 = sphi 0, %s229
      %s246 = sphi 0, %s230
      %s252 = sphi 0, %s254
      %s255 = sphi 0, %s252
      %s256 = sphi 0, %s255
      %s272 = sphi 0, %s256
      %s278 = sphi 0, %s280
      %s281 = sphi 0, %s278
      %s282 = sphi 0, %s281
      %s298 = sphi 0, %s282
      %s304 = sphi 0, %s306
      %s307 = sphi 0, %s304
      %s308 = sphi 0, %s307
      %s324 = sphi 0, %s308
      %s330 = sphi 0, %s332
      %s333 = sphi 0, %s330
      %s334 = sphi 0, %s333
      %s350 = sphi 0, %s334
      %s356 = sphi 0, %s358
      %s359 = sphi 0, %s356
      %s360 = sphi 0, %s359
      %s376 = sphi 0, %s360
      %s382 = sphi 0, %s384
      %s385 = sphi 0, %s382
      %s386 = sphi 0, %s385
      %s402 = sphi 0, %s386
    $region4: #{tpu_custom_call.1} parent=1 // loop_header_branch
      %25 = sbr.rel (%p23) target = $region8
    $region5: #{tpu_custom_call.1} parent=1 // loop_body
      %s27 = ssub.s32 %s22, 1
      %s28 = ssub.s32 %s22, 2
      %s35 = sadd.s32 1, %s30
      %p36 = scmp.ge.s32.totalorder %s35, 4
      %s37 = scalar_select %p36, 0, %s35
      %s38 = sadd.s32 1, %s29
      %s39 = scalar_select %p36, %s38, %s29
      %p40 = scmp.ge.s32.totalorder %s39, 2
      %s41 = scalar_select %p40, 0, %s39
      %s42 = ssub.s32 %s29, %s41
      %p43 = scmp.eq.s32.totalorder %s42, 0
      %s45 = sadd.s32 %s44, 1
      %s46 = scalar_select %p43, %s44, %s45
      %p49 = pneg %p43
      %p50 = scmp.eq.s32.totalorder %s22, 7
      %p51 = por %p49, %p50
      %p52 = scmp.ne.s32.totalorder %s44, %s47
      %p53 = scmp.eq.s32.totalorder %s22, 0
      %p54 = por %p52, %p53
      %p55 = scmp.ne.s32.totalorder %s44, %s47
      %p56 = scmp.eq.s32.totalorder %s27, 7
      %p57 = por %p55, %p56
      %p58 = scmp.ne.s32.totalorder %s47, %s48
      %p59 = scmp.eq.s32.totalorder %s27, 0
      %p60 = por %p58, %p59
      %p61 = scmp.ne.s32.totalorder %s47, %s48
      %p62 = scmp.eq.s32.totalorder %s28, 7
      %p63 = por %p61, %p62
      %p65 = scmp.ne.s32.totalorder %s48, %s64
      %p66 = scmp.eq.s32.totalorder %s28, 0
      %p67 = por %p65, %p66
      %s68 = ssub.s32 %s30, %s37
      %p69 = scmp.eq.s32.totalorder %s68, 0
      %s71 = sadd.s32 %s70, 1
      %s72 = scalar_select %p69, %s70, %s71
      %p75 = pneg %p69
      %p76 = scmp.eq.s32.totalorder %s22, 7
      %p77 = por %p75, %p76
      %p78 = scmp.ne.s32.totalorder %s70, %s73
      %p79 = scmp.eq.s32.totalorder %s22, 0
      %p80 = por %p78, %p79
      %p81 = scmp.ne.s32.totalorder %s70, %s73
      %p82 = scmp.eq.s32.totalorder %s27, 7
      %p83 = por %p81, %p82
      %p84 = scmp.ne.s32.totalorder %s73, %s74
      %p85 = scmp.eq.s32.totalorder %s27, 0
      %p86 = por %p84, %p85
      %p87 = scmp.ne.s32.totalorder %s73, %s74
      %p88 = scmp.eq.s32.totalorder %s28, 7
      %p89 = por %p87, %p88
      %p91 = scmp.ne.s32.totalorder %s74, %s90
      %p92 = scmp.eq.s32.totalorder %s28, 0
      %p93 = por %p91, %p92
      %s94 = ssub.s32 %s30, %s37
      %p95 = scmp.eq.s32.totalorder %s94, 0
      %s97 = sadd.s32 %s96, 1
      %s98 = scalar_select %p95, %s96, %s97
      %p101 = pneg %p95
      %p102 = scmp.eq.s32.totalorder %s22, 7
      %p103 = por %p101, %p102
      %p104 = scmp.ne.s32.totalorder %s96, %s99
      %p105 = scmp.eq.s32.totalorder %s22, 0
      %p106 = por %p104, %p105
      %p107 = scmp.ne.s32.totalorder %s96, %s99
      %p108 = scmp.eq.s32.totalorder %s27, 7
      %p109 = por %p107, %p108
      %p110 = scmp.ne.s32.totalorder %s99, %s100
      %p111 = scmp.eq.s32.totalorder %s27, 0
      %p112 = por %p110, %p111
      %p113 = scmp.ne.s32.totalorder %s99, %s100
      %p114 = scmp.eq.s32.totalorder %s28, 7
      %p115 = por %p113, %p114
      %p117 = scmp.ne.s32.totalorder %s100, %s116
      %p118 = scmp.eq.s32.totalorder %s28, 0
      %p119 = por %p117, %p118
      %s120 = ssub.s32 %s30, %s37
      %p121 = scmp.eq.s32.totalorder %s120, 0
      %s123 = sadd.s32 %s122, 1
      %s124 = scalar_select %p121, %s122, %s123
      %p127 = pneg %p121
      %p128 = scmp.eq.s32.totalorder %s22, 7
      %p129 = por %p127, %p128
      %p130 = scmp.ne.s32.totalorder %s122, %s125
      %p131 = scmp.eq.s32.totalorder %s22, 0
      %p132 = por %p130, %p131
      %p133 = scmp.ne.s32.totalorder %s122, %s125
      %p134 = scmp.eq.s32.totalorder %s27, 7
      %p135 = por %p133, %p134
      %p136 = scmp.ne.s32.totalorder %s125, %s126
      %p137 = scmp.eq.s32.totalorder %s27, 0
      %p138 = por %p136, %p137
      %p139 = scmp.ne.s32.totalorder %s125, %s126
      %p140 = scmp.eq.s32.totalorder %s28, 7
      %p141 = por %p139, %p140
      %p143 = scmp.ne.s32.totalorder %s126, %s142
      %p144 = scmp.eq.s32.totalorder %s28, 0
      %p145 = por %p143, %p144
      %s146 = ssub.s32 %s30, %s37
      %p147 = scmp.eq.s32.totalorder %s146, 0
      %s149 = sadd.s32 %s148, 1
      %s150 = scalar_select %p147, %s148, %s149
      %p153 = pneg %p147
      %p154 = scmp.eq.s32.totalorder %s22, 7
      %p155 = por %p153, %p154
      %p156 = scmp.ne.s32.totalorder %s148, %s151
      %p157 = scmp.eq.s32.totalorder %s22, 0
      %p158 = por %p156, %p157
      %p159 = scmp.ne.s32.totalorder %s148, %s151
      %p160 = scmp.eq.s32.totalorder %s27, 7
      %p161 = por %p159, %p160
      %p162 = scmp.ne.s32.totalorder %s151, %s152
      %p163 = scmp.eq.s32.totalorder %s27, 0
      %p164 = por %p162, %p163
      %p165 = scmp.ne.s32.totalorder %s151, %s152
      %p166 = scmp.eq.s32.totalorder %s28, 7
      %p167 = por %p165, %p166
      %p169 = scmp.ne.s32.totalorder %s152, %s168
      %p170 = scmp.eq.s32.totalorder %s28, 0
      %p171 = por %p169, %p170
      %s172 = ssub.s32 %s30, %s37
      %p173 = scmp.eq.s32.totalorder %s172, 0
      %s175 = sadd.s32 %s174, 1
      %s176 = scalar_select %p173, %s174, %s175
      %p179 = pneg %p173
      %p180 = scmp.eq.s32.totalorder %s22, 7
      %p181 = por %p179, %p180
      %p182 = scmp.ne.s32.totalorder %s174, %s177
      %p183 = scmp.eq.s32.totalorder %s22, 0
      %p184 = por %p182, %p183
      %p185 = scmp.ne.s32.totalorder %s174, %s177
      %p186 = scmp.eq.s32.totalorder %s27, 7
      %p187 = por %p185, %p186
      %p188 = scmp.ne.s32.totalorder %s177, %s178
      %p189 = scmp.eq.s32.totalorder %s27, 0
      %p190 = por %p188, %p189
      %p191 = scmp.ne.s32.totalorder %s177, %s178
      %p192 = scmp.eq.s32.totalorder %s28, 7
      %p193 = por %p191, %p192
      %p195 = scmp.ne.s32.totalorder %s178, %s194
      %p196 = scmp.eq.s32.totalorder %s28, 0
      %p197 = por %p195, %p196
      %s198 = ssub.s32 %s30, %s37
      %p199 = scmp.eq.s32.totalorder %s198, 0
      %s201 = sadd.s32 %s200, 1
      %s202 = scalar_select %p199, %s200, %s201
      %p205 = pneg %p199
      %p206 = scmp.eq.s32.totalorder %s22, 7
      %p207 = por %p205, %p206
      %p208 = scmp.ne.s32.totalorder %s200, %s203
      %p209 = scmp.eq.s32.totalorder %s22, 0
      %p210 = por %p208, %p209
      %p211 = scmp.ne.s32.totalorder %s200, %s203
      %p212 = scmp.eq.s32.totalorder %s27, 7
      %p213 = por %p211, %p212
      %p214 = scmp.ne.s32.totalorder %s203, %s204
      %p215 = scmp.eq.s32.totalorder %s27, 0
      %p216 = por %p214, %p215
      %p217 = scmp.ne.s32.totalorder %s203, %s204
      %p218 = scmp.eq.s32.totalorder %s28, 7
      %p219 = por %p217, %p218
      %p221 = scmp.ne.s32.totalorder %s204, %s220
      %p222 = scmp.eq.s32.totalorder %s28, 0
      %p223 = por %p221, %p222
      %s224 = ssub.s32 %s30, %s37
      %p225 = scmp.eq.s32.totalorder %s224, 0
      %s227 = sadd.s32 %s226, 1
      %s228 = scalar_select %p225, %s226, %s227
      %p231 = pneg %p225
      %p232 = scmp.eq.s32.totalorder %s22, 7
      %p233 = por %p231, %p232
      %p234 = scmp.ne.s32.totalorder %s226, %s229
      %p235 = scmp.eq.s32.totalorder %s22, 0
      %p236 = por %p234, %p235
      %p237 = scmp.ne.s32.totalorder %s226, %s229
      %p238 = scmp.eq.s32.totalorder %s27, 7
      %p239 = por %p237, %p238
      %p240 = scmp.ne.s32.totalorder %s229, %s230
      %p241 = scmp.eq.s32.totalorder %s27, 0
      %p242 = por %p240, %p241
      %p243 = scmp.ne.s32.totalorder %s229, %s230
      %p244 = scmp.eq.s32.totalorder %s28, 7
      %p245 = por %p243, %p244
      %p247 = scmp.ne.s32.totalorder %s230, %s246
      %p248 = scmp.eq.s32.totalorder %s28, 0
      %p249 = por %p247, %p248
      %s250 = ssub.s32 %s30, %s37
      %p251 = scmp.eq.s32.totalorder %s250, 0
      %s253 = sadd.s32 %s252, 1
      %s254 = scalar_select %p251, %s252, %s253
      %p257 = pneg %p251
      %p258 = scmp.eq.s32.totalorder %s22, 7
      %p259 = por %p257, %p258
      %p260 = scmp.ne.s32.totalorder %s252, %s255
      %p261 = scmp.eq.s32.totalorder %s22, 0
      %p262 = por %p260, %p261
      %p263 = scmp.ne.s32.totalorder %s252, %s255
      %p264 = scmp.eq.s32.totalorder %s27, 7
      %p265 = por %p263, %p264
      %p266 = scmp.ne.s32.totalorder %s255, %s256
      %p267 = scmp.eq.s32.totalorder %s27, 0
      %p268 = por %p266, %p267
      %p269 = scmp.ne.s32.totalorder %s255, %s256
      %p270 = scmp.eq.s32.totalorder %s28, 7
      %p271 = por %p269, %p270
      %p273 = scmp.ne.s32.totalorder %s256, %s272
      %p274 = scmp.eq.s32.totalorder %s28, 0
      %p275 = por %p273, %p274
      %s276 = ssub.s32 %s30, %s37
      %p277 = scmp.eq.s32.totalorder %s276, 0
      %s279 = sadd.s32 %s278, 1
      %s280 = scalar_select %p277, %s278, %s279
      %p283 = pneg %p277
      %p284 = scmp.eq.s32.totalorder %s22, 7
      %p285 = por %p283, %p284
      %p286 = scmp.ne.s32.totalorder %s278, %s281
      %p287 = scmp.eq.s32.totalorder %s22, 0
      %p288 = por %p286, %p287
      %p289 = scmp.ne.s32.totalorder %s278, %s281
      %p290 = scmp.eq.s32.totalorder %s27, 7
      %p291 = por %p289, %p290
      %p292 = scmp.ne.s32.totalorder %s281, %s282
      %p293 = scmp.eq.s32.totalorder %s27, 0
      %p294 = por %p292, %p293
      %p295 = scmp.ne.s32.totalorder %s281, %s282
      %p296 = scmp.eq.s32.totalorder %s28, 7
      %p297 = por %p295, %p296
      %p299 = scmp.ne.s32.totalorder %s282, %s298
      %p300 = scmp.eq.s32.totalorder %s28, 0
      %p301 = por %p299, %p300
      %s302 = ssub.s32 %s30, %s37
      %p303 = scmp.eq.s32.totalorder %s302, 0
      %s305 = sadd.s32 %s304, 1
      %s306 = scalar_select %p303, %s304, %s305
      %p309 = pneg %p303
      %p310 = scmp.eq.s32.totalorder %s22, 7
      %p311 = por %p309, %p310
      %p312 = scmp.ne.s32.totalorder %s304, %s307
      %p313 = scmp.eq.s32.totalorder %s22, 0
      %p314 = por %p312, %p313
      %p315 = scmp.ne.s32.totalorder %s304, %s307
      %p316 = scmp.eq.s32.totalorder %s27, 7
      %p317 = por %p315, %p316
      %p318 = scmp.ne.s32.totalorder %s307, %s308
      %p319 = scmp.eq.s32.totalorder %s27, 0
      %p320 = por %p318, %p319
      %p321 = scmp.ne.s32.totalorder %s307, %s308
      %p322 = scmp.eq.s32.totalorder %s28, 7
      %p323 = por %p321, %p322
      %p325 = scmp.ne.s32.totalorder %s308, %s324
      %p326 = scmp.eq.s32.totalorder %s28, 0
      %p327 = por %p325, %p326
      %s328 = ssub.s32 %s30, %s37
      %p329 = scmp.eq.s32.totalorder %s328, 0
      %s331 = sadd.s32 %s330, 1
      %s332 = scalar_select %p329, %s330, %s331
      %p335 = pneg %p329
      %p336 = scmp.eq.s32.totalorder %s22, 7
      %p337 = por %p335, %p336
      %p338 = scmp.ne.s32.totalorder %s330, %s333
      %p339 = scmp.eq.s32.totalorder %s22, 0
      %p340 = por %p338, %p339
      %p341 = scmp.ne.s32.totalorder %s330, %s333
      %p342 = scmp.eq.s32.totalorder %s27, 7
      %p343 = por %p341, %p342
      %p344 = scmp.ne.s32.totalorder %s333, %s334
      %p345 = scmp.eq.s32.totalorder %s27, 0
      %p346 = por %p344, %p345
      %p347 = scmp.ne.s32.totalorder %s333, %s334
      %p348 = scmp.eq.s32.totalorder %s28, 7
      %p349 = por %p347, %p348
      %p351 = scmp.ne.s32.totalorder %s334, %s350
      %p352 = scmp.eq.s32.totalorder %s28, 0
      %p353 = por %p351, %p352
      %s354 = ssub.s32 %s30, %s37
      %p355 = scmp.eq.s32.totalorder %s354, 0
      %s357 = sadd.s32 %s356, 1
      %s358 = scalar_select %p355, %s356, %s357
      %p361 = pneg %p355
      %p362 = scmp.eq.s32.totalorder %s22, 7
      %p363 = por %p361, %p362
      %p364 = scmp.ne.s32.totalorder %s356, %s359
      %p365 = scmp.eq.s32.totalorder %s22, 0
      %p366 = por %p364, %p365
      %p367 = scmp.ne.s32.totalorder %s356, %s359
      %p368 = scmp.eq.s32.totalorder %s27, 7
      %p369 = por %p367, %p368
      %p370 = scmp.ne.s32.totalorder %s359, %s360
      %p371 = scmp.eq.s32.totalorder %s27, 0
      %p372 = por %p370, %p371
      %p373 = scmp.ne.s32.totalorder %s359, %s360
      %p374 = scmp.eq.s32.totalorder %s28, 7
      %p375 = por %p373, %p374
      %p377 = scmp.ne.s32.totalorder %s360, %s376
      %p378 = scmp.eq.s32.totalorder %s28, 0
      %p379 = por %p377, %p378
      %s380 = ssub.s32 %s29, %s41
      %p381 = scmp.eq.s32.totalorder %s380, 0
      %s383 = sadd.s32 %s382, 1
      %s384 = scalar_select %p381, %s382, %s383
      %p387 = pneg %p381
      %p388 = scmp.eq.s32.totalorder %s22, 7
      %p389 = por %p387, %p388
      %p390 = scmp.ne.s32.totalorder %s382, %s385
      %p391 = scmp.eq.s32.totalorder %s22, 0
      %p392 = por %p390, %p391
      %p393 = scmp.ne.s32.totalorder %s382, %s385
      %p394 = scmp.eq.s32.totalorder %s27, 7
      %p395 = por %p393, %p394
      %p396 = scmp.ne.s32.totalorder %s385, %s386
      %p397 = scmp.eq.s32.totalorder %s27, 0
      %p398 = por %p396, %p397
      %p399 = scmp.ne.s32.totalorder %s385, %s386
      %p400 = scmp.eq.s32.totalorder %s28, 7
      %p401 = por %p399, %p400
      %p403 = scmp.ne.s32.totalorder %s386, %s402
      %p404 = scmp.eq.s32.totalorder %s28, 0
      %p405 = por %p403, %p404
      %p406 = scmp.le.s32.totalorder 1, %s22
      %p407 = scmp.lt.s32.totalorder %s22, 9
      %p408 = pnand %p406, %p407
      %p409 = pneg %p408
      // Predicated region
      $region9: #{tpu_custom_call.1} parent=5 // pred_check
        _
      $region10: #{tpu_custom_call.1} parent=5 // pred_check_branch
        %411 = sbr.rel (%p408) target = $region12
      $region11: #{tpu_custom_call.1} parent=5 // pred_region
        %s412 = ssub.s32 %s22, 1
      $region12: #{tpu_custom_call.1} parent=5 // pred_fallthru
        _
      %p413 = scmp.lt.s32.totalorder %s22, 8
      // Predicated region
      $region13: #{tpu_custom_call.1} parent=5 // pred_check
        %p414 = pneg %p413
      $region14: #{tpu_custom_call.1} parent=5 // pred_check_branch
        %416 = sbr.rel (%p414) target = $region16
      $region15: #{tpu_custom_call.1} parent=5 // pred_region
        // Predicated region
        $region17: #{tpu_custom_call.1} parent=15 // pred_check
          %p417 = pneg %p54
        $region18: #{tpu_custom_call.1} parent=15 // pred_check_branch
          %419 = sbr.rel (%p417) target = $region20
        $region19: #{tpu_custom_call.1} parent=15 // pred_region
          %p420 = scmp.lt.s32.totalorder %s29, 1
          %s421 = scalar_select %p420, %s29, 1
          %s422 = smul.addr %s421, 2
          %s423 = smul.addr %s422, 8
          %s424 = scalar_lea.vmem %s0, %s423
        $region20: #{tpu_custom_call.1} parent=15 // pred_fallthru
          _
        // Predicated region
        $region21: #{tpu_custom_call.1} parent=15 // pred_check
          %p425 = pneg %p80
        $region22: #{tpu_custom_call.1} parent=15 // pred_check_branch
          %427 = sbr.rel (%p425) target = $region24
        $region23: #{tpu_custom_call.1} parent=15 // pred_region
          %p428 = scmp.lt.s32.totalorder %s30, 3
          %s429 = scalar_select %p428, %s30, 3
          %s430 = smul.addr %s429, 16
          %s431 = smul.addr %s430, 4
          %s432 = scalar_lea.vmem %s1, %s431
        $region24: #{tpu_custom_call.1} parent=15 // pred_fallthru
          _
        // Predicated region
        $region25: #{tpu_custom_call.1} parent=15 // pred_check
          %p433 = pneg %p106
        $region26: #{tpu_custom_call.1} parent=15 // pred_check_branch
          %435 = sbr.rel (%p433) target = $region28
        $region27: #{tpu_custom_call.1} parent=15 // pred_region
          %p436 = scmp.lt.s32.totalorder %s30, 3
          %s437 = scalar_select %p436, %s30, 3
          %s438 = smul.addr %s437, 2
          %s439 = scalar_lea.vmem %s2, %s438
        $region28: #{tpu_custom_call.1} parent=15 // pred_fallthru
          _
        // Predicated region
        $region29: #{tpu_custom_call.1} parent=15 // pred_check
          %p440 = pneg %p132
        $region30: #{tpu_custom_call.1} parent=15 // pred_check_branch
          %442 = sbr.rel (%p440) target = $region32
        $region31: #{tpu_custom_call.1} parent=15 // pred_region
          %p443 = scmp.lt.s32.totalorder %s30, 3
          %s444 = scalar_select %p443, %s30, 3
          %s445 = smul.addr %s444, 8
          %s446 = smul.addr %s445, 4
          %s447 = scalar_lea.vmem %s3, %s446
        $region32: #{tpu_custom_call.1} parent=15 // pred_fallthru
          _
        // Predicated region
        $region33: #{tpu_custom_call.1} parent=15 // pred_check
          %p448 = pneg %p158
        $region34: #{tpu_custom_call.1} parent=15 // pred_check_branch
          %450 = sbr.rel (%p448) target = $region36
        $region35: #{tpu_custom_call.1} parent=15 // pred_region
          %p451 = scmp.lt.s32.totalorder %s30, 3
          %s452 = scalar_select %p451, %s30, 3
          %s453 = scalar_lea.vmem %s4, %s452
        $region36: #{tpu_custom_call.1} parent=15 // pred_fallthru
          _
        // Predicated region
        $region37: #{tpu_custom_call.1} parent=15 // pred_check
          %p454 = pneg %p184
        $region38: #{tpu_custom_call.1} parent=15 // pred_check_branch
          %456 = sbr.rel (%p454) target = $region40
        $region39: #{tpu_custom_call.1} parent=15 // pred_region
          %p457 = scmp.lt.s32.totalorder %s30, 3
          %s458 = scalar_select %p457, %s30, 3
          %s459 = scalar_lea.vmem %s5, %s458
        $region40: #{tpu_custom_call.1} parent=15 // pred_fallthru
          _
        // Predicated region
        $region41: #{tpu_custom_call.1} parent=15 // pred_check
          %p460 = pneg %p210
        $region42: #{tpu_custom_call.1} parent=15 // pred_check_branch
          %462 = sbr.rel (%p460) target = $region44
        $region43: #{tpu_custom_call.1} parent=15 // pred_region
          %p463 = scmp.lt.s32.totalorder %s30, 3
          %s464 = scalar_select %p463, %s30, 3
          %s465 = scalar_lea.vmem %s6, %s464
        $region44: #{tpu_custom_call.1} parent=15 // pred_fallthru
          _
        // Predicated region
        $region45: #{tpu_custom_call.1} parent=15 // pred_check
          %p466 = pneg %p236
        $region46: #{tpu_custom_call.1} parent=15 // pred_check_branch
          %468 = sbr.rel (%p466) target = $region48
        $region47: #{tpu_custom_call.1} parent=15 // pred_region
          %p469 = scmp.lt.s32.totalorder %s30, 3
          %s470 = scalar_select %p469, %s30, 3
          %s471 = smul.addr %s470, 128
          %s472 = smul.addr %s471, 4
          %s473 = scalar_lea.vmem %s7, %s472
        $region48: #{tpu_custom_call.1} parent=15 // pred_fallthru
          _
        // Predicated region
        $region49: #{tpu_custom_call.1} parent=15 // pred_check
          %p474 = pneg %p262
        $region50: #{tpu_custom_call.1} parent=15 // pred_check_branch
          %476 = sbr.rel (%p474) target = $region52
        $region51: #{tpu_custom_call.1} parent=15 // pred_region
          %p477 = scmp.lt.s32.totalorder %s30, 3
          %s478 = scalar_select %p477, %s30, 3
          %s479 = smul.addr %s478, 16
          %s480 = scalar_lea.vmem %s8, %s479
        $region52: #{tpu_custom_call.1} parent=15 // pred_fallthru
          _
        // Predicated region
        $region53: #{tpu_custom_call.1} parent=15 // pred_check
          %p481 = pneg %p288
        $region54: #{tpu_custom_call.1} parent=15 // pred_check_branch
          %483 = sbr.rel (%p481) target = $region56
        $region55: #{tpu_custom_call.1} parent=15 // pred_region
          %p484 = scmp.lt.s32.totalorder %s30, 3
          %s485 = scalar_select %p484, %s30, 3
          %s486 = smul.addr %s485, 256
          %s487 = smul.addr %s486, 4
          %s488 = scalar_lea.vmem %s9, %s487
        $region56: #{tpu_custom_call.1} parent=15 // pred_fallthru
          _
        // Predicated region
        $region57: #{tpu_custom_call.1} parent=15 // pred_check
          %p489 = pneg %p314
        $region58: #{tpu_custom_call.1} parent=15 // pred_check_branch
          %491 = sbr.rel (%p489) target = $region60
        $region59: #{tpu_custom_call.1} parent=15 // pred_region
          %p492 = scmp.lt.s32.totalorder %s30, 3
          %s493 = scalar_select %p492, %s30, 3
          %s494 = scalar_lea.vmem %s10, %s493
        $region60: #{tpu_custom_call.1} parent=15 // pred_fallthru
          _
        // Predicated region
        $region61: #{tpu_custom_call.1} parent=15 // pred_check
          %p495 = pneg %p340
        $region62: #{tpu_custom_call.1} parent=15 // pred_check_branch
          %497 = sbr.rel (%p495) target = $region64
        $region63: #{tpu_custom_call.1} parent=15 // pred_region
          %p498 = scmp.lt.s32.totalorder %s30, 3
          %s499 = scalar_select %p498, %s30, 3
          %s500 = scalar_lea.vmem %s11, %s499
        $region64: #{tpu_custom_call.1} parent=15 // pred_fallthru
          _
        // Predicated region
        $region65: #{tpu_custom_call.1} parent=15 // pred_check
          %p501 = pneg %p366
        $region66: #{tpu_custom_call.1} parent=15 // pred_check_branch
          %503 = sbr.rel (%p501) target = $region68
        $region67: #{tpu_custom_call.1} parent=15 // pred_region
          %p504 = scmp.lt.s32.totalorder %s30, 3
          %s505 = scalar_select %p504, %s30, 3
          %s506 = scalar_lea.vmem %s12, %s505
        $region68: #{tpu_custom_call.1} parent=15 // pred_fallthru
          _
      $region16: #{tpu_custom_call.1} parent=5 // pred_fallthru
        _
      %p507 = scmp.le.s32.totalorder 1, %s22
      %p508 = scmp.lt.s32.totalorder %s22, 9
      %p509 = pnand %p507, %p508
      %p510 = pneg %p509
      // Predicated region
      $region69: #{tpu_custom_call.1} parent=5 // pred_check
        _
      $region70: #{tpu_custom_call.1} parent=5 // pred_check_branch
        %512 = sbr.rel (%p509) target = $region72
      $region71: #{tpu_custom_call.1} parent=5 // pred_region
        %s513 = ssub.s32 %s22, 1
        %p514 = scmp.lt.s32.totalorder %s31, 1
        %s515 = scalar_select %p514, %s31, 1
        %s516 = smul.addr %s515, 2
        %s517 = smul.addr %s516, 8
        %s518 = scalar_lea.vmem %s0, %s517
        %p519 = pneg %p60
        %p520 = pneg %p57
        %p521 = scmp.lt.s32.totalorder %s32, 3
        %s522 = scalar_select %p521, %s32, 3
        %s523 = smul.addr %s522, 16
        %s524 = smul.addr %s523, 4
        %s525 = scalar_lea.vmem %s1, %s524
        %p526 = pneg %p86
        %p527 = pneg %p83
        %p528 = scmp.lt.s32.totalorder %s32, 3
        %s529 = scalar_select %p528, %s32, 3
        %s530 = smul.addr %s529, 2
        %s531 = scalar_lea.vmem %s2, %s530
        %p532 = pneg %p112
        %p533 = pneg %p109
        %p534 = scmp.lt.s32.totalorder %s32, 3
        %s535 = scalar_select %p534, %s32, 3
        %s536 = smul.addr %s535, 8
        %s537 = smul.addr %s536, 4
        %s538 = scalar_lea.vmem %s3, %s537
        %p539 = pneg %p138
        %p540 = pneg %p135
        %p541 = scmp.lt.s32.totalorder %s32, 3
        %s542 = scalar_select %p541, %s32, 3
        %s543 = scalar_lea.vmem %s4, %s542
        %p544 = pneg %p164
        %p545 = pneg %p161
        %p546 = scmp.lt.s32.totalorder %s32, 3
        %s547 = scalar_select %p546, %s32, 3
        %s548 = scalar_lea.vmem %s5, %s547
        %p549 = pneg %p190
        %p550 = pneg %p187
        %p551 = scmp.lt.s32.totalorder %s32, 3
        %s552 = scalar_select %p551, %s32, 3
        %s553 = scalar_lea.vmem %s6, %s552
        %p554 = pneg %p216
        %p555 = pneg %p213
        %p556 = scmp.lt.s32.totalorder %s32, 3
        %s557 = scalar_select %p556, %s32, 3
        %s558 = smul.addr %s557, 128
        %s559 = smul.addr %s558, 4
        %s560 = scalar_lea.vmem %s7, %s559
        %p561 = pneg %p242
        %p562 = pneg %p239
        %p563 = scmp.lt.s32.totalorder %s32, 3
        %s564 = scalar_select %p563, %s32, 3
        %s565 = smul.addr %s564, 16
        %s566 = scalar_lea.vmem %s8, %s565
        %p567 = pneg %p268
        %p568 = pneg %p265
        %p569 = scmp.lt.s32.totalorder %s32, 3
        %s570 = scalar_select %p569, %s32, 3
        %s571 = smul.addr %s570, 256
        %s572 = smul.addr %s571, 4
        %s573 = scalar_lea.vmem %s9, %s572
        %p574 = pneg %p294
        %p575 = pneg %p291
        %p576 = scmp.lt.s32.totalorder %s32, 3
        %s577 = scalar_select %p576, %s32, 3
        %s578 = scalar_lea.vmem %s10, %s577
        %p579 = pneg %p320
        %p580 = pneg %p317
        %p581 = scmp.lt.s32.totalorder %s32, 3
        %s582 = scalar_select %p581, %s32, 3
        %s583 = scalar_lea.vmem %s11, %s582
        %p584 = pneg %p346
        %p585 = pneg %p343
        %p586 = scmp.lt.s32.totalorder %s32, 3
        %s587 = scalar_select %p586, %s32, 3
        %s588 = scalar_lea.vmem %s12, %s587
        %p589 = pneg %p372
        %p590 = pneg %p369
        %p591 = pneg %p398
        %p592 = pneg %p395
        %s593 = sand.u32 %s385, 1
        %s594 = scalar_lea.sflag [#allocation4], %s593
        %s595 = sand.u32 %s385, 1
        %s596 = smul.addr %s595, 16
        %s597 = scalar_lea.vmem [#allocation3], %s596
        %p598 = scmp.lt.s32.totalorder %s31, 1
        %s599 = scalar_select %p598, %s31, 1
        %s600 = smul.addr %s599, 2
        %s601 = smul.addr %s600, 8
        %s602 = scalar_lea.vmem %s0, %s601
        %p603 = scmp.lt.s32.totalorder %s32, 3
        %s604 = scalar_select %p603, %s32, 3
        %s605 = smul.addr %s604, 16
        %s606 = smul.addr %s605, 4
        %s607 = scalar_lea.vmem %s1, %s606
        %p608 = scmp.lt.s32.totalorder %s32, 3
        %s609 = scalar_select %p608, %s32, 3
        %s610 = smul.addr %s609, 2
        %s611 = scalar_lea.vmem %s2, %s610
        %p612 = scmp.lt.s32.totalorder %s32, 3
        %s613 = scalar_select %p612, %s32, 3
        %s614 = smul.addr %s613, 8
        %s615 = smul.addr %s614, 4
        %s616 = scalar_lea.vmem %s3, %s615
        %p617 = scmp.lt.s32.totalorder %s32, 3
        %s618 = scalar_select %p617, %s32, 3
        %s619 = scalar_lea.vmem %s4, %s618
        %p620 = scmp.lt.s32.totalorder %s32, 3
        %s621 = scalar_select %p620, %s32, 3
        %s622 = scalar_lea.vmem %s5, %s621
        %p623 = scmp.lt.s32.totalorder %s32, 3
        %s624 = scalar_select %p623, %s32, 3
        %s625 = scalar_lea.vmem %s6, %s624
        %p626 = scmp.lt.s32.totalorder %s32, 3
        %s627 = scalar_select %p626, %s32, 3
        %s628 = smul.addr %s627, 128
        %s629 = smul.addr %s628, 4
        %s630 = scalar_lea.vmem %s7, %s629
        %p631 = scmp.lt.s32.totalorder %s32, 3
        %s632 = scalar_select %p631, %s32, 3
        %s633 = smul.addr %s632, 16
        %s634 = scalar_lea.vmem %s8, %s633
        %p635 = scmp.lt.s32.totalorder %s32, 3
        %s636 = scalar_select %p635, %s32, 3
        %s637 = smul.addr %s636, 256
        %s638 = smul.addr %s637, 4
        %s639 = scalar_lea.vmem %s9, %s638
        %p640 = scmp.lt.s32.totalorder %s32, 3
        %s641 = scalar_select %p640, %s32, 3
        %s642 = scalar_lea.vmem %s10, %s641
        %p643 = scmp.lt.s32.totalorder %s32, 3
        %s644 = scalar_select %p643, %s32, 3
        %s645 = scalar_lea.vmem %s11, %s644
        %p646 = scmp.lt.s32.totalorder %s32, 3
        %s647 = scalar_select %p646, %s32, 3
        %s648 = scalar_lea.vmem %s12, %s647
        %p650 = scmp.eq.s32.totalorder %s32, 0
        // Predicated region
        $region73: #{tpu_custom_call.1} parent=71 // pred_check
          %p651 = pneg %p650
        $region74: #{tpu_custom_call.1} parent=71 // pred_check_branch
          %653 = sbr.rel (%p651) target = $region76
        $region75: #{tpu_custom_call.1} parent=71 // pred_region
          %v654 = vld [vmem:[%s602] sm:$0xff]
          %v655 = vld [vmem:[%s602 + $0x8] sm:$0xff]
          %vm656 = vcmask 523264
          %657 = vst.msk [vmem:[#allocation2] sm:$0xff] %vm656, %v654
          %658 = vst.msk [vmem:[#allocation2 + $0x8] sm:$0xff] %vm656, %v655
        $region76: #{tpu_custom_call.1} parent=71 // pred_fallthru
          _
        %v659 = vld [vmem:[#allocation2] sm:$0xff]
        %v660 = vld [vmem:[#allocation2 + $0x8] sm:$0xff]
        %v661 = vpack.c.bf16 %v660, %v659
        %v662 = vld [vmem:[%s607] sm:$0xff]
        %v663 = vld [vmem:[%s607 + $0x8] sm:$0xff]
        %v664 = vld [vmem:[%s607 + $0x10] sm:$0xff]
        %v665 = vld [vmem:[%s607 + $0x18] sm:$0xff]
        %v666 = vld [vmem:[%s607 + $0x20] sm:$0xff]
        %v667 = vld [vmem:[%s607 + $0x28] sm:$0xff]
        %v668 = vld [vmem:[%s607 + $0x30] sm:$0xff]
        %v669 = vld [vmem:[%s607 + $0x38] sm:$0xff]
        %v670 = vld [vmem:[%s611] sm:$0x3]
        %v672 = vperm.slane %v670, 0
        %v673 = vperm.slane %v670, 1
        %v684 = vunpack.c.l.b16 %v662
        %v685 = vunpack.c.h.b16 %v662
        %v686 = vunpack.c.l.b16 %v663
        %v687 = vunpack.c.h.b16 %v663
        %v688 = vunpack.c.l.b16 %v664
        %v689 = vunpack.c.h.b16 %v664
        %v690 = vunpack.c.l.b16 %v665
        %v691 = vunpack.c.h.b16 %v665
        %v692 = vunpack.c.l.b16 %v666
        %v693 = vunpack.c.h.b16 %v666
        %v694 = vunpack.c.l.b16 %v667
        %v695 = vunpack.c.h.b16 %v667
        %v696 = vunpack.c.l.b16 %v668
        %v697 = vunpack.c.h.b16 %v668
        %v698 = vunpack.c.l.b16 %v669
        %v699 = vunpack.c.h.b16 %v669
        %v700 = vpack.c.b16 %v686, %v684
        %v701 = vpack.c.b16 %v687, %v685
        %v702 = vpack.c.b16 %v690, %v688
        %v703 = vpack.c.b16 %v691, %v689
        %v704 = vpack.c.b16 %v694, %v692
        %v705 = vpack.c.b16 %v695, %v693
        %v706 = vpack.c.b16 %v698, %v696
        %v707 = vpack.c.b16 %v699, %v697
        %vm716 = vcmask 523264
        %v718 = vsel %vm716, %v661, 0
        %720 = vmatpush.bf16.msra.mxu0 0
        %721 = vmatpush.bf16.msra.mxu0 0
        %722 = vmatpush.bf16.msra.mxu0 0
        %723 = vmatpush.bf16.msra.mxu0 0
        %724 = vmatpush.bf16.msra.mxu0 %v706
        %725 = vmatpush.bf16.msra.mxu0 %v704
        %726 = vmatpush.bf16.msra.mxu0 %v702
        %727 = vmatpush.bf16.msra.mxu0 %v700
        %728 = vmatmul.bf16.gmra.mxu0 %v718
        %v729 = vpop.f32.mrf.mxu0
        %v730 = vadd.f32 %v672, %v729
        %v731 = vpop.f32.mrf.mxu0
        %v732 = vadd.f32 %v672, %v731
        %733 = vdwg.mxu0
        %734 = vmatpush.bf16.msra.mxu0 0
        %735 = vmatpush.bf16.msra.mxu0 0
        %736 = vmatpush.bf16.msra.mxu0 0
        %737 = vmatpush.bf16.msra.mxu0 0
        %738 = vmatpush.bf16.msra.mxu0 %v707
        %739 = vmatpush.bf16.msra.mxu0 %v705
        %740 = vmatpush.bf16.msra.mxu0 %v703
        %741 = vmatpush.bf16.msra.mxu0 %v701
        %742 = vmatmul.bf16.gmra.mxu0 %v718
        %v743 = vpop.f32.mrf.mxu0
        %v744 = vadd.f32 %v673, %v743
        %v745 = vpop.f32.mrf.mxu0
        %v746 = vadd.f32 %v673, %v745
        %747 = vdwg.mxu0
        %748 = vxpose.xlu0.b32.start [1/16] %v730, 128
        %749 = vxpose.xlu0.b32.cont [2/16] %v732, 128
        %750 = vxpose.xlu0.b32.cont [3/16] 0.0, 128
        %751 = vxpose.xlu0.b32.cont [4/16] 0.0, 128
        %752 = vxpose.xlu0.b32.cont [5/16] 0.0, 128
        %753 = vxpose.xlu0.b32.cont [6/16] 0.0, 128
        %754 = vxpose.xlu0.b32.cont [7/16] 0.0, 128
        %755 = vxpose.xlu0.b32.cont [8/16] 0.0, 128
        %756 = vxpose.xlu0.b32.cont [9/16] 0.0, 128
        %757 = vxpose.xlu0.b32.cont [10/16] 0.0, 128
        %758 = vxpose.xlu0.b32.cont [11/16] 0.0, 128
        %759 = vxpose.xlu0.b32.cont [12/16] 0.0, 128
        %760 = vxpose.xlu0.b32.cont [13/16] 0.0, 128
        %761 = vxpose.xlu0.b32.cont [14/16] 0.0, 128
        %762 = vxpose.xlu0.b32.cont [15/16] 0.0, 128
        %763 = vxpose.xlu0.b32.end [16/16] 0.0, 128
        %v764 = vpop.trf.xlu0
        %v765 = vpop.trf.xlu0
        %v766 = vpop.trf.xlu0
        %v767 = vpop.trf.xlu0
        %v768 = vpop.trf.xlu0
        %v769 = vpop.trf.xlu0
        %v770 = vpop.trf.xlu0
        %v771 = vpop.trf.xlu0
        %v772 = vpop.trf.xlu0
        %v773 = vpop.trf.xlu0
        %v774 = vpop.trf.xlu0
        %v775 = vpop.trf.xlu0
        %v776 = vpop.trf.xlu0
        %v777 = vpop.trf.xlu0
        %v778 = vpop.trf.xlu0
        %v779 = vpop.trf.xlu0
        %780 = vxpose.xlu0.b32.start [1/16] %v744, 128
        %781 = vxpose.xlu0.b32.cont [2/16] %v746, 128
        %782 = vxpose.xlu0.b32.cont [3/16] 0.0, 128
        %783 = vxpose.xlu0.b32.cont [4/16] 0.0, 128
        %784 = vxpose.xlu0.b32.cont [5/16] 0.0, 128
        %785 = vxpose.xlu0.b32.cont [6/16] 0.0, 128
        %786 = vxpose.xlu0.b32.cont [7/16] 0.0, 128
        %787 = vxpose.xlu0.b32.cont [8/16] 0.0, 128
        %788 = vxpose.xlu0.b32.cont [9/16] 0.0, 128
        %789 = vxpose.xlu0.b32.cont [10/16] 0.0, 128
        %790 = vxpose.xlu0.b32.cont [11/16] 0.0, 128
        %791 = vxpose.xlu0.b32.cont [12/16] 0.0, 128
        %792 = vxpose.xlu0.b32.cont [13/16] 0.0, 128
        %793 = vxpose.xlu0.b32.cont [14/16] 0.0, 128
        %794 = vxpose.xlu0.b32.cont [15/16] 0.0, 128
        %795 = vxpose.xlu0.b32.end [16/16] 0.0, 128
        %v796 = vpop.trf.xlu0
        %v797 = vpop.trf.xlu0
        %v798 = vpop.trf.xlu0
        %v799 = vpop.trf.xlu0
        %v800 = vpop.trf.xlu0
        %v801 = vpop.trf.xlu0
        %v802 = vpop.trf.xlu0
        %v803 = vpop.trf.xlu0
        %v804 = vpop.trf.xlu0
        %v805 = vpop.trf.xlu0
        %v806 = vpop.trf.xlu0
        %v807 = vpop.trf.xlu0
        %v808 = vpop.trf.xlu0
        %v809 = vpop.trf.xlu0
        %v810 = vpop.trf.xlu0
        %v811 = vpop.trf.xlu0
        %812 = vxpose.xlu0.b32.start [1/16] %v764, 128
        %813 = vxpose.xlu0.b32.cont [2/16] %v765, 128
        %814 = vxpose.xlu0.b32.cont [3/16] 0.0, 128
        %815 = vxpose.xlu0.b32.cont [4/16] 0.0, 128
        %816 = vxpose.xlu0.b32.cont [5/16] 0.0, 128
        %817 = vxpose.xlu0.b32.cont [6/16] 0.0, 128
        %818 = vxpose.xlu0.b32.cont [7/16] 0.0, 128
        %819 = vxpose.xlu0.b32.cont [8/16] 0.0, 128
        %820 = vxpose.xlu0.b32.cont [9/16] 0.0, 128
        %821 = vxpose.xlu0.b32.cont [10/16] 0.0, 128
        %822 = vxpose.xlu0.b32.cont [11/16] 0.0, 128
        %823 = vxpose.xlu0.b32.cont [12/16] 0.0, 128
        %824 = vxpose.xlu0.b32.cont [13/16] 0.0, 128
        %825 = vxpose.xlu0.b32.cont [14/16] 0.0, 128
        %826 = vxpose.xlu0.b32.cont [15/16] 0.0, 128
        %827 = vxpose.xlu0.b32.end [16/16] 0.0, 128
        %v828 = vpop.trf.xlu0
        %v829 = vpop.trf.xlu0
        %v830 = vpop.trf.xlu0
        %v831 = vpop.trf.xlu0
        %v832 = vpop.trf.xlu0
        %v833 = vpop.trf.xlu0
        %v834 = vpop.trf.xlu0
        %v835 = vpop.trf.xlu0
        %v836 = vpop.trf.xlu0
        %v837 = vpop.trf.xlu0
        %v838 = vpop.trf.xlu0
        %v839 = vpop.trf.xlu0
        %v840 = vpop.trf.xlu0
        %v841 = vpop.trf.xlu0
        %v842 = vpop.trf.xlu0
        %v843 = vpop.trf.xlu0
        %844 = vxpose.xlu0.b32.start [1/16] %v766, 128
        %845 = vxpose.xlu0.b32.cont [2/16] %v767, 128
        %846 = vxpose.xlu0.b32.cont [3/16] 0.0, 128
        %847 = vxpose.xlu0.b32.cont [4/16] 0.0, 128
        %848 = vxpose.xlu0.b32.cont [5/16] 0.0, 128
        %849 = vxpose.xlu0.b32.cont [6/16] 0.0, 128
        %850 = vxpose.xlu0.b32.cont [7/16] 0.0, 128
        %851 = vxpose.xlu0.b32.cont [8/16] 0.0, 128
        %852 = vxpose.xlu0.b32.cont [9/16] 0.0, 128
        %853 = vxpose.xlu0.b32.cont [10/16] 0.0, 128
        %854 = vxpose.xlu0.b32.cont [11/16] 0.0, 128
        %855 = vxpose.xlu0.b32.cont [12/16] 0.0, 128
        %856 = vxpose.xlu0.b32.cont [13/16] 0.0, 128
        %857 = vxpose.xlu0.b32.cont [14/16] 0.0, 128
        %858 = vxpose.xlu0.b32.cont [15/16] 0.0, 128
        %859 = vxpose.xlu0.b32.end [16/16] 0.0, 128
        %v860 = vpop.trf.xlu0
        %v861 = vpop.trf.xlu0
        %v862 = vpop.trf.xlu0
        %v863 = vpop.trf.xlu0
        %v864 = vpop.trf.xlu0
        %v865 = vpop.trf.xlu0
        %v866 = vpop.trf.xlu0
        %v867 = vpop.trf.xlu0
        %v868 = vpop.trf.xlu0
        %v869 = vpop.trf.xlu0
        %v870 = vpop.trf.xlu0
        %v871 = vpop.trf.xlu0
        %v872 = vpop.trf.xlu0
        %v873 = vpop.trf.xlu0
        %v874 = vpop.trf.xlu0
        %v875 = vpop.trf.xlu0
        %876 = vxpose.xlu0.b32.start [1/16] %v768, 128
        %877 = vxpose.xlu0.b32.cont [2/16] %v769, 128
        %878 = vxpose.xlu0.b32.cont [3/16] 0.0, 128
        %879 = vxpose.xlu0.b32.cont [4/16] 0.0, 128
        %880 = vxpose.xlu0.b32.cont [5/16] 0.0, 128
        %881 = vxpose.xlu0.b32.cont [6/16] 0.0, 128
        %882 = vxpose.xlu0.b32.cont [7/16] 0.0, 128
        %883 = vxpose.xlu0.b32.cont [8/16] 0.0, 128
        %884 = vxpose.xlu0.b32.cont [9/16] 0.0, 128
        %885 = vxpose.xlu0.b32.cont [10/16] 0.0, 128
        %886 = vxpose.xlu0.b32.cont [11/16] 0.0, 128
        %887 = vxpose.xlu0.b32.cont [12/16] 0.0, 128
        %888 = vxpose.xlu0.b32.cont [13/16] 0.0, 128
        %889 = vxpose.xlu0.b32.cont [14/16] 0.0, 128
        %890 = vxpose.xlu0.b32.cont [15/16] 0.0, 128
        %891 = vxpose.xlu0.b32.end [16/16] 0.0, 128
        %v892 = vpop.trf.xlu0
        %v893 = vpop.trf.xlu0
        %v894 = vpop.trf.xlu0
        %v895 = vpop.trf.xlu0
        %v896 = vpop.trf.xlu0
        %v897 = vpop.trf.xlu0
        %v898 = vpop.trf.xlu0
        %v899 = vpop.trf.xlu0
        %v900 = vpop.trf.xlu0
        %v901 = vpop.trf.xlu0
        %v902 = vpop.trf.xlu0
        %v903 = vpop.trf.xlu0
        %v904 = vpop.trf.xlu0
        %v905 = vpop.trf.xlu0
        %v906 = vpop.trf.xlu0
        %v907 = vpop.trf.xlu0
        %908 = vxpose.xlu0.b32.start [1/16] %v770, 128
        %909 = vxpose.xlu0.b32.cont [2/16] %v771, 128
        %910 = vxpose.xlu0.b32.cont [3/16] 0.0, 128
        %911 = vxpose.xlu0.b32.cont [4/16] 0.0, 128
        %912 = vxpose.xlu0.b32.cont [5/16] 0.0, 128
        %913 = vxpose.xlu0.b32.cont [6/16] 0.0, 128
        %914 = vxpose.xlu0.b32.cont [7/16] 0.0, 128
        %915 = vxpose.xlu0.b32.cont [8/16] 0.0, 128
        %916 = vxpose.xlu0.b32.cont [9/16] 0.0, 128
        %917 = vxpose.xlu0.b32.cont [10/16] 0.0, 128
        %918 = vxpose.xlu0.b32.cont [11/16] 0.0, 128
        %919 = vxpose.xlu0.b32.cont [12/16] 0.0, 128
        %920 = vxpose.xlu0.b32.cont [13/16] 0.0, 128
        %921 = vxpose.xlu0.b32.cont [14/16] 0.0, 128
        %922 = vxpose.xlu0.b32.cont [15/16] 0.0, 128
        %923 = vxpose.xlu0.b32.end [16/16] 0.0, 128
        %v924 = vpop.trf.xlu0
        %v925 = vpop.trf.xlu0
        %v926 = vpop.trf.xlu0
        %v927 = vpop.trf.xlu0
        %v928 = vpop.trf.xlu0
        %v929 = vpop.trf.xlu0
        %v930 = vpop.trf.xlu0
        %v931 = vpop.trf.xlu0
        %v932 = vpop.trf.xlu0
        %v933 = vpop.trf.xlu0
        %v934 = vpop.trf.xlu0
        %v935 = vpop.trf.xlu0
        %v936 = vpop.trf.xlu0
        %v937 = vpop.trf.xlu0
        %v938 = vpop.trf.xlu0
        %v939 = vpop.trf.xlu0
        %v940 = vpack.c.bf16 %v828, %v828
        %v941 = vpack.c.bf16 %v829, %v829
        %v942 = vpack.c.bf16 %v860, %v860
        %v943 = vpack.c.bf16 %v861, %v861
        %v944 = vpack.c.bf16 %v892, %v892
        %v945 = vpack.c.bf16 %v893, %v893
        %v946 = vpack.c.bf16 %v924, %v924
        %v947 = vpack.c.bf16 %v925, %v925
        %948 = vxpose.xlu0.b32.start [1/16] %v772, 128
        %949 = vxpose.xlu0.b32.cont [2/16] %v773, 128
        %950 = vxpose.xlu0.b32.cont [3/16] 0.0, 128
        %951 = vxpose.xlu0.b32.cont [4/16] 0.0, 128
        %952 = vxpose.xlu0.b32.cont [5/16] 0.0, 128
        %953 = vxpose.xlu0.b32.cont [6/16] 0.0, 128
        %954 = vxpose.xlu0.b32.cont [7/16] 0.0, 128
        %955 = vxpose.xlu0.b32.cont [8/16] 0.0, 128
        %956 = vxpose.xlu0.b32.cont [9/16] 0.0, 128
        %957 = vxpose.xlu0.b32.cont [10/16] 0.0, 128
        %958 = vxpose.xlu0.b32.cont [11/16] 0.0, 128
        %959 = vxpose.xlu0.b32.cont [12/16] 0.0, 128
        %960 = vxpose.xlu0.b32.cont [13/16] 0.0, 128
        %961 = vxpose.xlu0.b32.cont [14/16] 0.0, 128
        %962 = vxpose.xlu0.b32.cont [15/16] 0.0, 128
        %963 = vxpose.xlu0.b32.end [16/16] 0.0, 128
        %v964 = vpop.trf.xlu0
        %v965 = vpop.trf.xlu0
        %v966 = vpop.trf.xlu0
        %v967 = vpop.trf.xlu0
        %v968 = vpop.trf.xlu0
        %v969 = vpop.trf.xlu0
        %v970 = vpop.trf.xlu0
        %v971 = vpop.trf.xlu0
        %v972 = vpop.trf.xlu0
        %v973 = vpop.trf.xlu0
        %v974 = vpop.trf.xlu0
        %v975 = vpop.trf.xlu0
        %v976 = vpop.trf.xlu0
        %v977 = vpop.trf.xlu0
        %v978 = vpop.trf.xlu0
        %v979 = vpop.trf.xlu0
        %980 = vxpose.xlu0.b32.start [1/16] %v774, 128
        %981 = vxpose.xlu0.b32.cont [2/16] %v775, 128
        %982 = vxpose.xlu0.b32.cont [3/16] 0.0, 128
        %983 = vxpose.xlu0.b32.cont [4/16] 0.0, 128
        %984 = vxpose.xlu0.b32.cont [5/16] 0.0, 128
        %985 = vxpose.xlu0.b32.cont [6/16] 0.0, 128
        %986 = vxpose.xlu0.b32.cont [7/16] 0.0, 128
        %987 = vxpose.xlu0.b32.cont [8/16] 0.0, 128
        %988 = vxpose.xlu0.b32.cont [9/16] 0.0, 128
        %989 = vxpose.xlu0.b32.cont [10/16] 0.0, 128
        %990 = vxpose.xlu0.b32.cont [11/16] 0.0, 128
        %991 = vxpose.xlu0.b32.cont [12/16] 0.0, 128
        %992 = vxpose.xlu0.b32.cont [13/16] 0.0, 128
        %993 = vxpose.xlu0.b32.cont [14/16] 0.0, 128
        %994 = vxpose.xlu0.b32.cont [15/16] 0.0, 128
        %995 = vxpose.xlu0.b32.end [16/16] 0.0, 128
        %v996 = vpop.trf.xlu0
        %v997 = vpop.trf.xlu0
        %v998 = vpop.trf.xlu0
        %v999 = vpop.trf.xlu0
        %v1000 = vpop.trf.xlu0
        %v1001 = vpop.trf.xlu0
        %v1002 = vpop.trf.xlu0
        %v1003 = vpop.trf.xlu0
        %v1004 = vpop.trf.xlu0
        %v1005 = vpop.trf.xlu0
        %v1006 = vpop.trf.xlu0
        %v1007 = vpop.trf.xlu0
        %v1008 = vpop.trf.xlu0
        %v1009 = vpop.trf.xlu0
        %v1010 = vpop.trf.xlu0
        %v1011 = vpop.trf.xlu0
        %1012 = vxpose.xlu0.b32.start [1/16] %v776, 128
        %1013 = vxpose.xlu0.b32.cont [2/16] %v777, 128
        %1014 = vxpose.xlu0.b32.cont [3/16] 0.0, 128
        %1015 = vxpose.xlu0.b32.cont [4/16] 0.0, 128
        %1016 = vxpose.xlu0.b32.cont [5/16] 0.0, 128
        %1017 = vxpose.xlu0.b32.cont [6/16] 0.0, 128
        %1018 = vxpose.xlu0.b32.cont [7/16] 0.0, 128
        %1019 = vxpose.xlu0.b32.cont [8/16] 0.0, 128
        %1020 = vxpose.xlu0.b32.cont [9/16] 0.0, 128
        %1021 = vxpose.xlu0.b32.cont [10/16] 0.0, 128
        %1022 = vxpose.xlu0.b32.cont [11/16] 0.0, 128
        %1023 = vxpose.xlu0.b32.cont [12/16] 0.0, 128
        %1024 = vxpose.xlu0.b32.cont [13/16] 0.0, 128
        %1025 = vxpose.xlu0.b32.cont [14/16] 0.0, 128
        %1026 = vxpose.xlu0.b32.cont [15/16] 0.0, 128
        %1027 = vxpose.xlu0.b32.end [16/16] 0.0, 128
        %v1028 = vpop.trf.xlu0
        %v1029 = vpop.trf.xlu0
        %v1030 = vpop.trf.xlu0
        %v1031 = vpop.trf.xlu0
        %v1032 = vpop.trf.xlu0
        %v1033 = vpop.trf.xlu0
        %v1034 = vpop.trf.xlu0
        %v1035 = vpop.trf.xlu0
        %v1036 = vpop.trf.xlu0
        %v1037 = vpop.trf.xlu0
        %v1038 = vpop.trf.xlu0
        %v1039 = vpop.trf.xlu0
        %v1040 = vpop.trf.xlu0
        %v1041 = vpop.trf.xlu0
        %v1042 = vpop.trf.xlu0
        %v1043 = vpop.trf.xlu0
        %1044 = vxpose.xlu0.b32.start [1/16] %v778, 128
        %1045 = vxpose.xlu0.b32.cont [2/16] %v779, 128
        %1046 = vxpose.xlu0.b32.cont [3/16] 0.0, 128
        %1047 = vxpose.xlu0.b32.cont [4/16] 0.0, 128
        %1048 = vxpose.xlu0.b32.cont [5/16] 0.0, 128
        %1049 = vxpose.xlu0.b32.cont [6/16] 0.0, 128
        %1050 = vxpose.xlu0.b32.cont [7/16] 0.0, 128
        %1051 = vxpose.xlu0.b32.cont [8/16] 0.0, 128
        %1052 = vxpose.xlu0.b32.cont [9/16] 0.0, 128
        %1053 = vxpose.xlu0.b32.cont [10/16] 0.0, 128
        %1054 = vxpose.xlu0.b32.cont [11/16] 0.0, 128
        %1055 = vxpose.xlu0.b32.cont [12/16] 0.0, 128
        %1056 = vxpose.xlu0.b32.cont [13/16] 0.0, 128
        %1057 = vxpose.xlu0.b32.cont [14/16] 0.0, 128
        %1058 = vxpose.xlu0.b32.cont [15/16] 0.0, 128
        %1059 = vxpose.xlu0.b32.end [16/16] 0.0, 128
        %v1060 = vpop.trf.xlu0
        %v1061 = vpop.trf.xlu0
        %v1062 = vpop.trf.xlu0
        %v1063 = vpop.trf.xlu0
        %v1064 = vpop.trf.xlu0
        %v1065 = vpop.trf.xlu0
        %v1066 = vpop.trf.xlu0
        %v1067 = vpop.trf.xlu0
        %v1068 = vpop.trf.xlu0
        %v1069 = vpop.trf.xlu0
        %v1070 = vpop.trf.xlu0
        %v1071 = vpop.trf.xlu0
        %v1072 = vpop.trf.xlu0
        %v1073 = vpop.trf.xlu0
        %v1074 = vpop.trf.xlu0
        %v1075 = vpop.trf.xlu0
        %v1076 = vpack.c.bf16 %v964, %v964
        %v1077 = vpack.c.bf16 %v965, %v965
        %v1078 = vpack.c.bf16 %v996, %v996
        %v1079 = vpack.c.bf16 %v997, %v997
        %v1080 = vpack.c.bf16 %v1028, %v1028
        %v1081 = vpack.c.bf16 %v1029, %v1029
        %v1082 = vpack.c.bf16 %v1060, %v1060
        %v1083 = vpack.c.bf16 %v1061, %v1061
        %1084 = vxpose.xlu0.b32.start [1/16] %v796, 128
        %1085 = vxpose.xlu0.b32.cont [2/16] %v797, 128
        %1086 = vxpose.xlu0.b32.cont [3/16] 0.0, 128
        %1087 = vxpose.xlu0.b32.cont [4/16] 0.0, 128
        %1088 = vxpose.xlu0.b32.cont [5/16] 0.0, 128
        %1089 = vxpose.xlu0.b32.cont [6/16] 0.0, 128
        %1090 = vxpose.xlu0.b32.cont [7/16] 0.0, 128
        %1091 = vxpose.xlu0.b32.cont [8/16] 0.0, 128
        %1092 = vxpose.xlu0.b32.cont [9/16] 0.0, 128
        %1093 = vxpose.xlu0.b32.cont [10/16] 0.0, 128
        %1094 = vxpose.xlu0.b32.cont [11/16] 0.0, 128
        %1095 = vxpose.xlu0.b32.cont [12/16] 0.0, 128
        %1096 = vxpose.xlu0.b32.cont [13/16] 0.0, 128
        %1097 = vxpose.xlu0.b32.cont [14/16] 0.0, 128
        %1098 = vxpose.xlu0.b32.cont [15/16] 0.0, 128
        %1099 = vxpose.xlu0.b32.end [16/16] 0.0, 128
        %v1100 = vpop.trf.xlu0
        %v1101 = vpop.trf.xlu0
        %v1102 = vpop.trf.xlu0
        %v1103 = vpop.trf.xlu0
        %v1104 = vpop.trf.xlu0
        %v1105 = vpop.trf.xlu0
        %v1106 = vpop.trf.xlu0
        %v1107 = vpop.trf.xlu0
        %v1108 = vpop.trf.xlu0
        %v1109 = vpop.trf.xlu0
        %v1110 = vpop.trf.xlu0
        %v1111 = vpop.trf.xlu0
        %v1112 = vpop.trf.xlu0
        %v1113 = vpop.trf.xlu0
        %v1114 = vpop.trf.xlu0
        %v1115 = vpop.trf.xlu0
        %1116 = vxpose.xlu0.b32.start [1/16] %v798, 128
        %1117 = vxpose.xlu0.b32.cont [2/16] %v799, 128
        %1118 = vxpose.xlu0.b32.cont [3/16] 0.0, 128
        %1119 = vxpose.xlu0.b32.cont [4/16] 0.0, 128
        %1120 = vxpose.xlu0.b32.cont [5/16] 0.0, 128
        %1121 = vxpose.xlu0.b32.cont [6/16] 0.0, 128
        %1122 = vxpose.xlu0.b32.cont [7/16] 0.0, 128
        %1123 = vxpose.xlu0.b32.cont [8/16] 0.0, 128
        %1124 = vxpose.xlu0.b32.cont [9/16] 0.0, 128
        %1125 = vxpose.xlu0.b32.cont [10/16] 0.0, 128
        %1126 = vxpose.xlu0.b32.cont [11/16] 0.0, 128
        %1127 = vxpose.xlu0.b32.cont [12/16] 0.0, 128
        %1128 = vxpose.xlu0.b32.cont [13/16] 0.0, 128
        %1129 = vxpose.xlu0.b32.cont [14/16] 0.0, 128
        %1130 = vxpose.xlu0.b32.cont [15/16] 0.0, 128
        %1131 = vxpose.xlu0.b32.end [16/16] 0.0, 128
        %v1132 = vpop.trf.xlu0
        %v1133 = vpop.trf.xlu0
        %v1134 = vpop.trf.xlu0
        %v1135 = vpop.trf.xlu0
        %v1136 = vpop.trf.xlu0
        %v1137 = vpop.trf.xlu0
        %v1138 = vpop.trf.xlu0
        %v1139 = vpop.trf.xlu0
        %v1140 = vpop.trf.xlu0
        %v1141 = vpop.trf.xlu0
        %v1142 = vpop.trf.xlu0
        %v1143 = vpop.trf.xlu0
        %v1144 = vpop.trf.xlu0
        %v1145 = vpop.trf.xlu0
        %v1146 = vpop.trf.xlu0
        %v1147 = vpop.trf.xlu0
        %1148 = vxpose.xlu0.b32.start [1/16] %v800, 128
        %1149 = vxpose.xlu0.b32.cont [2/16] %v801, 128
        %1150 = vxpose.xlu0.b32.cont [3/16] 0.0, 128
        %1151 = vxpose.xlu0.b32.cont [4/16] 0.0, 128
        %1152 = vxpose.xlu0.b32.cont [5/16] 0.0, 128
        %1153 = vxpose.xlu0.b32.cont [6/16] 0.0, 128
        %1154 = vxpose.xlu0.b32.cont [7/16] 0.0, 128
        %1155 = vxpose.xlu0.b32.cont [8/16] 0.0, 128
        %1156 = vxpose.xlu0.b32.cont [9/16] 0.0, 128
        %1157 = vxpose.xlu0.b32.cont [10/16] 0.0, 128
        %1158 = vxpose.xlu0.b32.cont [11/16] 0.0, 128
        %1159 = vxpose.xlu0.b32.cont [12/16] 0.0, 128
        %1160 = vxpose.xlu0.b32.cont [13/16] 0.0, 128
        %1161 = vxpose.xlu0.b32.cont [14/16] 0.0, 128
        %1162 = vxpose.xlu0.b32.cont [15/16] 0.0, 128
        %1163 = vxpose.xlu0.b32.end [16/16] 0.0, 128
        %v1164 = vpop.trf.xlu0
        %v1165 = vpop.trf.xlu0
        %v1166 = vpop.trf.xlu0
        %v1167 = vpop.trf.xlu0
        %v1168 = vpop.trf.xlu0
        %v1169 = vpop.trf.xlu0
        %v1170 = vpop.trf.xlu0
        %v1171 = vpop.trf.xlu0
        %v1172 = vpop.trf.xlu0
        %v1173 = vpop.trf.xlu0
        %v1174 = vpop.trf.xlu0
        %v1175 = vpop.trf.xlu0
        %v1176 = vpop.trf.xlu0
        %v1177 = vpop.trf.xlu0
        %v1178 = vpop.trf.xlu0
        %v1179 = vpop.trf.xlu0
        %1180 = vxpose.xlu0.b32.start [1/16] %v802, 128
        %1181 = vxpose.xlu0.b32.cont [2/16] %v803, 128
        %1182 = vxpose.xlu0.b32.cont [3/16] 0.0, 128
        %1183 = vxpose.xlu0.b32.cont [4/16] 0.0, 128
        %1184 = vxpose.xlu0.b32.cont [5/16] 0.0, 128
        %1185 = vxpose.xlu0.b32.cont [6/16] 0.0, 128
        %1186 = vxpose.xlu0.b32.cont [7/16] 0.0, 128
        %1187 = vxpose.xlu0.b32.cont [8/16] 0.0, 128
        %1188 = vxpose.xlu0.b32.cont [9/16] 0.0, 128
        %1189 = vxpose.xlu0.b32.cont [10/16] 0.0, 128
        %1190 = vxpose.xlu0.b32.cont [11/16] 0.0, 128
        %1191 = vxpose.xlu0.b32.cont [12/16] 0.0, 128
        %1192 = vxpose.xlu0.b32.cont [13/16] 0.0, 128
        %1193 = vxpose.xlu0.b32.cont [14/16] 0.0, 128
        %1194 = vxpose.xlu0.b32.cont [15/16] 0.0, 128
        %1195 = vxpose.xlu0.b32.end [16/16] 0.0, 128
        %v1196 = vpop.trf.xlu0
        %v1197 = vpop.trf.xlu0
        %v1198 = vpop.trf.xlu0
        %v1199 = vpop.trf.xlu0
        %v1200 = vpop.trf.xlu0
        %v1201 = vpop.trf.xlu0
        %v1202 = vpop.trf.xlu0
        %v1203 = vpop.trf.xlu0
        %v1204 = vpop.trf.xlu0
        %v1205 = vpop.trf.xlu0
        %v1206 = vpop.trf.xlu0
        %v1207 = vpop.trf.xlu0
        %v1208 = vpop.trf.xlu0
        %v1209 = vpop.trf.xlu0
        %v1210 = vpop.trf.xlu0
        %v1211 = vpop.trf.xlu0
        %v1212 = vpack.c.bf16 %v1100, %v1100
        %v1213 = vpack.c.bf16 %v1101, %v1101
        %v1214 = vpack.c.bf16 %v1132, %v1132
        %v1215 = vpack.c.bf16 %v1133, %v1133
        %v1216 = vpack.c.bf16 %v1164, %v1164
        %v1217 = vpack.c.bf16 %v1165, %v1165
        %v1218 = vpack.c.bf16 %v1196, %v1196
        %v1219 = vpack.c.bf16 %v1197, %v1197
        %v1222 = vunpack.c.l.b16 %v940
        %v1223 = vunpack.c.l.b16 %v941
        %v1224 = vpack.c.b16 %v1223, %v1222
        %v1227 = vunpack.c.l.b16 %v1076
        %v1228 = vunpack.c.l.b16 %v1077
        %v1229 = vpack.c.b16 %v1228, %v1227
        %vm1230 = vcmask 130048
        %v1232 = vsel %vm1230, %v1224, 0
        %v1235 = vsel %vm1230, %v1229, 0
        %1237 = vmatpush.bf16.xpose.msra.mxu0 0
        %1238 = vmatpush.bf16.xpose.msra.mxu0 0
        %1239 = vmatpush.bf16.xpose.msra.mxu0 0
        %1240 = vmatpush.bf16.xpose.msra.mxu0 0
        %1241 = vmatpush.bf16.xpose.msra.mxu0 0
        %1242 = vmatpush.bf16.xpose.msra.mxu0 0
        %1243 = vmatpush.bf16.xpose.msra.mxu0 0
        %1244 = vmatpush.bf16.xpose.msra.mxu0 %v1235
        %1245 = vmatmul.bf16.gmra.mxu0 %v1232
        %v1246 = vpop.f32.mrf.mxu0
        %v1247 = vadd.f32 0.0, %v1246
        %v1248 = vpop.f32.mrf.mxu0
        %v1249 = vadd.f32 0.0, %v1248
        %1250 = vdwg.mxu0
        %v1253 = vunpack.c.l.b16 %v942
        %v1254 = vunpack.c.l.b16 %v943
        %v1255 = vpack.c.b16 %v1254, %v1253
        %v1258 = vunpack.c.l.b16 %v1078
        %v1259 = vunpack.c.l.b16 %v1079
        %v1260 = vpack.c.b16 %v1259, %v1258
        %v1262 = vsel %vm1230, %v1255, 0
        %v1265 = vsel %vm1230, %v1260, 0
        %1267 = vmatpush.bf16.xpose.msra.mxu0 0
        %1268 = vmatpush.bf16.xpose.msra.mxu0 0
        %1269 = vmatpush.bf16.xpose.msra.mxu0 0
        %1270 = vmatpush.bf16.xpose.msra.mxu0 0
        %1271 = vmatpush.bf16.xpose.msra.mxu0 0
        %1272 = vmatpush.bf16.xpose.msra.mxu0 0
        %1273 = vmatpush.bf16.xpose.msra.mxu0 0
        %1274 = vmatpush.bf16.xpose.msra.mxu0 %v1265
        %1275 = vmatmul.bf16.gmra.mxu0 %v1262
        %v1276 = vpop.f32.mrf.mxu0
        %v1277 = vadd.f32 0.0, %v1276
        %v1278 = vpop.f32.mrf.mxu0
        %v1279 = vadd.f32 0.0, %v1278
        %1280 = vdwg.mxu0
        %v1283 = vunpack.c.l.b16 %v944
        %v1284 = vunpack.c.l.b16 %v945
        %v1285 = vpack.c.b16 %v1284, %v1283
        %v1288 = vunpack.c.l.b16 %v1080
        %v1289 = vunpack.c.l.b16 %v1081
        %v1290 = vpack.c.b16 %v1289, %v1288
        %v1292 = vsel %vm1230, %v1285, 0
        %v1295 = vsel %vm1230, %v1290, 0
        %1297 = vmatpush.bf16.xpose.msra.mxu0 0
        %1298 = vmatpush.bf16.xpose.msra.mxu0 0
        %1299 = vmatpush.bf16.xpose.msra.mxu0 0
        %1300 = vmatpush.bf16.xpose.msra.mxu0 0
        %1301 = vmatpush.bf16.xpose.msra.mxu0 0
        %1302 = vmatpush.bf16.xpose.msra.mxu0 0
        %1303 = vmatpush.bf16.xpose.msra.mxu0 0
        %1304 = vmatpush.bf16.xpose.msra.mxu0 %v1295
        %1305 = vmatmul.bf16.gmra.mxu0 %v1292
        %v1306 = vpop.f32.mrf.mxu0
        %v1307 = vadd.f32 0.0, %v1306
        %v1308 = vpop.f32.mrf.mxu0
        %v1309 = vadd.f32 0.0, %v1308
        %1310 = vdwg.mxu0
        %v1313 = vunpack.c.l.b16 %v946
        %v1314 = vunpack.c.l.b16 %v947
        %v1315 = vpack.c.b16 %v1314, %v1313
        %v1318 = vunpack.c.l.b16 %v1082
        %v1319 = vunpack.c.l.b16 %v1083
        %v1320 = vpack.c.b16 %v1319, %v1318
        %v1322 = vsel %vm1230, %v1315, 0
        %v1325 = vsel %vm1230, %v1320, 0
        %1327 = vmatpush.bf16.xpose.msra.mxu0 0
        %1328 = vmatpush.bf16.xpose.msra.mxu0 0
        %1329 = vmatpush.bf16.xpose.msra.mxu0 0
        %1330 = vmatpush.bf16.xpose.msra.mxu0 0
        %1331 = vmatpush.bf16.xpose.msra.mxu0 0
        %1332 = vmatpush.bf16.xpose.msra.mxu0 0
        %1333 = vmatpush.bf16.xpose.msra.mxu0 0
        %1334 = vmatpush.bf16.xpose.msra.mxu0 %v1325
        %1335 = vmatmul.bf16.gmra.mxu0 %v1322
        %v1336 = vpop.f32.mrf.mxu0
        %v1337 = vadd.f32 0.0, %v1336
        %v1338 = vpop.f32.mrf.mxu0
        %v1339 = vadd.f32 0.0, %v1338
        %1340 = vdwg.mxu0
        %v1341 = vmul.f32 %v1247, 0.25
        %v1342 = vmul.f32 %v1249, 0.25
        %v1343 = vmul.f32 %v1277, 0.25
        %v1344 = vmul.f32 %v1279, 0.25
        %v1345 = vmul.f32 %v1307, 0.25
        %v1346 = vmul.f32 %v1309, 0.25
        %v1347 = vmul.f32 %v1337, 0.25
        %v1348 = vmul.f32 %v1339, 0.25
        %v1349 = vsel %vm1230, %v1341, -inf
        %1350 = vmax.xlane.f32.xlu0 %v1349
        %v1351 = vpop.xlane.xlu0 %1350
        %v1352 = vsel %vm1230, %v1342, -inf
        %1353 = vmax.xlane.f32.xlu0 %v1352
        %v1354 = vpop.xlane.xlu0 %1353
        %v1355 = vsel %vm1230, %v1343, -inf
        %1356 = vmax.xlane.f32.xlu0 %v1355
        %v1357 = vpop.xlane.xlu0 %1356
        %v1358 = vsel %vm1230, %v1344, -inf
        %1359 = vmax.xlane.f32.xlu0 %v1358
        %v1360 = vpop.xlane.xlu0 %1359
        %v1361 = vsel %vm1230, %v1345, -inf
        %1362 = vmax.xlane.f32.xlu0 %v1361
        %v1363 = vpop.xlane.xlu0 %1362
        %v1364 = vsel %vm1230, %v1346, -inf
        %1365 = vmax.xlane.f32.xlu0 %v1364
        %v1366 = vpop.xlane.xlu0 %1365
        %v1367 = vsel %vm1230, %v1347, -inf
        %1368 = vmax.xlane.f32.xlu0 %v1367
        %v1369 = vpop.xlane.xlu0 %1368
        %v1370 = vsel %vm1230, %v1348, -inf
        %1371 = vmax.xlane.f32.xlu0 %v1370
        %v1372 = vpop.xlane.xlu0 %1371
        %v1373 = vsub.f32 %v1341, %v1351
        %v1374 = vsub.f32 %v1342, %v1354
        %v1375 = vsub.f32 %v1343, %v1357
        %v1376 = vsub.f32 %v1344, %v1360
        %v1377 = vsub.f32 %v1345, %v1363
        %v1378 = vsub.f32 %v1346, %v1366
        %v1379 = vsub.f32 %v1347, %v1369
        %v1380 = vsub.f32 %v1348, %v1372
        %v1381 = vmul.f32 %v1373, 1.442695
        %v1382 = vpow.pop %v1381
        %v1383 = vmul.f32 %v1374, 1.442695
        %v1384 = vpow.pop %v1383
        %v1385 = vmul.f32 %v1375, 1.442695
        %v1386 = vpow.pop %v1385
        %v1387 = vmul.f32 %v1376, 1.442695
        %v1388 = vpow.pop %v1387
        %v1389 = vmul.f32 %v1377, 1.442695
        %v1390 = vpow.pop %v1389
        %v1391 = vmul.f32 %v1378, 1.442695
        %v1392 = vpow.pop %v1391
        %v1393 = vmul.f32 %v1379, 1.442695
        %v1394 = vpow.pop %v1393
        %v1395 = vmul.f32 %v1380, 1.442695
        %v1396 = vpow.pop %v1395
        %v1397 = vsel %vm1230, %v1382, 0.0
        %1398 = vadd.xlane.f32.xlu0 %v1397
        %v1399 = vpop.xlane.xlu0 %1398
        %v1400 = vsel %vm1230, %v1384, 0.0
        %1401 = vadd.xlane.f32.xlu0 %v1400
        %v1402 = vpop.xlane.xlu0 %1401
        %v1403 = vsel %vm1230, %v1386, 0.0
        %1404 = vadd.xlane.f32.xlu0 %v1403
        %v1405 = vpop.xlane.xlu0 %1404
        %v1406 = vsel %vm1230, %v1388, 0.0
        %1407 = vadd.xlane.f32.xlu0 %v1406
        %v1408 = vpop.xlane.xlu0 %1407
        %v1409 = vsel %vm1230, %v1390, 0.0
        %1410 = vadd.xlane.f32.xlu0 %v1409
        %v1411 = vpop.xlane.xlu0 %1410
        %v1412 = vsel %vm1230, %v1392, 0.0
        %1413 = vadd.xlane.f32.xlu0 %v1412
        %v1414 = vpop.xlane.xlu0 %1413
        %v1415 = vsel %vm1230, %v1394, 0.0
        %1416 = vadd.xlane.f32.xlu0 %v1415
        %v1417 = vpop.xlane.xlu0 %1416
        %v1418 = vsel %vm1230, %v1396, 0.0
        %1419 = vadd.xlane.f32.xlu0 %v1418
        %v1420 = vpop.xlane.xlu0 %1419
        %v1421 = vrcp.pop %v1399
        %v1422 = vrcp.pop %v1402
        %v1423 = vrcp.pop %v1405
        %v1424 = vrcp.pop %v1408
        %v1425 = vrcp.pop %v1411
        %v1426 = vrcp.pop %v1414
        %v1427 = vrcp.pop %v1417
        %v1428 = vrcp.pop %v1420
        %v1429 = vmul.f32 %v1382, %v1421
        %v1430 = vmul.f32 %v1384, %v1422
        %v1431 = vmul.f32 %v1386, %v1423
        %v1432 = vmul.f32 %v1388, %v1424
        %v1433 = vmul.f32 %v1390, %v1425
        %v1434 = vmul.f32 %v1392, %v1426
        %v1435 = vmul.f32 %v1394, %v1427
        %v1436 = vmul.f32 %v1396, %v1428
        %v1437 = vpack.c.bf16 %v1429, %v1429
        %v1438 = vpack.c.bf16 %v1430, %v1430
        %v1439 = vpack.c.bf16 %v1431, %v1431
        %v1440 = vpack.c.bf16 %v1432, %v1432
        %v1441 = vpack.c.bf16 %v1433, %v1433
        %v1442 = vpack.c.bf16 %v1434, %v1434
        %v1443 = vpack.c.bf16 %v1435, %v1435
        %v1444 = vpack.c.bf16 %v1436, %v1436
        %v1447 = vunpack.c.l.b16 %v1437
        %v1448 = vunpack.c.l.b16 %v1438
        %v1449 = vpack.c.b16 %v1448, %v1447
        %v1452 = vunpack.c.l.b16 %v1212
        %v1453 = vunpack.c.l.b16 %v1213
        %v1454 = vpack.c.b16 %v1453, %v1452
        %v1457 = vsel %vm1230, %v1449, 0
        %1459 = vmatpush.bf16.msra.mxu0 0
        %1460 = vmatpush.bf16.msra.mxu0 0
        %1461 = vmatpush.bf16.msra.mxu0 0
        %1462 = vmatpush.bf16.msra.mxu0 0
        %1463 = vmatpush.bf16.msra.mxu0 0
        %1464 = vmatpush.bf16.msra.mxu0 0
        %1465 = vmatpush.bf16.msra.mxu0 0
        %1466 = vmatpush.bf16.msra.mxu0 %v1454
        %1467 = vmatmul.bf16.gmra.mxu0 %v1457
        %v1468 = vpop.f32.mrf.mxu0
        %v1469 = vadd.f32 0.0, %v1468
        %v1470 = vpop.f32.mrf.mxu0
        %v1471 = vadd.f32 0.0, %v1470
        %1472 = vdwg.mxu0
        %v1475 = vunpack.c.l.b16 %v1439
        %v1476 = vunpack.c.l.b16 %v1440
        %v1477 = vpack.c.b16 %v1476, %v1475
        %v1480 = vunpack.c.l.b16 %v1214
        %v1481 = vunpack.c.l.b16 %v1215
        %v1482 = vpack.c.b16 %v1481, %v1480
        %v1485 = vsel %vm1230, %v1477, 0
        %1487 = vmatpush.bf16.msra.mxu0 0
        %1488 = vmatpush.bf16.msra.mxu0 0
        %1489 = vmatpush.bf16.msra.mxu0 0
        %1490 = vmatpush.bf16.msra.mxu0 0
        %1491 = vmatpush.bf16.msra.mxu0 0
        %1492 = vmatpush.bf16.msra.mxu0 0
        %1493 = vmatpush.bf16.msra.mxu0 0
        %1494 = vmatpush.bf16.msra.mxu0 %v1482
        %1495 = vmatmul.bf16.gmra.mxu0 %v1485
        %v1496 = vpop.f32.mrf.mxu0
        %v1497 = vadd.f32 0.0, %v1496
        %v1498 = vpop.f32.mrf.mxu0
        %v1499 = vadd.f32 0.0, %v1498
        %1500 = vdwg.mxu0
        %v1503 = vunpack.c.l.b16 %v1441
        %v1504 = vunpack.c.l.b16 %v1442
        %v1505 = vpack.c.b16 %v1504, %v1503
        %v1508 = vunpack.c.l.b16 %v1216
        %v1509 = vunpack.c.l.b16 %v1217
        %v1510 = vpack.c.b16 %v1509, %v1508
        %v1513 = vsel %vm1230, %v1505, 0
        %1515 = vmatpush.bf16.msra.mxu0 0
        %1516 = vmatpush.bf16.msra.mxu0 0
        %1517 = vmatpush.bf16.msra.mxu0 0
        %1518 = vmatpush.bf16.msra.mxu0 0
        %1519 = vmatpush.bf16.msra.mxu0 0
        %1520 = vmatpush.bf16.msra.mxu0 0
        %1521 = vmatpush.bf16.msra.mxu0 0
        %1522 = vmatpush.bf16.msra.mxu0 %v1510
        %1523 = vmatmul.bf16.gmra.mxu0 %v1513
        %v1524 = vpop.f32.mrf.mxu0
        %v1525 = vadd.f32 0.0, %v1524
        %v1526 = vpop.f32.mrf.mxu0
        %v1527 = vadd.f32 0.0, %v1526
        %1528 = vdwg.mxu0
        %v1531 = vunpack.c.l.b16 %v1443
        %v1532 = vunpack.c.l.b16 %v1444
        %v1533 = vpack.c.b16 %v1532, %v1531
        %v1536 = vunpack.c.l.b16 %v1218
        %v1537 = vunpack.c.l.b16 %v1219
        %v1538 = vpack.c.b16 %v1537, %v1536
        %v1541 = vsel %vm1230, %v1533, 0
        %1543 = vmatpush.bf16.msra.mxu0 0
        %1544 = vmatpush.bf16.msra.mxu0 0
        %1545 = vmatpush.bf16.msra.mxu0 0
        %1546 = vmatpush.bf16.msra.mxu0 0
        %1547 = vmatpush.bf16.msra.mxu0 0
        %1548 = vmatpush.bf16.msra.mxu0 0
        %1549 = vmatpush.bf16.msra.mxu0 0
        %1550 = vmatpush.bf16.msra.mxu0 %v1538
        %1551 = vmatmul.bf16.gmra.mxu0 %v1541
        %v1552 = vpop.f32.mrf.mxu0
        %v1553 = vadd.f32 0.0, %v1552
        %v1554 = vpop.f32.mrf.mxu0
        %v1555 = vadd.f32 0.0, %v1554
        %1556 = vdwg.mxu0
        %1557 = vxpose.xlu0.b32.start [1/16] %v1469, 128
        %1558 = vxpose.xlu0.b32.cont [2/16] %v1471, 128
        %1559 = vxpose.xlu0.b32.cont [3/16] 0.0, 128
        %1560 = vxpose.xlu0.b32.cont [4/16] 0.0, 128
        %1561 = vxpose.xlu0.b32.cont [5/16] 0.0, 128
        %1562 = vxpose.xlu0.b32.cont [6/16] 0.0, 128
        %1563 = vxpose.xlu0.b32.cont [7/16] 0.0, 128
        %1564 = vxpose.xlu0.b32.cont [8/16] 0.0, 128
        %1565 = vxpose.xlu0.b32.cont [9/16] 0.0, 128
        %1566 = vxpose.xlu0.b32.cont [10/16] 0.0, 128
        %1567 = vxpose.xlu0.b32.cont [11/16] 0.0, 128
        %1568 = vxpose.xlu0.b32.cont [12/16] 0.0, 128
        %1569 = vxpose.xlu0.b32.cont [13/16] 0.0, 128
        %1570 = vxpose.xlu0.b32.cont [14/16] 0.0, 128
        %1571 = vxpose.xlu0.b32.cont [15/16] 0.0, 128
        %1572 = vxpose.xlu0.b32.end [16/16] 0.0, 128
        %v1573 = vpop.trf.xlu0
        %v1574 = vpop.trf.xlu0
        %v1575 = vpop.trf.xlu0
        %v1576 = vpop.trf.xlu0
        %v1577 = vpop.trf.xlu0
        %v1578 = vpop.trf.xlu0
        %v1579 = vpop.trf.xlu0
        %v1580 = vpop.trf.xlu0
        %v1581 = vpop.trf.xlu0
        %v1582 = vpop.trf.xlu0
        %v1583 = vpop.trf.xlu0
        %v1584 = vpop.trf.xlu0
        %v1585 = vpop.trf.xlu0
        %v1586 = vpop.trf.xlu0
        %v1587 = vpop.trf.xlu0
        %v1588 = vpop.trf.xlu0
        %1589 = vxpose.xlu0.b32.start [1/16] %v1497, 128
        %1590 = vxpose.xlu0.b32.cont [2/16] %v1499, 128
        %1591 = vxpose.xlu0.b32.cont [3/16] 0.0, 128
        %1592 = vxpose.xlu0.b32.cont [4/16] 0.0, 128
        %1593 = vxpose.xlu0.b32.cont [5/16] 0.0, 128
        %1594 = vxpose.xlu0.b32.cont [6/16] 0.0, 128
        %1595 = vxpose.xlu0.b32.cont [7/16] 0.0, 128
        %1596 = vxpose.xlu0.b32.cont [8/16] 0.0, 128
        %1597 = vxpose.xlu0.b32.cont [9/16] 0.0, 128
        %1598 = vxpose.xlu0.b32.cont [10/16] 0.0, 128
        %1599 = vxpose.xlu0.b32.cont [11/16] 0.0, 128
        %1600 = vxpose.xlu0.b32.cont [12/16] 0.0, 128
        %1601 = vxpose.xlu0.b32.cont [13/16] 0.0, 128
        %1602 = vxpose.xlu0.b32.cont [14/16] 0.0, 128
        %1603 = vxpose.xlu0.b32.cont [15/16] 0.0, 128
        %1604 = vxpose.xlu0.b32.end [16/16] 0.0, 128
        %v1605 = vpop.trf.xlu0
        %v1606 = vpop.trf.xlu0
        %v1607 = vpop.trf.xlu0
        %v1608 = vpop.trf.xlu0
        %v1609 = vpop.trf.xlu0
        %v1610 = vpop.trf.xlu0
        %v1611 = vpop.trf.xlu0
        %v1612 = vpop.trf.xlu0
        %v1613 = vpop.trf.xlu0
        %v1614 = vpop.trf.xlu0
        %v1615 = vpop.trf.xlu0
        %v1616 = vpop.trf.xlu0
        %v1617 = vpop.trf.xlu0
        %v1618 = vpop.trf.xlu0
        %v1619 = vpop.trf.xlu0
        %v1620 = vpop.trf.xlu0
        %1621 = vxpose.xlu0.b32.start [1/16] %v1525, 128
        %1622 = vxpose.xlu0.b32.cont [2/16] %v1527, 128
        %1623 = vxpose.xlu0.b32.cont [3/16] 0.0, 128
        %1624 = vxpose.xlu0.b32.cont [4/16] 0.0, 128
        %1625 = vxpose.xlu0.b32.cont [5/16] 0.0, 128
        %1626 = vxpose.xlu0.b32.cont [6/16] 0.0, 128
        %1627 = vxpose.xlu0.b32.cont [7/16] 0.0, 128
        %1628 = vxpose.xlu0.b32.cont [8/16] 0.0, 128
        %1629 = vxpose.xlu0.b32.cont [9/16] 0.0, 128
        %1630 = vxpose.xlu0.b32.cont [10/16] 0.0, 128
        %1631 = vxpose.xlu0.b32.cont [11/16] 0.0, 128
        %1632 = vxpose.xlu0.b32.cont [12/16] 0.0, 128
        %1633 = vxpose.xlu0.b32.cont [13/16] 0.0, 128
        %1634 = vxpose.xlu0.b32.cont [14/16] 0.0, 128
        %1635 = vxpose.xlu0.b32.cont [15/16] 0.0, 128
        %1636 = vxpose.xlu0.b32.end [16/16] 0.0, 128
        %v1637 = vpop.trf.xlu0
        %v1638 = vpop.trf.xlu0
        %v1639 = vpop.trf.xlu0
        %v1640 = vpop.trf.xlu0
        %v1641 = vpop.trf.xlu0
        %v1642 = vpop.trf.xlu0
        %v1643 = vpop.trf.xlu0
        %v1644 = vpop.trf.xlu0
        %v1645 = vpop.trf.xlu0
        %v1646 = vpop.trf.xlu0
        %v1647 = vpop.trf.xlu0
        %v1648 = vpop.trf.xlu0
        %v1649 = vpop.trf.xlu0
        %v1650 = vpop.trf.xlu0
        %v1651 = vpop.trf.xlu0
        %v1652 = vpop.trf.xlu0
        %1653 = vxpose.xlu0.b32.start [1/16] %v1553, 128
        %1654 = vxpose.xlu0.b32.cont [2/16] %v1555, 128
        %1655 = vxpose.xlu0.b32.cont [3/16] 0.0, 128
        %1656 = vxpose.xlu0.b32.cont [4/16] 0.0, 128
        %1657 = vxpose.xlu0.b32.cont [5/16] 0.0, 128
        %1658 = vxpose.xlu0.b32.cont [6/16] 0.0, 128
        %1659 = vxpose.xlu0.b32.cont [7/16] 0.0, 128
        %1660 = vxpose.xlu0.b32.cont [8/16] 0.0, 128
        %1661 = vxpose.xlu0.b32.cont [9/16] 0.0, 128
        %1662 = vxpose.xlu0.b32.cont [10/16] 0.0, 128
        %1663 = vxpose.xlu0.b32.cont [11/16] 0.0, 128
        %1664 = vxpose.xlu0.b32.cont [12/16] 0.0, 128
        %1665 = vxpose.xlu0.b32.cont [13/16] 0.0, 128
        %1666 = vxpose.xlu0.b32.cont [14/16] 0.0, 128
        %1667 = vxpose.xlu0.b32.cont [15/16] 0.0, 128
        %1668 = vxpose.xlu0.b32.end [16/16] 0.0, 128
        %v1669 = vpop.trf.xlu0
        %v1670 = vpop.trf.xlu0
        %v1671 = vpop.trf.xlu0
        %v1672 = vpop.trf.xlu0
        %v1673 = vpop.trf.xlu0
        %v1674 = vpop.trf.xlu0
        %v1675 = vpop.trf.xlu0
        %v1676 = vpop.trf.xlu0
        %v1677 = vpop.trf.xlu0
        %v1678 = vpop.trf.xlu0
        %v1679 = vpop.trf.xlu0
        %v1680 = vpop.trf.xlu0
        %v1681 = vpop.trf.xlu0
        %v1682 = vpop.trf.xlu0
        %v1683 = vpop.trf.xlu0
        %v1684 = vpop.trf.xlu0
        %1685 = vxpose.xlu0.b32.start [1/16] %v1573, 128
        %1686 = vxpose.xlu0.b32.cont [2/16] %v1574, 128
        %1687 = vxpose.xlu0.b32.cont [3/16] %v1605, 128
        %1688 = vxpose.xlu0.b32.cont [4/16] %v1606, 128
        %1689 = vxpose.xlu0.b32.cont [5/16] %v1637, 128
        %1690 = vxpose.xlu0.b32.cont [6/16] %v1638, 128
        %1691 = vxpose.xlu0.b32.cont [7/16] %v1669, 128
        %1692 = vxpose.xlu0.b32.cont [8/16] %v1670, 128
        %1693 = vxpose.xlu0.b32.cont [9/16] 0.0, 128
        %1694 = vxpose.xlu0.b32.cont [10/16] 0.0, 128
        %1695 = vxpose.xlu0.b32.cont [11/16] 0.0, 128
        %1696 = vxpose.xlu0.b32.cont [12/16] 0.0, 128
        %1697 = vxpose.xlu0.b32.cont [13/16] 0.0, 128
        %1698 = vxpose.xlu0.b32.cont [14/16] 0.0, 128
        %1699 = vxpose.xlu0.b32.cont [15/16] 0.0, 128
        %1700 = vxpose.xlu0.b32.end [16/16] 0.0, 128
        %v1701 = vpop.trf.xlu0
        %v1702 = vpop.trf.xlu0
        %v1703 = vpop.trf.xlu0
        %v1704 = vpop.trf.xlu0
        %v1705 = vpop.trf.xlu0
        %v1706 = vpop.trf.xlu0
        %v1707 = vpop.trf.xlu0
        %v1708 = vpop.trf.xlu0
        %v1709 = vpop.trf.xlu0
        %v1710 = vpop.trf.xlu0
        %v1711 = vpop.trf.xlu0
        %v1712 = vpop.trf.xlu0
        %v1713 = vpop.trf.xlu0
        %v1714 = vpop.trf.xlu0
        %v1715 = vpop.trf.xlu0
        %v1716 = vpop.trf.xlu0
        %v1717 = vpack.c.bf16 %v1702, %v1701
        %v1718 = vld [vmem:[%s616] sm:$0xf]
        %v1719 = vld [vmem:[%s616 + $0x4] sm:$0xf]
        %v1720 = vld [vmem:[%s616 + $0x8] sm:$0xf]
        %v1721 = vld [vmem:[%s616 + $0xc] sm:$0xf]
        %v1722 = vld [vmem:[%s616 + $0x10] sm:$0xf]
        %v1723 = vld [vmem:[%s616 + $0x14] sm:$0xf]
        %v1724 = vld [vmem:[%s616 + $0x18] sm:$0xf]
        %v1725 = vld [vmem:[%s616 + $0x1c] sm:$0xf]
        %v1726 = vld [vmem:[%s619] sm:$0x1]
        %v1728 = vperm.slane %v1726, 0
        %v1738 = vunpack.c.l.b16 %v1718
        %v1739 = vunpack.c.l.b16 %v1719
        %v1740 = vunpack.c.l.b16 %v1720
        %v1741 = vunpack.c.l.b16 %v1721
        %v1742 = vunpack.c.l.b16 %v1722
        %v1743 = vunpack.c.l.b16 %v1723
        %v1744 = vunpack.c.l.b16 %v1724
        %v1745 = vunpack.c.l.b16 %v1725
        %v1746 = vpack.c.b16 %v1739, %v1738
        %v1747 = vpack.c.b16 %v1741, %v1740
        %v1748 = vpack.c.b16 %v1743, %v1742
        %v1749 = vpack.c.b16 %v1745, %v1744
        %v1755 = vsel %vm716, %v1717, 0
        %1757 = vmatpush.bf16.msra.mxu0 0
        %1758 = vmatpush.bf16.msra.mxu0 0
        %1759 = vmatpush.bf16.msra.mxu0 0
        %1760 = vmatpush.bf16.msra.mxu0 0
        %1761 = vmatpush.bf16.msra.mxu0 %v1749
        %1762 = vmatpush.bf16.msra.mxu0 %v1748
        %1763 = vmatpush.bf16.msra.mxu0 %v1747
        %1764 = vmatpush.bf16.msra.mxu0 %v1746
        %1765 = vmatmul.bf16.gmra.mxu0 %v1755
        %v1766 = vpop.f32.mrf.mxu0
        %v1767 = vadd.f32 %v1728, %v1766
        %v1768 = vpop.f32.mrf.mxu0
        %v1769 = vadd.f32 %v1728, %v1768
        %1770 = vdwg.mxu0
        %v1771 = vadd.f32 %v659, %v1767
        %v1772 = vadd.f32 %v660, %v1769
        %v1773 = vsel %vm716, %v1771, 0.0
        %1774 = vadd.xlane.f32.xlu0 %v1773
        %v1775 = vpop.xlane.xlu0 %1774
        %v1776 = vsel %vm716, %v1772, 0.0
        %1777 = vadd.xlane.f32.xlu0 %v1776
        %v1778 = vpop.xlane.xlu0 %1777
        %v1779 = vrcp.pop 64.0
        %v1780 = vmul.f32 64.0, %v1779
        %v1781 = vsub.f32 1.0, %v1780
        %v1782 = vmul.f32 %v1779, %v1781
        %v1783 = vadd.f32 %v1779, %v1782
        %vm1784 = vweird.f32 %v1779
        %v1785 = vsel %vm1784, %v1779, %v1783
        %v1786 = vmul.f32 %v1775, %v1785
        %v1787 = vmul.f32 %v1778, %v1785
        %v1788 = vsub.f32 %v1771, %v1786
        %v1789 = vsub.f32 %v1772, %v1787
        %v1790 = vmul.f32 %v1788, %v1788
        %v1791 = vmul.f32 %v1789, %v1789
        %v1792 = vsel %vm716, %v1790, 0.0
        %1793 = vadd.xlane.f32.xlu0 %v1792
        %v1794 = vpop.xlane.xlu0 %1793
        %v1795 = vsel %vm716, %v1791, 0.0
        %1796 = vadd.xlane.f32.xlu0 %v1795
        %v1797 = vpop.xlane.xlu0 %1796
        %v1798 = vmul.f32 %v1794, %v1785
        %v1799 = vmul.f32 %v1797, %v1785
        %v1800 = vadd.f32 %v1798, 1e-05
        %v1801 = vadd.f32 %v1799, 1e-05
        %v1802 = vrsqrt.pop %v1800
        %v1803 = vmul.f32 %v1802, %v1800
        %v1804 = vmul.f32 %v1803, %v1802
        %v1805 = vmul.f32 0.5, %v1804
        %v1806 = vsub.f32 1.5, %v1805
        %v1807 = vmul.f32 %v1802, %v1806
        %vm1808 = vweird.f32 %v1800
        %vm1809 = vweird.f32 %v1802
        %vm1810 = vmor %vm1808, %vm1809
        %v1811 = vsel %vm1810, %v1802, %v1807
        %v1812 = vrsqrt.pop %v1801
        %v1813 = vmul.f32 %v1812, %v1801
        %v1814 = vmul.f32 %v1813, %v1812
        %v1815 = vmul.f32 0.5, %v1814
        %v1816 = vsub.f32 1.5, %v1815
        %v1817 = vmul.f32 %v1812, %v1816
        %vm1818 = vweird.f32 %v1801
        %vm1819 = vweird.f32 %v1812
        %vm1820 = vmor %vm1818, %vm1819
        %v1821 = vsel %vm1820, %v1812, %v1817
        %v1822 = vmul.f32 %v1788, %v1811
        %v1823 = vmul.f32 %v1789, %v1821
        %v1824 = vld [vmem:[%s622] sm:$0x1]
        %v1826 = vperm.slane %v1824, 0
        %v1828 = vmul.f32 %v1822, %v1826
        %v1829 = vmul.f32 %v1823, %v1826
        %v1830 = vld [vmem:[%s625] sm:$0x1]
        %v1832 = vperm.slane %v1830, 0
        %v1834 = vadd.f32 %v1828, %v1832
        %v1835 = vadd.f32 %v1829, %v1832
        %v1836 = vpack.c.bf16 %v1835, %v1834
        %v1837 = vld [vmem:[%s630] sm:$0xff]
        %v1838 = vld [vmem:[%s630 + $0x8] sm:$0xff]
        %v1839 = vld [vmem:[%s630 + $0x40] sm:$0xff]
        %v1840 = vld [vmem:[%s630 + $0x48] sm:$0xff]
        %v1841 = vld [vmem:[%s630 + $0x80] sm:$0xff]
        %v1842 = vld [vmem:[%s630 + $0x88] sm:$0xff]
        %v1843 = vld [vmem:[%s630 + $0xc0] sm:$0xff]
        %v1844 = vld [vmem:[%s630 + $0xc8] sm:$0xff]
        %v1845 = vld [vmem:[%s630 + $0x100] sm:$0xff]
        %v1846 = vld [vmem:[%s630 + $0x108] sm:$0xff]
        %v1847 = vld [vmem:[%s630 + $0x140] sm:$0xff]
        %v1848 = vld [vmem:[%s630 + $0x148] sm:$0xff]
        %v1849 = vld [vmem:[%s630 + $0x180] sm:$0xff]
        %v1850 = vld [vmem:[%s630 + $0x188] sm:$0xff]
        %v1851 = vld [vmem:[%s630 + $0x1c0] sm:$0xff]
        %v1852 = vld [vmem:[%s630 + $0x1c8] sm:$0xff]
        %v1853 = vld [vmem:[%s634] sm:$0xf]
        %v1855 = vperm.slane %v1853, 0
        %v1856 = vperm.slane %v1853, 1
        %v1857 = vperm.slane %v1853, 2
        %v1858 = vperm.slane %v1853, 3
        %v1879 = vunpack.c.l.b16 %v1837
        %v1880 = vunpack.c.h.b16 %v1837
        %v1881 = vunpack.c.l.b16 %v1838
        %v1882 = vunpack.c.h.b16 %v1838
        %v1883 = vunpack.c.l.b16 %v1839
        %v1884 = vunpack.c.h.b16 %v1839
        %v1885 = vunpack.c.l.b16 %v1840
        %v1886 = vunpack.c.h.b16 %v1840
        %v1887 = vunpack.c.l.b16 %v1841
        %v1888 = vunpack.c.h.b16 %v1841
        %v1889 = vunpack.c.l.b16 %v1842
        %v1890 = vunpack.c.h.b16 %v1842
        %v1891 = vunpack.c.l.b16 %v1843
        %v1892 = vunpack.c.h.b16 %v1843
        %v1893 = vunpack.c.l.b16 %v1844
        %v1894 = vunpack.c.h.b16 %v1844
        %v1895 = vunpack.c.l.b16 %v1845
        %v1896 = vunpack.c.h.b16 %v1845
        %v1897 = vunpack.c.l.b16 %v1846
        %v1898 = vunpack.c.h.b16 %v1846
        %v1899 = vunpack.c.l.b16 %v1847
        %v1900 = vunpack.c.h.b16 %v1847
        %v1901 = vunpack.c.l.b16 %v1848
        %v1902 = vunpack.c.h.b16 %v1848
        %v1903 = vunpack.c.l.b16 %v1849
        %v1904 = vunpack.c.h.b16 %v1849
        %v1905 = vunpack.c.l.b16 %v1850
        %v1906 = vunpack.c.h.b16 %v1850
        %v1907 = vunpack.c.l.b16 %v1851
        %v1908 = vunpack.c.h.b16 %v1851
        %v1909 = vunpack.c.l.b16 %v1852
        %v1910 = vunpack.c.h.b16 %v1852
        %v1911 = vpack.c.b16 %v1883, %v1879
        %v1912 = vpack.c.b16 %v1884, %v1880
        %v1913 = vpack.c.b16 %v1885, %v1881
        %v1914 = vpack.c.b16 %v1886, %v1882
        %v1915 = vpack.c.b16 %v1891, %v1887
        %v1916 = vpack.c.b16 %v1892, %v1888
        %v1917 = vpack.c.b16 %v1893, %v1889
        %v1918 = vpack.c.b16 %v1894, %v1890
        %v1919 = vpack.c.b16 %v1899, %v1895
        %v1920 = vpack.c.b16 %v1900, %v1896
        %v1921 = vpack.c.b16 %v1901, %v1897
        %v1922 = vpack.c.b16 %v1902, %v1898
        %v1923 = vpack.c.b16 %v1907, %v1903
        %v1924 = vpack.c.b16 %v1908, %v1904
        %v1925 = vpack.c.b16 %v1909, %v1905
        %v1926 = vpack.c.b16 %v1910, %v1906
        %v1944 = vsel %vm716, %v1836, 0
        %1946 = vmatpush.bf16.msra.mxu0 0
        %1947 = vmatpush.bf16.msra.mxu0 0
        %1948 = vmatpush.bf16.msra.mxu0 0
        %1949 = vmatpush.bf16.msra.mxu0 0
        %1950 = vmatpush.bf16.msra.mxu0 %v1923
        %1951 = vmatpush.bf16.msra.mxu0 %v1919
        %1952 = vmatpush.bf16.msra.mxu0 %v1915
        %1953 = vmatpush.bf16.msra.mxu0 %v1911
        %1954 = vmatmul.bf16.gmra.mxu0 %v1944
        %v1955 = vpop.f32.mrf.mxu0
        %v1956 = vadd.f32 %v1855, %v1955
        %v1957 = vpop.f32.mrf.mxu0
        %v1958 = vadd.f32 %v1855, %v1957
        %1959 = vdwg.mxu0
        %1960 = vmatpush.bf16.msra.mxu0 0
        %1961 = vmatpush.bf16.msra.mxu0 0
        %1962 = vmatpush.bf16.msra.mxu0 0
        %1963 = vmatpush.bf16.msra.mxu0 0
        %1964 = vmatpush.bf16.msra.mxu0 %v1924
        %1965 = vmatpush.bf16.msra.mxu0 %v1920
        %1966 = vmatpush.bf16.msra.mxu0 %v1916
        %1967 = vmatpush.bf16.msra.mxu0 %v1912
        %1968 = vmatmul.bf16.gmra.mxu0 %v1944
        %v1969 = vpop.f32.mrf.mxu0
        %v1970 = vadd.f32 %v1856, %v1969
        %v1971 = vpop.f32.mrf.mxu0
        %v1972 = vadd.f32 %v1856, %v1971
        %1973 = vdwg.mxu0
        %1974 = vmatpush.bf16.msra.mxu0 0
        %1975 = vmatpush.bf16.msra.mxu0 0
        %1976 = vmatpush.bf16.msra.mxu0 0
        %1977 = vmatpush.bf16.msra.mxu0 0
        %1978 = vmatpush.bf16.msra.mxu0 %v1925
        %1979 = vmatpush.bf16.msra.mxu0 %v1921
        %1980 = vmatpush.bf16.msra.mxu0 %v1917
        %1981 = vmatpush.bf16.msra.mxu0 %v1913
        %1982 = vmatmul.bf16.gmra.mxu0 %v1944
        %v1983 = vpop.f32.mrf.mxu0
        %v1984 = vadd.f32 %v1857, %v1983
        %v1985 = vpop.f32.mrf.mxu0
        %v1986 = vadd.f32 %v1857, %v1985
        %1987 = vdwg.mxu0
        %1988 = vmatpush.bf16.msra.mxu0 0
        %1989 = vmatpush.bf16.msra.mxu0 0
        %1990 = vmatpush.bf16.msra.mxu0 0
        %1991 = vmatpush.bf16.msra.mxu0 0
        %1992 = vmatpush.bf16.msra.mxu0 %v1926
        %1993 = vmatpush.bf16.msra.mxu0 %v1922
        %1994 = vmatpush.bf16.msra.mxu0 %v1918
        %1995 = vmatpush.bf16.msra.mxu0 %v1914
        %1996 = vmatmul.bf16.gmra.mxu0 %v1944
        %v1997 = vpop.f32.mrf.mxu0
        %v1998 = vadd.f32 %v1858, %v1997
        %v1999 = vpop.f32.mrf.mxu0
        %v2000 = vadd.f32 %v1858, %v1999
        %2001 = vdwg.mxu0
        %v2002 = vmax.f32 %v1956, 0.0
        %v2003 = vmax.f32 %v1970, 0.0
        %v2004 = vmax.f32 %v1984, 0.0
        %v2005 = vmax.f32 %v1998, 0.0
        %v2006 = vmax.f32 %v1958, 0.0
        %v2007 = vmax.f32 %v1972, 0.0
        %v2008 = vmax.f32 %v1986, 0.0
        %v2009 = vmax.f32 %v2000, 0.0
        %v2010 = vld [vmem:[%s639] sm:$0xf]
        %v2011 = vld [vmem:[%s639 + $0x4] sm:$0xf]
        %v2012 = vld [vmem:[%s639 + $0x8] sm:$0xf]
        %v2013 = vld [vmem:[%s639 + $0xc] sm:$0xf]
        %v2014 = vld [vmem:[%s639 + $0x10] sm:$0xf]
        %v2015 = vld [vmem:[%s639 + $0x14] sm:$0xf]
        %v2016 = vld [vmem:[%s639 + $0x18] sm:$0xf]
        %v2017 = vld [vmem:[%s639 + $0x1c] sm:$0xf]
        %v2018 = vld [vmem:[%s639 + $0x20] sm:$0xf]
        %v2019 = vld [vmem:[%s639 + $0x24] sm:$0xf]
        %v2020 = vld [vmem:[%s639 + $0x28] sm:$0xf]
        %v2021 = vld [vmem:[%s639 + $0x2c] sm:$0xf]
        %v2022 = vld [vmem:[%s639 + $0x30] sm:$0xf]
        %v2023 = vld [vmem:[%s639 + $0x34] sm:$0xf]
        %v2024 = vld [vmem:[%s639 + $0x38] sm:$0xf]
        %v2025 = vld [vmem:[%s639 + $0x3c] sm:$0xf]
        %v2026 = vld [vmem:[%s639 + $0x40] sm:$0xf]
        %v2027 = vld [vmem:[%s639 + $0x44] sm:$0xf]
        %v2028 = vld [vmem:[%s639 + $0x48] sm:$0xf]
        %v2029 = vld [vmem:[%s639 + $0x4c] sm:$0xf]
        %v2030 = vld [vmem:[%s639 + $0x50] sm:$0xf]
        %v2031 = vld [vmem:[%s639 + $0x54] sm:$0xf]
        %v2032 = vld [vmem:[%s639 + $0x58] sm:$0xf]
        %v2033 = vld [vmem:[%s639 + $0x5c] sm:$0xf]
        %v2034 = vld [vmem:[%s639 + $0x60] sm:$0xf]
        %v2035 = vld [vmem:[%s639 + $0x64] sm:$0xf]
        %v2036 = vld [vmem:[%s639 + $0x68] sm:$0xf]
        %v2037 = vld [vmem:[%s639 + $0x6c] sm:$0xf]
        %v2038 = vld [vmem:[%s639 + $0x70] sm:$0xf]
        %v2039 = vld [vmem:[%s639 + $0x74] sm:$0xf]
        %v2040 = vld [vmem:[%s639 + $0x78] sm:$0xf]
        %v2041 = vld [vmem:[%s639 + $0x7c] sm:$0xf]
        %v2042 = vld [vmem:[%s639 + $0x80] sm:$0xf]
        %v2043 = vld [vmem:[%s639 + $0x84] sm:$0xf]
        %v2044 = vld [vmem:[%s639 + $0x88] sm:$0xf]
        %v2045 = vld [vmem:[%s639 + $0x8c] sm:$0xf]
        %v2046 = vld [vmem:[%s639 + $0x90] sm:$0xf]
        %v2047 = vld [vmem:[%s639 + $0x94] sm:$0xf]
        %v2048 = vld [vmem:[%s639 + $0x98] sm:$0xf]
        %v2049 = vld [vmem:[%s639 + $0x9c] sm:$0xf]
        %v2050 = vld [vmem:[%s639 + $0xa0] sm:$0xf]
        %v2051 = vld [vmem:[%s639 + $0xa4] sm:$0xf]
        %v2052 = vld [vmem:[%s639 + $0xa8] sm:$0xf]
        %v2053 = vld [vmem:[%s639 + $0xac] sm:$0xf]
        %v2054 = vld [vmem:[%s639 + $0xb0] sm:$0xf]
        %v2055 = vld [vmem:[%s639 + $0xb4] sm:$0xf]
        %v2056 = vld [vmem:[%s639 + $0xb8] sm:$0xf]
        %v2057 = vld [vmem:[%s639 + $0xbc] sm:$0xf]
        %v2058 = vld [vmem:[%s639 + $0xc0] sm:$0xf]
        %v2059 = vld [vmem:[%s639 + $0xc4] sm:$0xf]
        %v2060 = vld [vmem:[%s639 + $0xc8] sm:$0xf]
        %v2061 = vld [vmem:[%s639 + $0xcc] sm:$0xf]
        %v2062 = vld [vmem:[%s639 + $0xd0] sm:$0xf]
        %v2063 = vld [vmem:[%s639 + $0xd4] sm:$0xf]
        %v2064 = vld [vmem:[%s639 + $0xd8] sm:$0xf]
        %v2065 = vld [vmem:[%s639 + $0xdc] sm:$0xf]
        %v2066 = vld [vmem:[%s639 + $0xe0] sm:$0xf]
        %v2067 = vld [vmem:[%s639 + $0xe4] sm:$0xf]
        %v2068 = vld [vmem:[%s639 + $0xe8] sm:$0xf]
        %v2069 = vld [vmem:[%s639 + $0xec] sm:$0xf]
        %v2070 = vld [vmem:[%s639 + $0xf0] sm:$0xf]
        %v2071 = vld [vmem:[%s639 + $0xf4] sm:$0xf]
        %v2072 = vld [vmem:[%s639 + $0xf8] sm:$0xf]
        %v2073 = vld [vmem:[%s639 + $0xfc] sm:$0xf]
        %v2074 = vpack.c.bf16 %v2006, %v2002
        %v2075 = vpack.c.bf16 %v2007, %v2003
        %v2076 = vpack.c.bf16 %v2008, %v2004
        %v2077 = vpack.c.bf16 %v2009, %v2005
        %s2078 = scalar_lea.vmem %s630, 16
        %v2079 = vld [vmem:[%s2078] sm:$0xff]
        %v2080 = vld [vmem:[%s2078 + $0x8] sm:$0xff]
        %v2081 = vld [vmem:[%s2078 + $0x40] sm:$0xff]
        %v2082 = vld [vmem:[%s2078 + $0x48] sm:$0xff]
        %v2083 = vld [vmem:[%s2078 + $0x80] sm:$0xff]
        %v2084 = vld [vmem:[%s2078 + $0x88] sm:$0xff]
        %v2085 = vld [vmem:[%s2078 + $0xc0] sm:$0xff]
        %v2086 = vld [vmem:[%s2078 + $0xc8] sm:$0xff]
        %v2087 = vld [vmem:[%s2078 + $0x100] sm:$0xff]
        %v2088 = vld [vmem:[%s2078 + $0x108] sm:$0xff]
        %v2089 = vld [vmem:[%s2078 + $0x140] sm:$0xff]
        %v2090 = vld [vmem:[%s2078 + $0x148] sm:$0xff]
        %v2091 = vld [vmem:[%s2078 + $0x180] sm:$0xff]
        %v2092 = vld [vmem:[%s2078 + $0x188] sm:$0xff]
        %v2093 = vld [vmem:[%s2078 + $0x1c0] sm:$0xff]
        %v2094 = vld [vmem:[%s2078 + $0x1c8] sm:$0xff]
        %s2095 = scalar_lea.vmem %s634, 4
        %v2096 = vld [vmem:[%s2095] sm:$0xf]
        %v2098 = vperm.slane %v2096, 0
        %v2099 = vperm.slane %v2096, 1
        %v2100 = vperm.slane %v2096, 2
        %v2101 = vperm.slane %v2096, 3
        %v2122 = vunpack.c.l.b16 %v2079
        %v2123 = vunpack.c.h.b16 %v2079
        %v2124 = vunpack.c.l.b16 %v2080
        %v2125 = vunpack.c.h.b16 %v2080
        %v2126 = vunpack.c.l.b16 %v2081
        %v2127 = vunpack.c.h.b16 %v2081
        %v2128 = vunpack.c.l.b16 %v2082
        %v2129 = vunpack.c.h.b16 %v2082
        %v2130 = vunpack.c.l.b16 %v2083
        %v2131 = vunpack.c.h.b16 %v2083
        %v2132 = vunpack.c.l.b16 %v2084
        %v2133 = vunpack.c.h.b16 %v2084
        %v2134 = vunpack.c.l.b16 %v2085
        %v2135 = vunpack.c.h.b16 %v2085
        %v2136 = vunpack.c.l.b16 %v2086
        %v2137 = vunpack.c.h.b16 %v2086
        %v2138 = vunpack.c.l.b16 %v2087
        %v2139 = vunpack.c.h.b16 %v2087
        %v2140 = vunpack.c.l.b16 %v2088
        %v2141 = vunpack.c.h.b16 %v2088
        %v2142 = vunpack.c.l.b16 %v2089
        %v2143 = vunpack.c.h.b16 %v2089
        %v2144 = vunpack.c.l.b16 %v2090
        %v2145 = vunpack.c.h.b16 %v2090
        %v2146 = vunpack.c.l.b16 %v2091
        %v2147 = vunpack.c.h.b16 %v2091
        %v2148 = vunpack.c.l.b16 %v2092
        %v2149 = vunpack.c.h.b16 %v2092
        %v2150 = vunpack.c.l.b16 %v2093
        %v2151 = vunpack.c.h.b16 %v2093
        %v2152 = vunpack.c.l.b16 %v2094
        %v2153 = vunpack.c.h.b16 %v2094
        %v2154 = vpack.c.b16 %v2126, %v2122
        %v2155 = vpack.c.b16 %v2127, %v2123
        %v2156 = vpack.c.b16 %v2128, %v2124
        %v2157 = vpack.c.b16 %v2129, %v2125
        %v2158 = vpack.c.b16 %v2134, %v2130
        %v2159 = vpack.c.b16 %v2135, %v2131
        %v2160 = vpack.c.b16 %v2136, %v2132
        %v2161 = vpack.c.b16 %v2137, %v2133
        %v2162 = vpack.c.b16 %v2142, %v2138
        %v2163 = vpack.c.b16 %v2143, %v2139
        %v2164 = vpack.c.b16 %v2144, %v2140
        %v2165 = vpack.c.b16 %v2145, %v2141
        %v2166 = vpack.c.b16 %v2150, %v2146
        %v2167 = vpack.c.b16 %v2151, %v2147
        %v2168 = vpack.c.b16 %v2152, %v2148
        %v2169 = vpack.c.b16 %v2153, %v2149
        %2186 = vmatpush.bf16.msra.mxu0 0
        %2187 = vmatpush.bf16.msra.mxu0 0
        %2188 = vmatpush.bf16.msra.mxu0 0
        %2189 = vmatpush.bf16.msra.mxu0 0
        %2190 = vmatpush.bf16.msra.mxu0 %v2166
        %2191 = vmatpush.bf16.msra.mxu0 %v2162
        %2192 = vmatpush.bf16.msra.mxu0 %v2158
        %2193 = vmatpush.bf16.msra.mxu0 %v2154
        %2194 = vmatmul.bf16.gmra.mxu0 %v1944
        %v2195 = vpop.f32.mrf.mxu0
        %v2196 = vadd.f32 %v2098, %v2195
        %v2197 = vpop.f32.mrf.mxu0
        %v2198 = vadd.f32 %v2098, %v2197
        %2199 = vdwg.mxu0
        %2200 = vmatpush.bf16.msra.mxu0 0
        %2201 = vmatpush.bf16.msra.mxu0 0
        %2202 = vmatpush.bf16.msra.mxu0 0
        %2203 = vmatpush.bf16.msra.mxu0 0
        %2204 = vmatpush.bf16.msra.mxu0 %v2167
        %2205 = vmatpush.bf16.msra.mxu0 %v2163
        %2206 = vmatpush.bf16.msra.mxu0 %v2159
        %2207 = vmatpush.bf16.msra.mxu0 %v2155
        %2208 = vmatmul.bf16.gmra.mxu0 %v1944
        %v2209 = vpop.f32.mrf.mxu0
        %v2210 = vadd.f32 %v2099, %v2209
        %v2211 = vpop.f32.mrf.mxu0
        %v2212 = vadd.f32 %v2099, %v2211
        %2213 = vdwg.mxu0
        %2214 = vmatpush.bf16.msra.mxu0 0
        %2215 = vmatpush.bf16.msra.mxu0 0
        %2216 = vmatpush.bf16.msra.mxu0 0
        %2217 = vmatpush.bf16.msra.mxu0 0
        %2218 = vmatpush.bf16.msra.mxu0 %v2168
        %2219 = vmatpush.bf16.msra.mxu0 %v2164
        %2220 = vmatpush.bf16.msra.mxu0 %v2160
        %2221 = vmatpush.bf16.msra.mxu0 %v2156
        %2222 = vmatmul.bf16.gmra.mxu0 %v1944
        %v2223 = vpop.f32.mrf.mxu0
        %v2224 = vadd.f32 %v2100, %v2223
        %v2225 = vpop.f32.mrf.mxu0
        %v2226 = vadd.f32 %v2100, %v2225
        %2227 = vdwg.mxu0
        %2228 = vmatpush.bf16.msra.mxu0 0
        %2229 = vmatpush.bf16.msra.mxu0 0
        %2230 = vmatpush.bf16.msra.mxu0 0
        %2231 = vmatpush.bf16.msra.mxu0 0
        %2232 = vmatpush.bf16.msra.mxu0 %v2169
        %2233 = vmatpush.bf16.msra.mxu0 %v2165
        %2234 = vmatpush.bf16.msra.mxu0 %v2161
        %2235 = vmatpush.bf16.msra.mxu0 %v2157
        %2236 = vmatmul.bf16.gmra.mxu0 %v1944
        %v2237 = vpop.f32.mrf.mxu0
        %v2238 = vadd.f32 %v2101, %v2237
        %v2239 = vpop.f32.mrf.mxu0
        %v2240 = vadd.f32 %v2101, %v2239
        %2241 = vdwg.mxu0
        %v2242 = vmax.f32 %v2196, 0.0
        %v2243 = vmax.f32 %v2210, 0.0
        %v2244 = vmax.f32 %v2224, 0.0
        %v2245 = vmax.f32 %v2238, 0.0
        %v2246 = vmax.f32 %v2198, 0.0
        %v2247 = vmax.f32 %v2212, 0.0
        %v2248 = vmax.f32 %v2226, 0.0
        %v2249 = vmax.f32 %v2240, 0.0
        %s2250 = scalar_lea.vmem %s639, 256
        %v2251 = vld [vmem:[%s2250] sm:$0xf]
        %v2252 = vld [vmem:[%s2250 + $0x4] sm:$0xf]
        %v2253 = vld [vmem:[%s2250 + $0x8] sm:$0xf]
        %v2254 = vld [vmem:[%s2250 + $0xc] sm:$0xf]
        %v2255 = vld [vmem:[%s2250 + $0x10] sm:$0xf]
        %v2256 = vld [vmem:[%s2250 + $0x14] sm:$0xf]
        %v2257 = vld [vmem:[%s2250 + $0x18] sm:$0xf]
        %v2258 = vld [vmem:[%s2250 + $0x1c] sm:$0xf]
        %v2259 = vld [vmem:[%s2250 + $0x20] sm:$0xf]
        %v2260 = vld [vmem:[%s2250 + $0x24] sm:$0xf]
        %v2261 = vld [vmem:[%s2250 + $0x28] sm:$0xf]
        %v2262 = vld [vmem:[%s2250 + $0x2c] sm:$0xf]
        %v2263 = vld [vmem:[%s2250 + $0x30] sm:$0xf]
        %v2264 = vld [vmem:[%s2250 + $0x34] sm:$0xf]
        %v2265 = vld [vmem:[%s2250 + $0x38] sm:$0xf]
        %v2266 = vld [vmem:[%s2250 + $0x3c] sm:$0xf]
        %v2267 = vld [vmem:[%s2250 + $0x40] sm:$0xf]
        %v2268 = vld [vmem:[%s2250 + $0x44] sm:$0xf]
        %v2269 = vld [vmem:[%s2250 + $0x48] sm:$0xf]
        %v2270 = vld [vmem:[%s2250 + $0x4c] sm:$0xf]
        %v2271 = vld [vmem:[%s2250 + $0x50] sm:$0xf]
        %v2272 = vld [vmem:[%s2250 + $0x54] sm:$0xf]
        %v2273 = vld [vmem:[%s2250 + $0x58] sm:$0xf]
        %v2274 = vld [vmem:[%s2250 + $0x5c] sm:$0xf]
        %v2275 = vld [vmem:[%s2250 + $0x60] sm:$0xf]
        %v2276 = vld [vmem:[%s2250 + $0x64] sm:$0xf]
        %v2277 = vld [vmem:[%s2250 + $0x68] sm:$0xf]
        %v2278 = vld [vmem:[%s2250 + $0x6c] sm:$0xf]
        %v2279 = vld [vmem:[%s2250 + $0x70] sm:$0xf]
        %v2280 = vld [vmem:[%s2250 + $0x74] sm:$0xf]
        %v2281 = vld [vmem:[%s2250 + $0x78] sm:$0xf]
        %v2282 = vld [vmem:[%s2250 + $0x7c] sm:$0xf]
        %v2283 = vld [vmem:[%s2250 + $0x80] sm:$0xf]
        %v2284 = vld [vmem:[%s2250 + $0x84] sm:$0xf]
        %v2285 = vld [vmem:[%s2250 + $0x88] sm:$0xf]
        %v2286 = vld [vmem:[%s2250 + $0x8c] sm:$0xf]
        %v2287 = vld [vmem:[%s2250 + $0x90] sm:$0xf]
        %v2288 = vld [vmem:[%s2250 + $0x94] sm:$0xf]
        %v2289 = vld [vmem:[%s2250 + $0x98] sm:$0xf]
        %v2290 = vld [vmem:[%s2250 + $0x9c] sm:$0xf]
        %v2291 = vld [vmem:[%s2250 + $0xa0] sm:$0xf]
        %v2292 = vld [vmem:[%s2250 + $0xa4] sm:$0xf]
        %v2293 = vld [vmem:[%s2250 + $0xa8] sm:$0xf]
        %v2294 = vld [vmem:[%s2250 + $0xac] sm:$0xf]
        %v2295 = vld [vmem:[%s2250 + $0xb0] sm:$0xf]
        %v2296 = vld [vmem:[%s2250 + $0xb4] sm:$0xf]
        %v2297 = vld [vmem:[%s2250 + $0xb8] sm:$0xf]
        %v2298 = vld [vmem:[%s2250 + $0xbc] sm:$0xf]
        %v2299 = vld [vmem:[%s2250 + $0xc0] sm:$0xf]
        %v2300 = vld [vmem:[%s2250 + $0xc4] sm:$0xf]
        %v2301 = vld [vmem:[%s2250 + $0xc8] sm:$0xf]
        %v2302 = vld [vmem:[%s2250 + $0xcc] sm:$0xf]
        %v2303 = vld [vmem:[%s2250 + $0xd0] sm:$0xf]
        %v2304 = vld [vmem:[%s2250 + $0xd4] sm:$0xf]
        %v2305 = vld [vmem:[%s2250 + $0xd8] sm:$0xf]
        %v2306 = vld [vmem:[%s2250 + $0xdc] sm:$0xf]
        %v2307 = vld [vmem:[%s2250 + $0xe0] sm:$0xf]
        %v2308 = vld [vmem:[%s2250 + $0xe4] sm:$0xf]
        %v2309 = vld [vmem:[%s2250 + $0xe8] sm:$0xf]
        %v2310 = vld [vmem:[%s2250 + $0xec] sm:$0xf]
        %v2311 = vld [vmem:[%s2250 + $0xf0] sm:$0xf]
        %v2312 = vld [vmem:[%s2250 + $0xf4] sm:$0xf]
        %v2313 = vld [vmem:[%s2250 + $0xf8] sm:$0xf]
        %v2314 = vld [vmem:[%s2250 + $0xfc] sm:$0xf]
        %v2315 = vpack.c.bf16 %v2246, %v2242
        %v2316 = vpack.c.bf16 %v2247, %v2243
        %v2317 = vpack.c.bf16 %v2248, %v2244
        %v2318 = vpack.c.bf16 %v2249, %v2245
        %v2383 = vunpack.c.l.b16 %v2251
        %v2384 = vunpack.c.l.b16 %v2252
        %v2385 = vunpack.c.l.b16 %v2253
        %v2386 = vunpack.c.l.b16 %v2254
        %v2387 = vunpack.c.l.b16 %v2255
        %v2388 = vunpack.c.l.b16 %v2256
        %v2389 = vunpack.c.l.b16 %v2257
        %v2390 = vunpack.c.l.b16 %v2258
        %v2391 = vunpack.c.l.b16 %v2259
        %v2392 = vunpack.c.l.b16 %v2260
        %v2393 = vunpack.c.l.b16 %v2261
        %v2394 = vunpack.c.l.b16 %v2262
        %v2395 = vunpack.c.l.b16 %v2263
        %v2396 = vunpack.c.l.b16 %v2264
        %v2397 = vunpack.c.l.b16 %v2265
        %v2398 = vunpack.c.l.b16 %v2266
        %v2399 = vunpack.c.l.b16 %v2267
        %v2400 = vunpack.c.l.b16 %v2268
        %v2401 = vunpack.c.l.b16 %v2269
        %v2402 = vunpack.c.l.b16 %v2270
        %v2403 = vunpack.c.l.b16 %v2271
        %v2404 = vunpack.c.l.b16 %v2272
        %v2405 = vunpack.c.l.b16 %v2273
        %v2406 = vunpack.c.l.b16 %v2274
        %v2407 = vunpack.c.l.b16 %v2275
        %v2408 = vunpack.c.l.b16 %v2276
        %v2409 = vunpack.c.l.b16 %v2277
        %v2410 = vunpack.c.l.b16 %v2278
        %v2411 = vunpack.c.l.b16 %v2279
        %v2412 = vunpack.c.l.b16 %v2280
        %v2413 = vunpack.c.l.b16 %v2281
        %v2414 = vunpack.c.l.b16 %v2282
        %v2415 = vunpack.c.l.b16 %v2283
        %v2416 = vunpack.c.l.b16 %v2284
        %v2417 = vunpack.c.l.b16 %v2285
        %v2418 = vunpack.c.l.b16 %v2286
        %v2419 = vunpack.c.l.b16 %v2287
        %v2420 = vunpack.c.l.b16 %v2288
        %v2421 = vunpack.c.l.b16 %v2289
        %v2422 = vunpack.c.l.b16 %v2290
        %v2423 = vunpack.c.l.b16 %v2291
        %v2424 = vunpack.c.l.b16 %v2292
        %v2425 = vunpack.c.l.b16 %v2293
        %v2426 = vunpack.c.l.b16 %v2294
        %v2427 = vunpack.c.l.b16 %v2295
        %v2428 = vunpack.c.l.b16 %v2296
        %v2429 = vunpack.c.l.b16 %v2297
        %v2430 = vunpack.c.l.b16 %v2298
        %v2431 = vunpack.c.l.b16 %v2299
        %v2432 = vunpack.c.l.b16 %v2300
        %v2433 = vunpack.c.l.b16 %v2301
        %v2434 = vunpack.c.l.b16 %v2302
        %v2435 = vunpack.c.l.b16 %v2303
        %v2436 = vunpack.c.l.b16 %v2304
        %v2437 = vunpack.c.l.b16 %v2305
        %v2438 = vunpack.c.l.b16 %v2306
        %v2439 = vunpack.c.l.b16 %v2307
        %v2440 = vunpack.c.l.b16 %v2308
        %v2441 = vunpack.c.l.b16 %v2309
        %v2442 = vunpack.c.l.b16 %v2310
        %v2443 = vunpack.c.l.b16 %v2311
        %v2444 = vunpack.c.l.b16 %v2312
        %v2445 = vunpack.c.l.b16 %v2313
        %v2446 = vunpack.c.l.b16 %v2314
        %v2447 = vpack.c.b16 %v2384, %v2383
        %v2448 = vpack.c.b16 %v2386, %v2385
        %v2449 = vpack.c.b16 %v2388, %v2387
        %v2450 = vpack.c.b16 %v2390, %v2389
        %v2451 = vpack.c.b16 %v2392, %v2391
        %v2452 = vpack.c.b16 %v2394, %v2393
        %v2453 = vpack.c.b16 %v2396, %v2395
        %v2454 = vpack.c.b16 %v2398, %v2397
        %v2455 = vpack.c.b16 %v2400, %v2399
        %v2456 = vpack.c.b16 %v2402, %v2401
        %v2457 = vpack.c.b16 %v2404, %v2403
        %v2458 = vpack.c.b16 %v2406, %v2405
        %v2459 = vpack.c.b16 %v2408, %v2407
        %v2460 = vpack.c.b16 %v2410, %v2409
        %v2461 = vpack.c.b16 %v2412, %v2411
        %v2462 = vpack.c.b16 %v2414, %v2413
        %v2463 = vpack.c.b16 %v2416, %v2415
        %v2464 = vpack.c.b16 %v2418, %v2417
        %v2465 = vpack.c.b16 %v2420, %v2419
        %v2466 = vpack.c.b16 %v2422, %v2421
        %v2467 = vpack.c.b16 %v2424, %v2423
        %v2468 = vpack.c.b16 %v2426, %v2425
        %v2469 = vpack.c.b16 %v2428, %v2427
        %v2470 = vpack.c.b16 %v2430, %v2429
        %v2471 = vpack.c.b16 %v2432, %v2431
        %v2472 = vpack.c.b16 %v2434, %v2433
        %v2473 = vpack.c.b16 %v2436, %v2435
        %v2474 = vpack.c.b16 %v2438, %v2437
        %v2475 = vpack.c.b16 %v2440, %v2439
        %v2476 = vpack.c.b16 %v2442, %v2441
        %v2477 = vpack.c.b16 %v2444, %v2443
        %v2478 = vpack.c.b16 %v2446, %v2445
        %2511 = vmatpush.bf16.msra.mxu0 %v2454
        %2512 = vmatpush.bf16.msra.mxu0 %v2453
        %2513 = vmatpush.bf16.msra.mxu0 %v2452
        %2514 = vmatpush.bf16.msra.mxu0 %v2451
        %2515 = vmatpush.bf16.msra.mxu0 %v2450
        %2516 = vmatpush.bf16.msra.mxu0 %v2449
        %2517 = vmatpush.bf16.msra.mxu0 %v2448
        %2518 = vmatpush.bf16.msra.mxu0 %v2447
        %2519 = vmatmul.bf16.gmra.mxu0 %v2315
        %v2520 = vpop.f32.mrf.mxu0
        %v2521 = vadd.f32 0.0, %v2520
        %v2522 = vpop.f32.mrf.mxu0
        %v2523 = vadd.f32 0.0, %v2522
        %2524 = vdwg.mxu0
        %2525 = vmatpush.bf16.msra.mxu0 %v2462
        %2526 = vmatpush.bf16.msra.mxu0 %v2461
        %2527 = vmatpush.bf16.msra.mxu0 %v2460
        %2528 = vmatpush.bf16.msra.mxu0 %v2459
        %2529 = vmatpush.bf16.msra.mxu0 %v2458
        %2530 = vmatpush.bf16.msra.mxu0 %v2457
        %2531 = vmatpush.bf16.msra.mxu0 %v2456
        %2532 = vmatpush.bf16.msra.mxu0 %v2455
        %2533 = vmatmul.bf16.gmra.mxu0 %v2316
        %v2534 = vpop.f32.mrf.mxu0
        %v2535 = vadd.f32 %v2521, %v2534
        %v2536 = vpop.f32.mrf.mxu0
        %v2537 = vadd.f32 %v2523, %v2536
        %2538 = vdwg.mxu0
        %2539 = vmatpush.bf16.msra.mxu0 %v2470
        %2540 = vmatpush.bf16.msra.mxu0 %v2469
        %2541 = vmatpush.bf16.msra.mxu0 %v2468
        %2542 = vmatpush.bf16.msra.mxu0 %v2467
        %2543 = vmatpush.bf16.msra.mxu0 %v2466
        %2544 = vmatpush.bf16.msra.mxu0 %v2465
        %2545 = vmatpush.bf16.msra.mxu0 %v2464
        %2546 = vmatpush.bf16.msra.mxu0 %v2463
        %2547 = vmatmul.bf16.gmra.mxu0 %v2317
        %v2548 = vpop.f32.mrf.mxu0
        %v2549 = vadd.f32 %v2535, %v2548
        %v2550 = vpop.f32.mrf.mxu0
        %v2551 = vadd.f32 %v2537, %v2550
        %2552 = vdwg.mxu0
        %2553 = vmatpush.bf16.msra.mxu0 %v2478
        %2554 = vmatpush.bf16.msra.mxu0 %v2477
        %2555 = vmatpush.bf16.msra.mxu0 %v2476
        %2556 = vmatpush.bf16.msra.mxu0 %v2475
        %2557 = vmatpush.bf16.msra.mxu0 %v2474
        %2558 = vmatpush.bf16.msra.mxu0 %v2473
        %2559 = vmatpush.bf16.msra.mxu0 %v2472
        %2560 = vmatpush.bf16.msra.mxu0 %v2471
        %2561 = vmatmul.bf16.gmra.mxu0 %v2318
        %v2562 = vpop.f32.mrf.mxu0
        %v2563 = vadd.f32 %v2549, %v2562
        %v2564 = vpop.f32.mrf.mxu0
        %v2565 = vadd.f32 %v2551, %v2564
        %2566 = vdwg.mxu0
        %v2631 = vunpack.c.l.b16 %v2010
        %v2632 = vunpack.c.l.b16 %v2011
        %v2633 = vunpack.c.l.b16 %v2012
        %v2634 = vunpack.c.l.b16 %v2013
        %v2635 = vunpack.c.l.b16 %v2014
        %v2636 = vunpack.c.l.b16 %v2015
        %v2637 = vunpack.c.l.b16 %v2016
        %v2638 = vunpack.c.l.b16 %v2017
        %v2639 = vunpack.c.l.b16 %v2018
        %v2640 = vunpack.c.l.b16 %v2019
        %v2641 = vunpack.c.l.b16 %v2020
        %v2642 = vunpack.c.l.b16 %v2021
        %v2643 = vunpack.c.l.b16 %v2022
        %v2644 = vunpack.c.l.b16 %v2023
        %v2645 = vunpack.c.l.b16 %v2024
        %v2646 = vunpack.c.l.b16 %v2025
        %v2647 = vunpack.c.l.b16 %v2026
        %v2648 = vunpack.c.l.b16 %v2027
        %v2649 = vunpack.c.l.b16 %v2028
        %v2650 = vunpack.c.l.b16 %v2029
        %v2651 = vunpack.c.l.b16 %v2030
        %v2652 = vunpack.c.l.b16 %v2031
        %v2653 = vunpack.c.l.b16 %v2032
        %v2654 = vunpack.c.l.b16 %v2033
        %v2655 = vunpack.c.l.b16 %v2034
        %v2656 = vunpack.c.l.b16 %v2035
        %v2657 = vunpack.c.l.b16 %v2036
        %v2658 = vunpack.c.l.b16 %v2037
        %v2659 = vunpack.c.l.b16 %v2038
        %v2660 = vunpack.c.l.b16 %v2039
        %v2661 = vunpack.c.l.b16 %v2040
        %v2662 = vunpack.c.l.b16 %v2041
        %v2663 = vunpack.c.l.b16 %v2042
        %v2664 = vunpack.c.l.b16 %v2043
        %v2665 = vunpack.c.l.b16 %v2044
        %v2666 = vunpack.c.l.b16 %v2045
        %v2667 = vunpack.c.l.b16 %v2046
        %v2668 = vunpack.c.l.b16 %v2047
        %v2669 = vunpack.c.l.b16 %v2048
        %v2670 = vunpack.c.l.b16 %v2049
        %v2671 = vunpack.c.l.b16 %v2050
        %v2672 = vunpack.c.l.b16 %v2051
        %v2673 = vunpack.c.l.b16 %v2052
        %v2674 = vunpack.c.l.b16 %v2053
        %v2675 = vunpack.c.l.b16 %v2054
        %v2676 = vunpack.c.l.b16 %v2055
        %v2677 = vunpack.c.l.b16 %v2056
        %v2678 = vunpack.c.l.b16 %v2057
        %v2679 = vunpack.c.l.b16 %v2058
        %v2680 = vunpack.c.l.b16 %v2059
        %v2681 = vunpack.c.l.b16 %v2060
        %v2682 = vunpack.c.l.b16 %v2061
        %v2683 = vunpack.c.l.b16 %v2062
        %v2684 = vunpack.c.l.b16 %v2063
        %v2685 = vunpack.c.l.b16 %v2064
        %v2686 = vunpack.c.l.b16 %v2065
        %v2687 = vunpack.c.l.b16 %v2066
        %v2688 = vunpack.c.l.b16 %v2067
        %v2689 = vunpack.c.l.b16 %v2068
        %v2690 = vunpack.c.l.b16 %v2069
        %v2691 = vunpack.c.l.b16 %v2070
        %v2692 = vunpack.c.l.b16 %v2071
        %v2693 = vunpack.c.l.b16 %v2072
        %v2694 = vunpack.c.l.b16 %v2073
        %v2695 = vpack.c.b16 %v2632, %v2631
        %v2696 = vpack.c.b16 %v2634, %v2633
        %v2697 = vpack.c.b16 %v2636, %v2635
        %v2698 = vpack.c.b16 %v2638, %v2637
        %v2699 = vpack.c.b16 %v2640, %v2639
        %v2700 = vpack.c.b16 %v2642, %v2641
        %v2701 = vpack.c.b16 %v2644, %v2643
        %v2702 = vpack.c.b16 %v2646, %v2645
        %v2703 = vpack.c.b16 %v2648, %v2647
        %v2704 = vpack.c.b16 %v2650, %v2649
        %v2705 = vpack.c.b16 %v2652, %v2651
        %v2706 = vpack.c.b16 %v2654, %v2653
        %v2707 = vpack.c.b16 %v2656, %v2655
        %v2708 = vpack.c.b16 %v2658, %v2657
        %v2709 = vpack.c.b16 %v2660, %v2659
        %v2710 = vpack.c.b16 %v2662, %v2661
        %v2711 = vpack.c.b16 %v2664, %v2663
        %v2712 = vpack.c.b16 %v2666, %v2665
        %v2713 = vpack.c.b16 %v2668, %v2667
        %v2714 = vpack.c.b16 %v2670, %v2669
        %v2715 = vpack.c.b16 %v2672, %v2671
        %v2716 = vpack.c.b16 %v2674, %v2673
        %v2717 = vpack.c.b16 %v2676, %v2675
        %v2718 = vpack.c.b16 %v2678, %v2677
        %v2719 = vpack.c.b16 %v2680, %v2679
        %v2720 = vpack.c.b16 %v2682, %v2681
        %v2721 = vpack.c.b16 %v2684, %v2683
        %v2722 = vpack.c.b16 %v2686, %v2685
        %v2723 = vpack.c.b16 %v2688, %v2687
        %v2724 = vpack.c.b16 %v2690, %v2689
        %v2725 = vpack.c.b16 %v2692, %v2691
        %v2726 = vpack.c.b16 %v2694, %v2693
        %2759 = vmatpush.bf16.msra.mxu0 %v2702
        %2760 = vmatpush.bf16.msra.mxu0 %v2701
        %2761 = vmatpush.bf16.msra.mxu0 %v2700
        %2762 = vmatpush.bf16.msra.mxu0 %v2699
        %2763 = vmatpush.bf16.msra.mxu0 %v2698
        %2764 = vmatpush.bf16.msra.mxu0 %v2697
        %2765 = vmatpush.bf16.msra.mxu0 %v2696
        %2766 = vmatpush.bf16.msra.mxu0 %v2695
        %2767 = vmatmul.bf16.gmra.mxu0 %v2074
        %v2768 = vpop.f32.mrf.mxu0
        %v2769 = vadd.f32 %v2563, %v2768
        %v2770 = vpop.f32.mrf.mxu0
        %v2771 = vadd.f32 %v2565, %v2770
        %2772 = vdwg.mxu0
        %2773 = vmatpush.bf16.msra.mxu0 %v2710
        %2774 = vmatpush.bf16.msra.mxu0 %v2709
        %2775 = vmatpush.bf16.msra.mxu0 %v2708
        %2776 = vmatpush.bf16.msra.mxu0 %v2707
        %2777 = vmatpush.bf16.msra.mxu0 %v2706
        %2778 = vmatpush.bf16.msra.mxu0 %v2705
        %2779 = vmatpush.bf16.msra.mxu0 %v2704
        %2780 = vmatpush.bf16.msra.mxu0 %v2703
        %2781 = vmatmul.bf16.gmra.mxu0 %v2075
        %v2782 = vpop.f32.mrf.mxu0
        %v2783 = vadd.f32 %v2769, %v2782
        %v2784 = vpop.f32.mrf.mxu0
        %v2785 = vadd.f32 %v2771, %v2784
        %2786 = vdwg.mxu0
        %2787 = vmatpush.bf16.msra.mxu0 %v2718
        %2788 = vmatpush.bf16.msra.mxu0 %v2717
        %2789 = vmatpush.bf16.msra.mxu0 %v2716
        %2790 = vmatpush.bf16.msra.mxu0 %v2715
        %2791 = vmatpush.bf16.msra.mxu0 %v2714
        %2792 = vmatpush.bf16.msra.mxu0 %v2713
        %2793 = vmatpush.bf16.msra.mxu0 %v2712
        %2794 = vmatpush.bf16.msra.mxu0 %v2711
        %2795 = vmatmul.bf16.gmra.mxu0 %v2076
        %v2796 = vpop.f32.mrf.mxu0
        %v2797 = vadd.f32 %v2783, %v2796
        %v2798 = vpop.f32.mrf.mxu0
        %v2799 = vadd.f32 %v2785, %v2798
        %2800 = vdwg.mxu0
        %2801 = vmatpush.bf16.msra.mxu0 %v2726
        %2802 = vmatpush.bf16.msra.mxu0 %v2725
        %2803 = vmatpush.bf16.msra.mxu0 %v2724
        %2804 = vmatpush.bf16.msra.mxu0 %v2723
        %2805 = vmatpush.bf16.msra.mxu0 %v2722
        %2806 = vmatpush.bf16.msra.mxu0 %v2721
        %2807 = vmatpush.bf16.msra.mxu0 %v2720
        %2808 = vmatpush.bf16.msra.mxu0 %v2719
        %2809 = vmatmul.bf16.gmra.mxu0 %v2077
        %v2810 = vpop.f32.mrf.mxu0
        %v2811 = vadd.f32 %v2797, %v2810
        %v2812 = vpop.f32.mrf.mxu0
        %v2813 = vadd.f32 %v2799, %v2812
        %2814 = vdwg.mxu0
        %s2815 = scalar_lea.vmem %s630, 32
        %v2816 = vld [vmem:[%s2815] sm:$0xff]
        %v2817 = vld [vmem:[%s2815 + $0x8] sm:$0xff]
        %v2818 = vld [vmem:[%s2815 + $0x40] sm:$0xff]
        %v2819 = vld [vmem:[%s2815 + $0x48] sm:$0xff]
        %v2820 = vld [vmem:[%s2815 + $0x80] sm:$0xff]
        %v2821 = vld [vmem:[%s2815 + $0x88] sm:$0xff]
        %v2822 = vld [vmem:[%s2815 + $0xc0] sm:$0xff]
        %v2823 = vld [vmem:[%s2815 + $0xc8] sm:$0xff]
        %v2824 = vld [vmem:[%s2815 + $0x100] sm:$0xff]
        %v2825 = vld [vmem:[%s2815 + $0x108] sm:$0xff]
        %v2826 = vld [vmem:[%s2815 + $0x140] sm:$0xff]
        %v2827 = vld [vmem:[%s2815 + $0x148] sm:$0xff]
        %v2828 = vld [vmem:[%s2815 + $0x180] sm:$0xff]
        %v2829 = vld [vmem:[%s2815 + $0x188] sm:$0xff]
        %v2830 = vld [vmem:[%s2815 + $0x1c0] sm:$0xff]
        %v2831 = vld [vmem:[%s2815 + $0x1c8] sm:$0xff]
        %s2832 = scalar_lea.vmem %s634, 8
        %v2833 = vld [vmem:[%s2832] sm:$0xf]
        %v2835 = vperm.slane %v2833, 0
        %v2836 = vperm.slane %v2833, 1
        %v2837 = vperm.slane %v2833, 2
        %v2838 = vperm.slane %v2833, 3
        %v2859 = vunpack.c.l.b16 %v2816
        %v2860 = vunpack.c.h.b16 %v2816
        %v2861 = vunpack.c.l.b16 %v2817
        %v2862 = vunpack.c.h.b16 %v2817
        %v2863 = vunpack.c.l.b16 %v2818
        %v2864 = vunpack.c.h.b16 %v2818
        %v2865 = vunpack.c.l.b16 %v2819
        %v2866 = vunpack.c.h.b16 %v2819
        %v2867 = vunpack.c.l.b16 %v2820
        %v2868 = vunpack.c.h.b16 %v2820
        %v2869 = vunpack.c.l.b16 %v2821
        %v2870 = vunpack.c.h.b16 %v2821
        %v2871 = vunpack.c.l.b16 %v2822
        %v2872 = vunpack.c.h.b16 %v2822
        %v2873 = vunpack.c.l.b16 %v2823
        %v2874 = vunpack.c.h.b16 %v2823
        %v2875 = vunpack.c.l.b16 %v2824
        %v2876 = vunpack.c.h.b16 %v2824
        %v2877 = vunpack.c.l.b16 %v2825
        %v2878 = vunpack.c.h.b16 %v2825
        %v2879 = vunpack.c.l.b16 %v2826
        %v2880 = vunpack.c.h.b16 %v2826
        %v2881 = vunpack.c.l.b16 %v2827
        %v2882 = vunpack.c.h.b16 %v2827
        %v2883 = vunpack.c.l.b16 %v2828
        %v2884 = vunpack.c.h.b16 %v2828
        %v2885 = vunpack.c.l.b16 %v2829
        %v2886 = vunpack.c.h.b16 %v2829
        %v2887 = vunpack.c.l.b16 %v2830
        %v2888 = vunpack.c.h.b16 %v2830
        %v2889 = vunpack.c.l.b16 %v2831
        %v2890 = vunpack.c.h.b16 %v2831
        %v2891 = vpack.c.b16 %v2863, %v2859
        %v2892 = vpack.c.b16 %v2864, %v2860
        %v2893 = vpack.c.b16 %v2865, %v2861
        %v2894 = vpack.c.b16 %v2866, %v2862
        %v2895 = vpack.c.b16 %v2871, %v2867
        %v2896 = vpack.c.b16 %v2872, %v2868
        %v2897 = vpack.c.b16 %v2873, %v2869
        %v2898 = vpack.c.b16 %v2874, %v2870
        %v2899 = vpack.c.b16 %v2879, %v2875
        %v2900 = vpack.c.b16 %v2880, %v2876
        %v2901 = vpack.c.b16 %v2881, %v2877
        %v2902 = vpack.c.b16 %v2882, %v2878
        %v2903 = vpack.c.b16 %v2887, %v2883
        %v2904 = vpack.c.b16 %v2888, %v2884
        %v2905 = vpack.c.b16 %v2889, %v2885
        %v2906 = vpack.c.b16 %v2890, %v2886
        %2923 = vmatpush.bf16.msra.mxu0 0
        %2924 = vmatpush.bf16.msra.mxu0 0
        %2925 = vmatpush.bf16.msra.mxu0 0
        %2926 = vmatpush.bf16.msra.mxu0 0
        %2927 = vmatpush.bf16.msra.mxu0 %v2903
        %2928 = vmatpush.bf16.msra.mxu0 %v2899
        %2929 = vmatpush.bf16.msra.mxu0 %v2895
        %2930 = vmatpush.bf16.msra.mxu0 %v2891
        %2931 = vmatmul.bf16.gmra.mxu0 %v1944
        %v2932 = vpop.f32.mrf.mxu0
        %v2933 = vadd.f32 %v2835, %v2932
        %v2934 = vpop.f32.mrf.mxu0
        %v2935 = vadd.f32 %v2835, %v2934
        %2936 = vdwg.mxu0
        %2937 = vmatpush.bf16.msra.mxu0 0
        %2938 = vmatpush.bf16.msra.mxu0 0
        %2939 = vmatpush.bf16.msra.mxu0 0
        %2940 = vmatpush.bf16.msra.mxu0 0
        %2941 = vmatpush.bf16.msra.mxu0 %v2904
        %2942 = vmatpush.bf16.msra.mxu0 %v2900
        %2943 = vmatpush.bf16.msra.mxu0 %v2896
        %2944 = vmatpush.bf16.msra.mxu0 %v2892
        %2945 = vmatmul.bf16.gmra.mxu0 %v1944
        %v2946 = vpop.f32.mrf.mxu0
        %v2947 = vadd.f32 %v2836, %v2946
        %v2948 = vpop.f32.mrf.mxu0
        %v2949 = vadd.f32 %v2836, %v2948
        %2950 = vdwg.mxu0
        %2951 = vmatpush.bf16.msra.mxu0 0
        %2952 = vmatpush.bf16.msra.mxu0 0
        %2953 = vmatpush.bf16.msra.mxu0 0
        %2954 = vmatpush.bf16.msra.mxu0 0
        %2955 = vmatpush.bf16.msra.mxu0 %v2905
        %2956 = vmatpush.bf16.msra.mxu0 %v2901
        %2957 = vmatpush.bf16.msra.mxu0 %v2897
        %2958 = vmatpush.bf16.msra.mxu0 %v2893
        %2959 = vmatmul.bf16.gmra.mxu0 %v1944
        %v2960 = vpop.f32.mrf.mxu0
        %v2961 = vadd.f32 %v2837, %v2960
        %v2962 = vpop.f32.mrf.mxu0
        %v2963 = vadd.f32 %v2837, %v2962
        %2964 = vdwg.mxu0
        %2965 = vmatpush.bf16.msra.mxu0 0
        %2966 = vmatpush.bf16.msra.mxu0 0
        %2967 = vmatpush.bf16.msra.mxu0 0
        %2968 = vmatpush.bf16.msra.mxu0 0
        %2969 = vmatpush.bf16.msra.mxu0 %v2906
        %2970 = vmatpush.bf16.msra.mxu0 %v2902
        %2971 = vmatpush.bf16.msra.mxu0 %v2898
        %2972 = vmatpush.bf16.msra.mxu0 %v2894
        %2973 = vmatmul.bf16.gmra.mxu0 %v1944
        %v2974 = vpop.f32.mrf.mxu0
        %v2975 = vadd.f32 %v2838, %v2974
        %v2976 = vpop.f32.mrf.mxu0
        %v2977 = vadd.f32 %v2838, %v2976
        %2978 = vdwg.mxu0
        %v2979 = vmax.f32 %v2933, 0.0
        %v2980 = vmax.f32 %v2947, 0.0
        %v2981 = vmax.f32 %v2961, 0.0
        %v2982 = vmax.f32 %v2975, 0.0
        %v2983 = vmax.f32 %v2935, 0.0
        %v2984 = vmax.f32 %v2949, 0.0
        %v2985 = vmax.f32 %v2963, 0.0
        %v2986 = vmax.f32 %v2977, 0.0
        %s2987 = scalar_lea.vmem %s639, 512
        %v2988 = vld [vmem:[%s2987] sm:$0xf]
        %v2989 = vld [vmem:[%s2987 + $0x4] sm:$0xf]
        %v2990 = vld [vmem:[%s2987 + $0x8] sm:$0xf]
        %v2991 = vld [vmem:[%s2987 + $0xc] sm:$0xf]
        %v2992 = vld [vmem:[%s2987 + $0x10] sm:$0xf]
        %v2993 = vld [vmem:[%s2987 + $0x14] sm:$0xf]
        %v2994 = vld [vmem:[%s2987 + $0x18] sm:$0xf]
        %v2995 = vld [vmem:[%s2987 + $0x1c] sm:$0xf]
        %v2996 = vld [vmem:[%s2987 + $0x20] sm:$0xf]
        %v2997 = vld [vmem:[%s2987 + $0x24] sm:$0xf]
        %v2998 = vld [vmem:[%s2987 + $0x28] sm:$0xf]
        %v2999 = vld [vmem:[%s2987 + $0x2c] sm:$0xf]
        %v3000 = vld [vmem:[%s2987 + $0x30] sm:$0xf]
        %v3001 = vld [vmem:[%s2987 + $0x34] sm:$0xf]
        %v3002 = vld [vmem:[%s2987 + $0x38] sm:$0xf]
        %v3003 = vld [vmem:[%s2987 + $0x3c] sm:$0xf]
        %v3004 = vld [vmem:[%s2987 + $0x40] sm:$0xf]
        %v3005 = vld [vmem:[%s2987 + $0x44] sm:$0xf]
        %v3006 = vld [vmem:[%s2987 + $0x48] sm:$0xf]
        %v3007 = vld [vmem:[%s2987 + $0x4c] sm:$0xf]
        %v3008 = vld [vmem:[%s2987 + $0x50] sm:$0xf]
        %v3009 = vld [vmem:[%s2987 + $0x54] sm:$0xf]
        %v3010 = vld [vmem:[%s2987 + $0x58] sm:$0xf]
        %v3011 = vld [vmem:[%s2987 + $0x5c] sm:$0xf]
        %v3012 = vld [vmem:[%s2987 + $0x60] sm:$0xf]
        %v3013 = vld [vmem:[%s2987 + $0x64] sm:$0xf]
        %v3014 = vld [vmem:[%s2987 + $0x68] sm:$0xf]
        %v3015 = vld [vmem:[%s2987 + $0x6c] sm:$0xf]
        %v3016 = vld [vmem:[%s2987 + $0x70] sm:$0xf]
        %v3017 = vld [vmem:[%s2987 + $0x74] sm:$0xf]
        %v3018 = vld [vmem:[%s2987 + $0x78] sm:$0xf]
        %v3019 = vld [vmem:[%s2987 + $0x7c] sm:$0xf]
        %v3020 = vld [vmem:[%s2987 + $0x80] sm:$0xf]
        %v3021 = vld [vmem:[%s2987 + $0x84] sm:$0xf]
        %v3022 = vld [vmem:[%s2987 + $0x88] sm:$0xf]
        %v3023 = vld [vmem:[%s2987 + $0x8c] sm:$0xf]
        %v3024 = vld [vmem:[%s2987 + $0x90] sm:$0xf]
        %v3025 = vld [vmem:[%s2987 + $0x94] sm:$0xf]
        %v3026 = vld [vmem:[%s2987 + $0x98] sm:$0xf]
        %v3027 = vld [vmem:[%s2987 + $0x9c] sm:$0xf]
        %v3028 = vld [vmem:[%s2987 + $0xa0] sm:$0xf]
        %v3029 = vld [vmem:[%s2987 + $0xa4] sm:$0xf]
        %v3030 = vld [vmem:[%s2987 + $0xa8] sm:$0xf]
        %v3031 = vld [vmem:[%s2987 + $0xac] sm:$0xf]
        %v3032 = vld [vmem:[%s2987 + $0xb0] sm:$0xf]
        %v3033 = vld [vmem:[%s2987 + $0xb4] sm:$0xf]
        %v3034 = vld [vmem:[%s2987 + $0xb8] sm:$0xf]
        %v3035 = vld [vmem:[%s2987 + $0xbc] sm:$0xf]
        %v3036 = vld [vmem:[%s2987 + $0xc0] sm:$0xf]
        %v3037 = vld [vmem:[%s2987 + $0xc4] sm:$0xf]
        %v3038 = vld [vmem:[%s2987 + $0xc8] sm:$0xf]
        %v3039 = vld [vmem:[%s2987 + $0xcc] sm:$0xf]
        %v3040 = vld [vmem:[%s2987 + $0xd0] sm:$0xf]
        %v3041 = vld [vmem:[%s2987 + $0xd4] sm:$0xf]
        %v3042 = vld [vmem:[%s2987 + $0xd8] sm:$0xf]
        %v3043 = vld [vmem:[%s2987 + $0xdc] sm:$0xf]
        %v3044 = vld [vmem:[%s2987 + $0xe0] sm:$0xf]
        %v3045 = vld [vmem:[%s2987 + $0xe4] sm:$0xf]
        %v3046 = vld [vmem:[%s2987 + $0xe8] sm:$0xf]
        %v3047 = vld [vmem:[%s2987 + $0xec] sm:$0xf]
        %v3048 = vld [vmem:[%s2987 + $0xf0] sm:$0xf]
        %v3049 = vld [vmem:[%s2987 + $0xf4] sm:$0xf]
        %v3050 = vld [vmem:[%s2987 + $0xf8] sm:$0xf]
        %v3051 = vld [vmem:[%s2987 + $0xfc] sm:$0xf]
        %v3052 = vpack.c.bf16 %v2983, %v2979
        %v3053 = vpack.c.bf16 %v2984, %v2980
        %v3054 = vpack.c.bf16 %v2985, %v2981
        %v3055 = vpack.c.bf16 %v2986, %v2982
        %v3120 = vunpack.c.l.b16 %v2988
        %v3121 = vunpack.c.l.b16 %v2989
        %v3122 = vunpack.c.l.b16 %v2990
        %v3123 = vunpack.c.l.b16 %v2991
        %v3124 = vunpack.c.l.b16 %v2992
        %v3125 = vunpack.c.l.b16 %v2993
        %v3126 = vunpack.c.l.b16 %v2994
        %v3127 = vunpack.c.l.b16 %v2995
        %v3128 = vunpack.c.l.b16 %v2996
        %v3129 = vunpack.c.l.b16 %v2997
        %v3130 = vunpack.c.l.b16 %v2998
        %v3131 = vunpack.c.l.b16 %v2999
        %v3132 = vunpack.c.l.b16 %v3000
        %v3133 = vunpack.c.l.b16 %v3001
        %v3134 = vunpack.c.l.b16 %v3002
        %v3135 = vunpack.c.l.b16 %v3003
        %v3136 = vunpack.c.l.b16 %v3004
        %v3137 = vunpack.c.l.b16 %v3005
        %v3138 = vunpack.c.l.b16 %v3006
        %v3139 = vunpack.c.l.b16 %v3007
        %v3140 = vunpack.c.l.b16 %v3008
        %v3141 = vunpack.c.l.b16 %v3009
        %v3142 = vunpack.c.l.b16 %v3010
        %v3143 = vunpack.c.l.b16 %v3011
        %v3144 = vunpack.c.l.b16 %v3012
        %v3145 = vunpack.c.l.b16 %v3013
        %v3146 = vunpack.c.l.b16 %v3014
        %v3147 = vunpack.c.l.b16 %v3015
        %v3148 = vunpack.c.l.b16 %v3016
        %v3149 = vunpack.c.l.b16 %v3017
        %v3150 = vunpack.c.l.b16 %v3018
        %v3151 = vunpack.c.l.b16 %v3019
        %v3152 = vunpack.c.l.b16 %v3020
        %v3153 = vunpack.c.l.b16 %v3021
        %v3154 = vunpack.c.l.b16 %v3022
        %v3155 = vunpack.c.l.b16 %v3023
        %v3156 = vunpack.c.l.b16 %v3024
        %v3157 = vunpack.c.l.b16 %v3025
        %v3158 = vunpack.c.l.b16 %v3026
        %v3159 = vunpack.c.l.b16 %v3027
        %v3160 = vunpack.c.l.b16 %v3028
        %v3161 = vunpack.c.l.b16 %v3029
        %v3162 = vunpack.c.l.b16 %v3030
        %v3163 = vunpack.c.l.b16 %v3031
        %v3164 = vunpack.c.l.b16 %v3032
        %v3165 = vunpack.c.l.b16 %v3033
        %v3166 = vunpack.c.l.b16 %v3034
        %v3167 = vunpack.c.l.b16 %v3035
        %v3168 = vunpack.c.l.b16 %v3036
        %v3169 = vunpack.c.l.b16 %v3037
        %v3170 = vunpack.c.l.b16 %v3038
        %v3171 = vunpack.c.l.b16 %v3039
        %v3172 = vunpack.c.l.b16 %v3040
        %v3173 = vunpack.c.l.b16 %v3041
        %v3174 = vunpack.c.l.b16 %v3042
        %v3175 = vunpack.c.l.b16 %v3043
        %v3176 = vunpack.c.l.b16 %v3044
        %v3177 = vunpack.c.l.b16 %v3045
        %v3178 = vunpack.c.l.b16 %v3046
        %v3179 = vunpack.c.l.b16 %v3047
        %v3180 = vunpack.c.l.b16 %v3048
        %v3181 = vunpack.c.l.b16 %v3049
        %v3182 = vunpack.c.l.b16 %v3050
        %v3183 = vunpack.c.l.b16 %v3051
        %v3184 = vpack.c.b16 %v3121, %v3120
        %v3185 = vpack.c.b16 %v3123, %v3122
        %v3186 = vpack.c.b16 %v3125, %v3124
        %v3187 = vpack.c.b16 %v3127, %v3126
        %v3188 = vpack.c.b16 %v3129, %v3128
        %v3189 = vpack.c.b16 %v3131, %v3130
        %v3190 = vpack.c.b16 %v3133, %v3132
        %v3191 = vpack.c.b16 %v3135, %v3134
        %v3192 = vpack.c.b16 %v3137, %v3136
        %v3193 = vpack.c.b16 %v3139, %v3138
        %v3194 = vpack.c.b16 %v3141, %v3140
        %v3195 = vpack.c.b16 %v3143, %v3142
        %v3196 = vpack.c.b16 %v3145, %v3144
        %v3197 = vpack.c.b16 %v3147, %v3146
        %v3198 = vpack.c.b16 %v3149, %v3148
        %v3199 = vpack.c.b16 %v3151, %v3150
        %v3200 = vpack.c.b16 %v3153, %v3152
        %v3201 = vpack.c.b16 %v3155, %v3154
        %v3202 = vpack.c.b16 %v3157, %v3156
        %v3203 = vpack.c.b16 %v3159, %v3158
        %v3204 = vpack.c.b16 %v3161, %v3160
        %v3205 = vpack.c.b16 %v3163, %v3162
        %v3206 = vpack.c.b16 %v3165, %v3164
        %v3207 = vpack.c.b16 %v3167, %v3166
        %v3208 = vpack.c.b16 %v3169, %v3168
        %v3209 = vpack.c.b16 %v3171, %v3170
        %v3210 = vpack.c.b16 %v3173, %v3172
        %v3211 = vpack.c.b16 %v3175, %v3174
        %v3212 = vpack.c.b16 %v3177, %v3176
        %v3213 = vpack.c.b16 %v3179, %v3178
        %v3214 = vpack.c.b16 %v3181, %v3180
        %v3215 = vpack.c.b16 %v3183, %v3182
        %3248 = vmatpush.bf16.msra.mxu0 %v3191
        %3249 = vmatpush.bf16.msra.mxu0 %v3190
        %3250 = vmatpush.bf16.msra.mxu0 %v3189
        %3251 = vmatpush.bf16.msra.mxu0 %v3188
        %3252 = vmatpush.bf16.msra.mxu0 %v3187
        %3253 = vmatpush.bf16.msra.mxu0 %v3186
        %3254 = vmatpush.bf16.msra.mxu0 %v3185
        %3255 = vmatpush.bf16.msra.mxu0 %v3184
        %3256 = vmatmul.bf16.gmra.mxu0 %v3052
        %v3257 = vpop.f32.mrf.mxu0
        %v3258 = vadd.f32 0.0, %v3257
        %v3259 = vpop.f32.mrf.mxu0
        %v3260 = vadd.f32 0.0, %v3259
        %3261 = vdwg.mxu0
        %3262 = vmatpush.bf16.msra.mxu0 %v3199
        %3263 = vmatpush.bf16.msra.mxu0 %v3198
        %3264 = vmatpush.bf16.msra.mxu0 %v3197
        %3265 = vmatpush.bf16.msra.mxu0 %v3196
        %3266 = vmatpush.bf16.msra.mxu0 %v3195
        %3267 = vmatpush.bf16.msra.mxu0 %v3194
        %3268 = vmatpush.bf16.msra.mxu0 %v3193
        %3269 = vmatpush.bf16.msra.mxu0 %v3192
        %3270 = vmatmul.bf16.gmra.mxu0 %v3053
        %v3271 = vpop.f32.mrf.mxu0
        %v3272 = vadd.f32 %v3258, %v3271
        %v3273 = vpop.f32.mrf.mxu0
        %v3274 = vadd.f32 %v3260, %v3273
        %3275 = vdwg.mxu0
        %3276 = vmatpush.bf16.msra.mxu0 %v3207
        %3277 = vmatpush.bf16.msra.mxu0 %v3206
        %3278 = vmatpush.bf16.msra.mxu0 %v3205
        %3279 = vmatpush.bf16.msra.mxu0 %v3204
        %3280 = vmatpush.bf16.msra.mxu0 %v3203
        %3281 = vmatpush.bf16.msra.mxu0 %v3202
        %3282 = vmatpush.bf16.msra.mxu0 %v3201
        %3283 = vmatpush.bf16.msra.mxu0 %v3200
        %3284 = vmatmul.bf16.gmra.mxu0 %v3054
        %v3285 = vpop.f32.mrf.mxu0
        %v3286 = vadd.f32 %v3272, %v3285
        %v3287 = vpop.f32.mrf.mxu0
        %v3288 = vadd.f32 %v3274, %v3287
        %3289 = vdwg.mxu0
        %3290 = vmatpush.bf16.msra.mxu0 %v3215
        %3291 = vmatpush.bf16.msra.mxu0 %v3214
        %3292 = vmatpush.bf16.msra.mxu0 %v3213
        %3293 = vmatpush.bf16.msra.mxu0 %v3212
        %3294 = vmatpush.bf16.msra.mxu0 %v3211
        %3295 = vmatpush.bf16.msra.mxu0 %v3210
        %3296 = vmatpush.bf16.msra.mxu0 %v3209
        %3297 = vmatpush.bf16.msra.mxu0 %v3208
        %3298 = vmatmul.bf16.gmra.mxu0 %v3055
        %v3299 = vpop.f32.mrf.mxu0
        %v3300 = vadd.f32 %v3286, %v3299
        %v3301 = vpop.f32.mrf.mxu0
        %v3302 = vadd.f32 %v3288, %v3301
        %3303 = vdwg.mxu0
        %v3304 = vadd.f32 %v2811, %v3300
        %v3305 = vadd.f32 %v2813, %v3302
        %s3306 = scalar_lea.vmem %s630, 48
        %v3307 = vld [vmem:[%s3306] sm:$0xff]
        %v3308 = vld [vmem:[%s3306 + $0x8] sm:$0xff]
        %v3309 = vld [vmem:[%s3306 + $0x40] sm:$0xff]
        %v3310 = vld [vmem:[%s3306 + $0x48] sm:$0xff]
        %v3311 = vld [vmem:[%s3306 + $0x80] sm:$0xff]
        %v3312 = vld [vmem:[%s3306 + $0x88] sm:$0xff]
        %v3313 = vld [vmem:[%s3306 + $0xc0] sm:$0xff]
        %v3314 = vld [vmem:[%s3306 + $0xc8] sm:$0xff]
        %v3315 = vld [vmem:[%s3306 + $0x100] sm:$0xff]
        %v3316 = vld [vmem:[%s3306 + $0x108] sm:$0xff]
        %v3317 = vld [vmem:[%s3306 + $0x140] sm:$0xff]
        %v3318 = vld [vmem:[%s3306 + $0x148] sm:$0xff]
        %v3319 = vld [vmem:[%s3306 + $0x180] sm:$0xff]
        %v3320 = vld [vmem:[%s3306 + $0x188] sm:$0xff]
        %v3321 = vld [vmem:[%s3306 + $0x1c0] sm:$0xff]
        %v3322 = vld [vmem:[%s3306 + $0x1c8] sm:$0xff]
        %s3323 = scalar_lea.vmem %s634, 12
        %v3324 = vld [vmem:[%s3323] sm:$0xf]
        %v3326 = vperm.slane %v3324, 0
        %v3327 = vperm.slane %v3324, 1
        %v3328 = vperm.slane %v3324, 2
        %v3329 = vperm.slane %v3324, 3
        %v3350 = vunpack.c.l.b16 %v3307
        %v3351 = vunpack.c.h.b16 %v3307
        %v3352 = vunpack.c.l.b16 %v3308
        %v3353 = vunpack.c.h.b16 %v3308
        %v3354 = vunpack.c.l.b16 %v3309
        %v3355 = vunpack.c.h.b16 %v3309
        %v3356 = vunpack.c.l.b16 %v3310
        %v3357 = vunpack.c.h.b16 %v3310
        %v3358 = vunpack.c.l.b16 %v3311
        %v3359 = vunpack.c.h.b16 %v3311
        %v3360 = vunpack.c.l.b16 %v3312
        %v3361 = vunpack.c.h.b16 %v3312
        %v3362 = vunpack.c.l.b16 %v3313
        %v3363 = vunpack.c.h.b16 %v3313
        %v3364 = vunpack.c.l.b16 %v3314
        %v3365 = vunpack.c.h.b16 %v3314
        %v3366 = vunpack.c.l.b16 %v3315
        %v3367 = vunpack.c.h.b16 %v3315
        %v3368 = vunpack.c.l.b16 %v3316
        %v3369 = vunpack.c.h.b16 %v3316
        %v3370 = vunpack.c.l.b16 %v3317
        %v3371 = vunpack.c.h.b16 %v3317
        %v3372 = vunpack.c.l.b16 %v3318
        %v3373 = vunpack.c.h.b16 %v3318
        %v3374 = vunpack.c.l.b16 %v3319
        %v3375 = vunpack.c.h.b16 %v3319
        %v3376 = vunpack.c.l.b16 %v3320
        %v3377 = vunpack.c.h.b16 %v3320
        %v3378 = vunpack.c.l.b16 %v3321
        %v3379 = vunpack.c.h.b16 %v3321
        %v3380 = vunpack.c.l.b16 %v3322
        %v3381 = vunpack.c.h.b16 %v3322
        %v3382 = vpack.c.b16 %v3354, %v3350
        %v3383 = vpack.c.b16 %v3355, %v3351
        %v3384 = vpack.c.b16 %v3356, %v3352
        %v3385 = vpack.c.b16 %v3357, %v3353
        %v3386 = vpack.c.b16 %v3362, %v3358
        %v3387 = vpack.c.b16 %v3363, %v3359
        %v3388 = vpack.c.b16 %v3364, %v3360
        %v3389 = vpack.c.b16 %v3365, %v3361
        %v3390 = vpack.c.b16 %v3370, %v3366
        %v3391 = vpack.c.b16 %v3371, %v3367
        %v3392 = vpack.c.b16 %v3372, %v3368
        %v3393 = vpack.c.b16 %v3373, %v3369
        %v3394 = vpack.c.b16 %v3378, %v3374
        %v3395 = vpack.c.b16 %v3379, %v3375
        %v3396 = vpack.c.b16 %v3380, %v3376
        %v3397 = vpack.c.b16 %v3381, %v3377
        %3414 = vmatpush.bf16.msra.mxu0 0
        %3415 = vmatpush.bf16.msra.mxu0 0
        %3416 = vmatpush.bf16.msra.mxu0 0
        %3417 = vmatpush.bf16.msra.mxu0 0
        %3418 = vmatpush.bf16.msra.mxu0 %v3394
        %3419 = vmatpush.bf16.msra.mxu0 %v3390
        %3420 = vmatpush.bf16.msra.mxu0 %v3386
        %3421 = vmatpush.bf16.msra.mxu0 %v3382
        %3422 = vmatmul.bf16.gmra.mxu0 %v1944
        %v3423 = vpop.f32.mrf.mxu0
        %v3424 = vadd.f32 %v3326, %v3423
        %v3425 = vpop.f32.mrf.mxu0
        %v3426 = vadd.f32 %v3326, %v3425
        %3427 = vdwg.mxu0
        %3428 = vmatpush.bf16.msra.mxu0 0
        %3429 = vmatpush.bf16.msra.mxu0 0
        %3430 = vmatpush.bf16.msra.mxu0 0
        %3431 = vmatpush.bf16.msra.mxu0 0
        %3432 = vmatpush.bf16.msra.mxu0 %v3395
        %3433 = vmatpush.bf16.msra.mxu0 %v3391
        %3434 = vmatpush.bf16.msra.mxu0 %v3387
        %3435 = vmatpush.bf16.msra.mxu0 %v3383
        %3436 = vmatmul.bf16.gmra.mxu0 %v1944
        %v3437 = vpop.f32.mrf.mxu0
        %v3438 = vadd.f32 %v3327, %v3437
        %v3439 = vpop.f32.mrf.mxu0
        %v3440 = vadd.f32 %v3327, %v3439
        %3441 = vdwg.mxu0
        %3442 = vmatpush.bf16.msra.mxu0 0
        %3443 = vmatpush.bf16.msra.mxu0 0
        %3444 = vmatpush.bf16.msra.mxu0 0
        %3445 = vmatpush.bf16.msra.mxu0 0
        %3446 = vmatpush.bf16.msra.mxu0 %v3396
        %3447 = vmatpush.bf16.msra.mxu0 %v3392
        %3448 = vmatpush.bf16.msra.mxu0 %v3388
        %3449 = vmatpush.bf16.msra.mxu0 %v3384
        %3450 = vmatmul.bf16.gmra.mxu0 %v1944
        %v3451 = vpop.f32.mrf.mxu0
        %v3452 = vadd.f32 %v3328, %v3451
        %v3453 = vpop.f32.mrf.mxu0
        %v3454 = vadd.f32 %v3328, %v3453
        %3455 = vdwg.mxu0
        %3456 = vmatpush.bf16.msra.mxu0 0
        %3457 = vmatpush.bf16.msra.mxu0 0
        %3458 = vmatpush.bf16.msra.mxu0 0
        %3459 = vmatpush.bf16.msra.mxu0 0
        %3460 = vmatpush.bf16.msra.mxu0 %v3397
        %3461 = vmatpush.bf16.msra.mxu0 %v3393
        %3462 = vmatpush.bf16.msra.mxu0 %v3389
        %3463 = vmatpush.bf16.msra.mxu0 %v3385
        %3464 = vmatmul.bf16.gmra.mxu0 %v1944
        %v3465 = vpop.f32.mrf.mxu0
        %v3466 = vadd.f32 %v3329, %v3465
        %v3467 = vpop.f32.mrf.mxu0
        %v3468 = vadd.f32 %v3329, %v3467
        %3469 = vdwg.mxu0
        %v3470 = vmax.f32 %v3424, 0.0
        %v3471 = vmax.f32 %v3438, 0.0
        %v3472 = vmax.f32 %v3452, 0.0
        %v3473 = vmax.f32 %v3466, 0.0
        %v3474 = vmax.f32 %v3426, 0.0
        %v3475 = vmax.f32 %v3440, 0.0
        %v3476 = vmax.f32 %v3454, 0.0
        %v3477 = vmax.f32 %v3468, 0.0
        %s3478 = scalar_lea.vmem %s639, 768
        %v3479 = vld [vmem:[%s3478] sm:$0xf]
        %v3480 = vld [vmem:[%s3478 + $0x4] sm:$0xf]
        %v3481 = vld [vmem:[%s3478 + $0x8] sm:$0xf]
        %v3482 = vld [vmem:[%s3478 + $0xc] sm:$0xf]
        %v3483 = vld [vmem:[%s3478 + $0x10] sm:$0xf]
        %v3484 = vld [vmem:[%s3478 + $0x14] sm:$0xf]
        %v3485 = vld [vmem:[%s3478 + $0x18] sm:$0xf]
        %v3486 = vld [vmem:[%s3478 + $0x1c] sm:$0xf]
        %v3487 = vld [vmem:[%s3478 + $0x20] sm:$0xf]
        %v3488 = vld [vmem:[%s3478 + $0x24] sm:$0xf]
        %v3489 = vld [vmem:[%s3478 + $0x28] sm:$0xf]
        %v3490 = vld [vmem:[%s3478 + $0x2c] sm:$0xf]
        %v3491 = vld [vmem:[%s3478 + $0x30] sm:$0xf]
        %v3492 = vld [vmem:[%s3478 + $0x34] sm:$0xf]
        %v3493 = vld [vmem:[%s3478 + $0x38] sm:$0xf]
        %v3494 = vld [vmem:[%s3478 + $0x3c] sm:$0xf]
        %v3495 = vld [vmem:[%s3478 + $0x40] sm:$0xf]
        %v3496 = vld [vmem:[%s3478 + $0x44] sm:$0xf]
        %v3497 = vld [vmem:[%s3478 + $0x48] sm:$0xf]
        %v3498 = vld [vmem:[%s3478 + $0x4c] sm:$0xf]
        %v3499 = vld [vmem:[%s3478 + $0x50] sm:$0xf]
        %v3500 = vld [vmem:[%s3478 + $0x54] sm:$0xf]
        %v3501 = vld [vmem:[%s3478 + $0x58] sm:$0xf]
        %v3502 = vld [vmem:[%s3478 + $0x5c] sm:$0xf]
        %v3503 = vld [vmem:[%s3478 + $0x60] sm:$0xf]
        %v3504 = vld [vmem:[%s3478 + $0x64] sm:$0xf]
        %v3505 = vld [vmem:[%s3478 + $0x68] sm:$0xf]
        %v3506 = vld [vmem:[%s3478 + $0x6c] sm:$0xf]
        %v3507 = vld [vmem:[%s3478 + $0x70] sm:$0xf]
        %v3508 = vld [vmem:[%s3478 + $0x74] sm:$0xf]
        %v3509 = vld [vmem:[%s3478 + $0x78] sm:$0xf]
        %v3510 = vld [vmem:[%s3478 + $0x7c] sm:$0xf]
        %v3511 = vld [vmem:[%s3478 + $0x80] sm:$0xf]
        %v3512 = vld [vmem:[%s3478 + $0x84] sm:$0xf]
        %v3513 = vld [vmem:[%s3478 + $0x88] sm:$0xf]
        %v3514 = vld [vmem:[%s3478 + $0x8c] sm:$0xf]
        %v3515 = vld [vmem:[%s3478 + $0x90] sm:$0xf]
        %v3516 = vld [vmem:[%s3478 + $0x94] sm:$0xf]
        %v3517 = vld [vmem:[%s3478 + $0x98] sm:$0xf]
        %v3518 = vld [vmem:[%s3478 + $0x9c] sm:$0xf]
        %v3519 = vld [vmem:[%s3478 + $0xa0] sm:$0xf]
        %v3520 = vld [vmem:[%s3478 + $0xa4] sm:$0xf]
        %v3521 = vld [vmem:[%s3478 + $0xa8] sm:$0xf]
        %v3522 = vld [vmem:[%s3478 + $0xac] sm:$0xf]
        %v3523 = vld [vmem:[%s3478 + $0xb0] sm:$0xf]
        %v3524 = vld [vmem:[%s3478 + $0xb4] sm:$0xf]
        %v3525 = vld [vmem:[%s3478 + $0xb8] sm:$0xf]
        %v3526 = vld [vmem:[%s3478 + $0xbc] sm:$0xf]
        %v3527 = vld [vmem:[%s3478 + $0xc0] sm:$0xf]
        %v3528 = vld [vmem:[%s3478 + $0xc4] sm:$0xf]
        %v3529 = vld [vmem:[%s3478 + $0xc8] sm:$0xf]
        %v3530 = vld [vmem:[%s3478 + $0xcc] sm:$0xf]
        %v3531 = vld [vmem:[%s3478 + $0xd0] sm:$0xf]
        %v3532 = vld [vmem:[%s3478 + $0xd4] sm:$0xf]
        %v3533 = vld [vmem:[%s3478 + $0xd8] sm:$0xf]
        %v3534 = vld [vmem:[%s3478 + $0xdc] sm:$0xf]
        %v3535 = vld [vmem:[%s3478 + $0xe0] sm:$0xf]
        %v3536 = vld [vmem:[%s3478 + $0xe4] sm:$0xf]
        %v3537 = vld [vmem:[%s3478 + $0xe8] sm:$0xf]
        %v3538 = vld [vmem:[%s3478 + $0xec] sm:$0xf]
        %v3539 = vld [vmem:[%s3478 + $0xf0] sm:$0xf]
        %v3540 = vld [vmem:[%s3478 + $0xf4] sm:$0xf]
        %v3541 = vld [vmem:[%s3478 + $0xf8] sm:$0xf]
        %v3542 = vld [vmem:[%s3478 + $0xfc] sm:$0xf]
        %v3543 = vpack.c.bf16 %v3474, %v3470
        %v3544 = vpack.c.bf16 %v3475, %v3471
        %v3545 = vpack.c.bf16 %v3476, %v3472
        %v3546 = vpack.c.bf16 %v3477, %v3473
        %v3611 = vunpack.c.l.b16 %v3479
        %v3612 = vunpack.c.l.b16 %v3480
        %v3613 = vunpack.c.l.b16 %v3481
        %v3614 = vunpack.c.l.b16 %v3482
        %v3615 = vunpack.c.l.b16 %v3483
        %v3616 = vunpack.c.l.b16 %v3484
        %v3617 = vunpack.c.l.b16 %v3485
        %v3618 = vunpack.c.l.b16 %v3486
        %v3619 = vunpack.c.l.b16 %v3487
        %v3620 = vunpack.c.l.b16 %v3488
        %v3621 = vunpack.c.l.b16 %v3489
        %v3622 = vunpack.c.l.b16 %v3490
        %v3623 = vunpack.c.l.b16 %v3491
        %v3624 = vunpack.c.l.b16 %v3492
        %v3625 = vunpack.c.l.b16 %v3493
        %v3626 = vunpack.c.l.b16 %v3494
        %v3627 = vunpack.c.l.b16 %v3495
        %v3628 = vunpack.c.l.b16 %v3496
        %v3629 = vunpack.c.l.b16 %v3497
        %v3630 = vunpack.c.l.b16 %v3498
        %v3631 = vunpack.c.l.b16 %v3499
        %v3632 = vunpack.c.l.b16 %v3500
        %v3633 = vunpack.c.l.b16 %v3501
        %v3634 = vunpack.c.l.b16 %v3502
        %v3635 = vunpack.c.l.b16 %v3503
        %v3636 = vunpack.c.l.b16 %v3504
        %v3637 = vunpack.c.l.b16 %v3505
        %v3638 = vunpack.c.l.b16 %v3506
        %v3639 = vunpack.c.l.b16 %v3507
        %v3640 = vunpack.c.l.b16 %v3508
        %v3641 = vunpack.c.l.b16 %v3509
        %v3642 = vunpack.c.l.b16 %v3510
        %v3643 = vunpack.c.l.b16 %v3511
        %v3644 = vunpack.c.l.b16 %v3512
        %v3645 = vunpack.c.l.b16 %v3513
        %v3646 = vunpack.c.l.b16 %v3514
        %v3647 = vunpack.c.l.b16 %v3515
        %v3648 = vunpack.c.l.b16 %v3516
        %v3649 = vunpack.c.l.b16 %v3517
        %v3650 = vunpack.c.l.b16 %v3518
        %v3651 = vunpack.c.l.b16 %v3519
        %v3652 = vunpack.c.l.b16 %v3520
        %v3653 = vunpack.c.l.b16 %v3521
        %v3654 = vunpack.c.l.b16 %v3522
        %v3655 = vunpack.c.l.b16 %v3523
        %v3656 = vunpack.c.l.b16 %v3524
        %v3657 = vunpack.c.l.b16 %v3525
        %v3658 = vunpack.c.l.b16 %v3526
        %v3659 = vunpack.c.l.b16 %v3527
        %v3660 = vunpack.c.l.b16 %v3528
        %v3661 = vunpack.c.l.b16 %v3529
        %v3662 = vunpack.c.l.b16 %v3530
        %v3663 = vunpack.c.l.b16 %v3531
        %v3664 = vunpack.c.l.b16 %v3532
        %v3665 = vunpack.c.l.b16 %v3533
        %v3666 = vunpack.c.l.b16 %v3534
        %v3667 = vunpack.c.l.b16 %v3535
        %v3668 = vunpack.c.l.b16 %v3536
        %v3669 = vunpack.c.l.b16 %v3537
        %v3670 = vunpack.c.l.b16 %v3538
        %v3671 = vunpack.c.l.b16 %v3539
        %v3672 = vunpack.c.l.b16 %v3540
        %v3673 = vunpack.c.l.b16 %v3541
        %v3674 = vunpack.c.l.b16 %v3542
        %v3675 = vpack.c.b16 %v3612, %v3611
        %v3676 = vpack.c.b16 %v3614, %v3613
        %v3677 = vpack.c.b16 %v3616, %v3615
        %v3678 = vpack.c.b16 %v3618, %v3617
        %v3679 = vpack.c.b16 %v3620, %v3619
        %v3680 = vpack.c.b16 %v3622, %v3621
        %v3681 = vpack.c.b16 %v3624, %v3623
        %v3682 = vpack.c.b16 %v3626, %v3625
        %v3683 = vpack.c.b16 %v3628, %v3627
        %v3684 = vpack.c.b16 %v3630, %v3629
        %v3685 = vpack.c.b16 %v3632, %v3631
        %v3686 = vpack.c.b16 %v3634, %v3633
        %v3687 = vpack.c.b16 %v3636, %v3635
        %v3688 = vpack.c.b16 %v3638, %v3637
        %v3689 = vpack.c.b16 %v3640, %v3639
        %v3690 = vpack.c.b16 %v3642, %v3641
        %v3691 = vpack.c.b16 %v3644, %v3643
        %v3692 = vpack.c.b16 %v3646, %v3645
        %v3693 = vpack.c.b16 %v3648, %v3647
        %v3694 = vpack.c.b16 %v3650, %v3649
        %v3695 = vpack.c.b16 %v3652, %v3651
        %v3696 = vpack.c.b16 %v3654, %v3653
        %v3697 = vpack.c.b16 %v3656, %v3655
        %v3698 = vpack.c.b16 %v3658, %v3657
        %v3699 = vpack.c.b16 %v3660, %v3659
        %v3700 = vpack.c.b16 %v3662, %v3661
        %v3701 = vpack.c.b16 %v3664, %v3663
        %v3702 = vpack.c.b16 %v3666, %v3665
        %v3703 = vpack.c.b16 %v3668, %v3667
        %v3704 = vpack.c.b16 %v3670, %v3669
        %v3705 = vpack.c.b16 %v3672, %v3671
        %v3706 = vpack.c.b16 %v3674, %v3673
        %3739 = vmatpush.bf16.msra.mxu0 %v3682
        %3740 = vmatpush.bf16.msra.mxu0 %v3681
        %3741 = vmatpush.bf16.msra.mxu0 %v3680
        %3742 = vmatpush.bf16.msra.mxu0 %v3679
        %3743 = vmatpush.bf16.msra.mxu0 %v3678
        %3744 = vmatpush.bf16.msra.mxu0 %v3677
        %3745 = vmatpush.bf16.msra.mxu0 %v3676
        %3746 = vmatpush.bf16.msra.mxu0 %v3675
        %3747 = vmatmul.bf16.gmra.mxu0 %v3543
        %v3748 = vpop.f32.mrf.mxu0
        %v3749 = vadd.f32 0.0, %v3748
        %v3750 = vpop.f32.mrf.mxu0
        %v3751 = vadd.f32 0.0, %v3750
        %3752 = vdwg.mxu0
        %3753 = vmatpush.bf16.msra.mxu0 %v3690
        %3754 = vmatpush.bf16.msra.mxu0 %v3689
        %3755 = vmatpush.bf16.msra.mxu0 %v3688
        %3756 = vmatpush.bf16.msra.mxu0 %v3687
        %3757 = vmatpush.bf16.msra.mxu0 %v3686
        %3758 = vmatpush.bf16.msra.mxu0 %v3685
        %3759 = vmatpush.bf16.msra.mxu0 %v3684
        %3760 = vmatpush.bf16.msra.mxu0 %v3683
        %3761 = vmatmul.bf16.gmra.mxu0 %v3544
        %v3762 = vpop.f32.mrf.mxu0
        %v3763 = vadd.f32 %v3749, %v3762
        %v3764 = vpop.f32.mrf.mxu0
        %v3765 = vadd.f32 %v3751, %v3764
        %3766 = vdwg.mxu0
        %3767 = vmatpush.bf16.msra.mxu0 %v3698
        %3768 = vmatpush.bf16.msra.mxu0 %v3697
        %3769 = vmatpush.bf16.msra.mxu0 %v3696
        %3770 = vmatpush.bf16.msra.mxu0 %v3695
        %3771 = vmatpush.bf16.msra.mxu0 %v3694
        %3772 = vmatpush.bf16.msra.mxu0 %v3693
        %3773 = vmatpush.bf16.msra.mxu0 %v3692
        %3774 = vmatpush.bf16.msra.mxu0 %v3691
        %3775 = vmatmul.bf16.gmra.mxu0 %v3545
        %v3776 = vpop.f32.mrf.mxu0
        %v3777 = vadd.f32 %v3763, %v3776
        %v3778 = vpop.f32.mrf.mxu0
        %v3779 = vadd.f32 %v3765, %v3778
        %3780 = vdwg.mxu0
        %3781 = vmatpush.bf16.msra.mxu0 %v3706
        %3782 = vmatpush.bf16.msra.mxu0 %v3705
        %3783 = vmatpush.bf16.msra.mxu0 %v3704
        %3784 = vmatpush.bf16.msra.mxu0 %v3703
        %3785 = vmatpush.bf16.msra.mxu0 %v3702
        %3786 = vmatpush.bf16.msra.mxu0 %v3701
        %3787 = vmatpush.bf16.msra.mxu0 %v3700
        %3788 = vmatpush.bf16.msra.mxu0 %v3699
        %3789 = vmatmul.bf16.gmra.mxu0 %v3546
        %v3790 = vpop.f32.mrf.mxu0
        %v3791 = vadd.f32 %v3777, %v3790
        %v3792 = vpop.f32.mrf.mxu0
        %v3793 = vadd.f32 %v3779, %v3792
        %3794 = vdwg.mxu0
        %v3795 = vadd.f32 %v3304, %v3791
        %v3796 = vadd.f32 %v3305, %v3793
        %v3797 = vld [vmem:[%s642] sm:$0x1]
        %v3799 = vperm.slane %v3797, 0
        %v3801 = vadd.f32 %v3795, %v3799
        %v3802 = vadd.f32 %v3796, %v3799
        %v3803 = vadd.f32 %v1834, %v3801
        %v3804 = vadd.f32 %v1835, %v3802
        %v3805 = vsel %vm716, %v3803, 0.0
        %3806 = vadd.xlane.f32.xlu0 %v3805
        %v3807 = vpop.xlane.xlu0 %3806
        %v3808 = vsel %vm716, %v3804, 0.0
        %3809 = vadd.xlane.f32.xlu0 %v3808
        %v3810 = vpop.xlane.xlu0 %3809
        %v3811 = vmul.f32 %v3807, %v1785
        %v3812 = vmul.f32 %v3810, %v1785
        %v3813 = vsub.f32 %v3803, %v3811
        %v3814 = vsub.f32 %v3804, %v3812
        %v3815 = vmul.f32 %v3813, %v3813
        %v3816 = vmul.f32 %v3814, %v3814
        %v3817 = vsel %vm716, %v3815, 0.0
        %3818 = vadd.xlane.f32.xlu0 %v3817
        %v3819 = vpop.xlane.xlu0 %3818
        %v3820 = vsel %vm716, %v3816, 0.0
        %3821 = vadd.xlane.f32.xlu0 %v3820
        %v3822 = vpop.xlane.xlu0 %3821
        %v3823 = vmul.f32 %v3819, %v1785
        %v3824 = vmul.f32 %v3822, %v1785
        %v3825 = vadd.f32 %v3823, 1e-05
        %v3826 = vadd.f32 %v3824, 1e-05
        %v3827 = vrsqrt.pop %v3825
        %v3828 = vmul.f32 %v3827, %v3825
        %v3829 = vmul.f32 %v3828, %v3827
        %v3830 = vmul.f32 0.5, %v3829
        %v3831 = vsub.f32 1.5, %v3830
        %v3832 = vmul.f32 %v3827, %v3831
        %vm3833 = vweird.f32 %v3825
        %vm3834 = vweird.f32 %v3827
        %vm3835 = vmor %vm3833, %vm3834
        %v3836 = vsel %vm3835, %v3827, %v3832
        %v3837 = vrsqrt.pop %v3826
        %v3838 = vmul.f32 %v3837, %v3826
        %v3839 = vmul.f32 %v3838, %v3837
        %v3840 = vmul.f32 0.5, %v3839
        %v3841 = vsub.f32 1.5, %v3840
        %v3842 = vmul.f32 %v3837, %v3841
        %vm3843 = vweird.f32 %v3826
        %vm3844 = vweird.f32 %v3837
        %vm3845 = vmor %vm3843, %vm3844
        %v3846 = vsel %vm3845, %v3837, %v3842
        %v3847 = vmul.f32 %v3813, %v3836
        %v3848 = vmul.f32 %v3814, %v3846
        %v3849 = vld [vmem:[%s645] sm:$0x1]
        %v3851 = vperm.slane %v3849, 0
        %v3853 = vmul.f32 %v3847, %v3851
        %v3854 = vmul.f32 %v3848, %v3851
        %v3855 = vld [vmem:[%s648] sm:$0x1]
        %v3857 = vperm.slane %v3855, 0
        %v3859 = vadd.f32 %v3853, %v3857
        %v3860 = vadd.f32 %v3854, %v3857
        %3861 = vst.msk [vmem:[#allocation2] sm:$0xff] %vm716, %v3859
        %3862 = vst.msk [vmem:[#allocation2 + $0x8] sm:$0xff] %vm716, %v3860
        %p3863 = scmp.eq.s32.totalorder %s32, 3
        // Predicated region
        $region77: #{tpu_custom_call.1} parent=71 // pred_check
          %p3864 = pneg %p3863
        $region78: #{tpu_custom_call.1} parent=71 // pred_check_branch
          %3866 = sbr.rel (%p3864) target = $region80
        $region79: #{tpu_custom_call.1} parent=71 // pred_region
          %3867 = vst.msk [vmem:[%s597] sm:$0xff] %vm716, %v3859
          %3868 = vst.msk [vmem:[%s597 + $0x8] sm:$0xff] %vm716, %v3860
        $region80: #{tpu_custom_call.1} parent=71 // pred_fallthru
          _
        %s3869 = sand.u32 %s385, 1
        %s3870 = scalar_lea.sflag [#allocation4], %s3869
        %s3871 = sand.u32 %s385, 1
        %s3872 = smul.addr %s3871, 16
        %s3873 = scalar_lea.vmem [#allocation3], %s3872
        // Predicated region
        $region81: #{tpu_custom_call.1} parent=71 // pred_check
          %p3874 = pneg %p395
        $region82: #{tpu_custom_call.1} parent=71 // pred_check_branch
          %3876 = sbr.rel (%p3874) target = $region84
        $region83: #{tpu_custom_call.1} parent=71 // pred_region
          %3878 = vsyncadd %s3870, 0
          %s3879 = smul.addr %s31, 2
          %s3880 = smul.addr %s3879, 8
          %s3881 = scalar_lea.hbm %s13, %s3880
          %s3882 = sshll.u32 %s3873, 4
          %s3883 = int_to_ptr.vmem [resolvable:$true] %s3882
          %s3884 = sshll.u32 %s3881, 4
          %s3885 = int_to_ptr.hbm [resolvable:$true] %s3884
          %3890 = dma.vmem_to_hbm [thread:$0]  %s3883, 256, %s3885, %s3870, 128, 128, 8
        $region84: #{tpu_custom_call.1} parent=71 // pred_fallthru
          _
      $region72: #{tpu_custom_call.1} parent=5 // pred_fallthru
        _
      %p3891 = scmp.le.s32.totalorder 2, %s22
      // Predicated region
      $region85: #{tpu_custom_call.1} parent=5 // pred_check
        %p3892 = pneg %p3891
      $region86: #{tpu_custom_call.1} parent=5 // pred_check_branch
        %3894 = sbr.rel (%p3892) target = $region88
      $region87: #{tpu_custom_call.1} parent=5 // pred_region
        %s3895 = ssub.s32 %s22, 2
        // Predicated region
        $region89: #{tpu_custom_call.1} parent=87 // pred_check
          %p3896 = pneg %p401
        $region90: #{tpu_custom_call.1} parent=87 // pred_check_branch
          %3898 = sbr.rel (%p3896) target = $region92
        $region91: #{tpu_custom_call.1} parent=87 // pred_region
          %s3899 = sand.u32 %s386, 1
          %s3900 = scalar_lea.sflag [#allocation4], %s3899
          %s3901 = sand.u32 %s386, 1
          %s3902 = smul.addr %s3901, 16
          %s3903 = scalar_lea.vmem [#allocation3], %s3902
          %3905 = dma.done %s3900, 256
        $region92: #{tpu_custom_call.1} parent=87 // pred_fallthru
          _
      $region88: #{tpu_custom_call.1} parent=5 // pred_fallthru
        _
    $region6: #{tpu_custom_call.1} parent=1 // loop_footer
      %s26 = sadd.s32 1, %s22
    $region7: #{tpu_custom_call.1} parent=1 // loop_footer_branch
      %21 = sbr.rel target = $region3
    $region8: #{tpu_custom_call.1} parent=1 // loop_exit
      _
    %3906 = vsyncpa [#allocation4], 1
    %s3907 = scalar_lea.sflag [#allocation4], 1
    %3908 = vsyncpa %s3907, 1

</llo_original>
